<compile_context>
chip_gen: v7x
topology: tpu7x:2x2x1
jax: 0.10.0
libtpu: 0.0.40
codegen_flags: <defaults>
</compile_context>

<pallas_src>
import functools

import jax
import jax.numpy as jnp
from jax import lax
from jax.experimental import pallas as pl
from jax.experimental.pallas import tpu as pltpu

K1, S1 = 5, 1    # seq_conv1: kernel 5, stride 1
K2, S2 = 13, 3   # seq_conv2: kernel 13, stride 3
BN_EPS = 1e-5


def _round_up(x, m):
    return ((x + m - 1) // m) * m


def _seq_cnn_kernel(tok_ref, w1_ref, b1_ref, w2_ref, b2_ref, o_ref, *, V, Jw, L2w):
    """One block of Bb batch elements per grid step.

    tok_ref: (1, S2, Lph, Bb) int32   de-interleaved tokens:
             tok_ref[0, r, j, b] = tokens[block*Bb + b, S2*j + r]  (0-padded)
    w1_ref : (Kvp, C1p) bf16   emb composed into conv1, BN1 folded, 0-padded
    b1_ref : (1, C1p)   f32
    w2_ref : (K2, C1p, Hp) bf16  per-tap conv2 weights, BN2 folded, 0-padded
    b2_ref : (1, Hp)    f32
    o_ref  : (L2w*Bb, Hp) f32   rows ordered (t, b) within the block
    """
    Bb = tok_ref.shape[-1]
    Kvp, C1p = w1_ref.shape
    Hp = o_ref.shape[-1]

    tok = tok_ref[0]                                     # (S2, Lph, Bb) int32, tiny

    # ---- stage 1: conv1 (+embedding, +BN1) ---------------------------------
    # conv1 output position S2*j + r, tap k reads the token at sequence
    # position S2*j + r + k == phase (r+k)%S2, intra-phase index j+(r+k)//S2.
    # Build the (S2, Jw, Bb, Kvp) multi-hot with one 128-lane compare per tap
    # against a shared broadcast iota (shifts happen on the tiny int32 token
    # tensor only).  Padded lanes kv >= K1*V never match since tokens < V.
    iota_kv = lax.broadcasted_iota(jnp.int32, (S2, Jw, Bb, Kvp), 3)
    hit = None
    for k in range(K1):
        tap_tok = jnp.stack(
            [tok[(r + k) % S2, (r + k) // S2:(r + k) // S2 + Jw, :]
             for r in range(S2)], axis=0)                # (S2, Jw, Bb) int32
        m = iota_kv == (tap_tok[..., None] + k * V)
        hit = m if hit is None else jnp.logical_or(hit, m)
    slab = hit.astype(jnp.float32).astype(jnp.bfloat16)  # exact 0/1 in bf16
    slab = slab.reshape(S2 * Jw * Bb, Kvp)

    # One lane-dense bf16 matmul for all S2 phases (K and N padded to 128);
    # f32 accumulation, bias + SiLU in f32, cast to bf16 to feed conv2's MXU.
    a = jnp.dot(slab, w1_ref[...], preferred_element_type=jnp.float32) + b1_ref[...]
    h = (a * jax.nn.sigmoid(a)).astype(jnp.bfloat16)     # SiLU (padded cols stay 0)
    h = h.reshape(S2, Jw * Bb, C1p)                      # row j*Bb + b of phase r

    # ---- stage 2: conv2 (stride S2, +BN2) -----------------------------------
    # conv2 output position t, tap k reads conv1 position S2*t + k = phase
    # k%S2 at intra-phase index t + k//S2  ->  contiguous row slice
    # [q*Bb, (q+L2w)*Bb) of h[k%S2].  K2 accumulated matmuls (K = C1p = 128,
    # lane dense) instead of a 13-way lane-axis concat.
    def tap(k):
        q = (k // S2) * Bb
        return jnp.dot(h[k % S2, q:q + L2w * Bb, :], w2_ref[k],
                       preferred_element_type=jnp.float32)

    acc = tap(0)
    for k in range(1, K2):
        acc = acc + tap(k)

    y = acc + b2_ref[...]
    o_ref[...] = (y * jax.nn.sigmoid(y)).astype(o_ref.dtype)   # SiLU, lane-dense


def remora_seq_cnn(tokens, params, *, block_b=32):
    emb = params["emb"]                           # (V, E)
    w1, b1 = params["w1_eff"], params["b1_eff"]   # (K1, E, C1), (1, C1)
    w2, b2 = params["w2_eff"], params["b2_eff"]   # (K2, C1, H), (1, H)

    B, L = tokens.shape
    V = emb.shape[0]
    C1 = w1.shape[-1]
    H = w2.shape[-1]
    L1 = (L - K1) // S1 + 1
    L2 = (L1 - K2) // S2 + 1

    # ---- static tiling / padding (python ints) ----
    L2w = _round_up(L2, 8)                   # conv2 output rows per batch elem
    Q2 = (K2 - 1) // S2                      # max conv2 tap offset (phase idx)
    Jw = _round_up(L2w + Q2, 8)              # conv1 rows needed per phase
    Q1 = (S2 - 1 + K1 - 1) // S2             # max conv1 tap offset (phase idx)
    Lph = max(-(-L // S2), Jw + Q1)          # token entries per phase
    Kvp = _round_up(K1 * V, 128)             # conv1 contraction, lane dense
    C1p = _round_up(C1, 128)                 # conv1 out / conv2 in, lane dense
    Hp = _round_up(H, 128)                   # lane-dense output channels

    # Batch block: fit a conservative VMEM budget (v7x: 64 MiB physical,
    # 32 MiB scoped default) for the slab (bf16) + conv1 pre-act (f32) +
    # h (bf16) + accumulator/output (f32, double-buffered out block).
    per_b = S2 * Jw * C1p * (2 + 4 + 2) + 3 * L2w * Hp * 4
    vmem_cap = max(1, (12 * 1024 * 1024) // per_b)
    Bb = max(1, min(block_b, B, vmem_cap))
    if B > 1:
        Bb = min(Bb, -(-B // 2))             # grid >= 2: both v7x TCs get work
    if Bb >= 8:
        Bb = (Bb // 8) * 8                   # 8-aligned batch block -> aligned slices
    Bp = _round_up(B, Bb)
    G = Bp // Bb

    # ---- wrapper-side glue (cheap XLA ops on tiny tensors) ----
    # Padded token positions (>= L, or batch >= B) hold id 0 (a real embedding
    # row).  They are only read by output rows t >= L2 / batch >= B, which the
    # final slice drops: 3*(L2-1) + (K2-1) <= L1-1 and (L1-1) + (K1-1) <= L-1.
    tok_p = jnp.zeros((Bp, S2 * Lph), jnp.int32).at[:B, :L].set(tokens)
    # tok_d[g, r, j, b] = tokens[g*Bb + b, S2*j + r]  (position-major, batch-minor)
    tok_d = jnp.transpose(tok_p.reshape(G, Bb, Lph, S2), (0, 3, 2, 1))

    # fuse the embedding into conv1: row k*V + v holds emb[v] @ w1[k]; pad to
    # (Kvp, C1p) so the multi-hot slab and conv1 output are lane dense.
    w1v = jnp.einsum("ve,keo->kvo", emb, w1,
                     precision=lax.Precision.HIGHEST).reshape(K1 * V, C1)
    w1v = jnp.pad(w1v, ((0, Kvp - K1 * V), (0, C1p - C1))).astype(jnp.bfloat16)
    b1p = jnp.pad(b1, ((0, 0), (0, C1p - C1)))
    # conv2 weights per tap, contraction padded to C1p, outputs to Hp.
    w2p = jnp.pad(w2, ((0, 0), (0, C1p - C1), (0, Hp - H))).astype(jnp.bfloat16)
    b2p = jnp.pad(b2, ((0, 0), (0, Hp - H)))

    kernel = functools.partial(_seq_cnn_kernel, V=V, Jw=Jw, L2w=L2w)
    out = pl.pallas_call(
        kernel,
        out_shape=jax.ShapeDtypeStruct((G * L2w * Bb, Hp), jnp.float32),
        grid_spec=pltpu.PrefetchScalarGridSpec(
            num_scalar_prefetch=0,
            grid=(G,),
            in_specs=[
                pl.BlockSpec((1, S2, Lph, Bb), lambda g: (g, 0, 0, 0)),
                pl.BlockSpec((Kvp, C1p), lambda g: (0, 0)),
                pl.BlockSpec((1, C1p), lambda g: (0, 0)),
                pl.BlockSpec((K2, C1p, Hp), lambda g: (0, 0, 0)),
                pl.BlockSpec((1, Hp), lambda g: (0, 0)),
            ],
            out_specs=pl.BlockSpec((L2w * Bb, Hp), lambda g: (g, 0)),
        ),
        compiler_params=pltpu.CompilerParams(
            dimension_semantics=("parallel",)),
    )(tok_d, w1v, b1p, w2p, b2p)

    # un-permute (t, b) rows, strip padding, and return PyTorch NCW layout.
    y = out.reshape(G, L2w, Bb, Hp).transpose(0, 2, 1, 3).reshape(Bp, L2w, Hp)
    y = y[:B, :L2, :H]
    return jnp.transpose(y, (0, 2, 1))       # [B, H, L2]


def init_params(key, input_size, emb_size, cnn_size):
    """Deterministic synthetic parameters; returns (raw torch-like params,
    BN-folded params for the kernel)."""
    ks = jax.random.split(key, 13)
    f32 = jnp.float32
    raw = dict(
        emb=jax.random.normal(ks[0], (input_size, emb_size), f32),
        # conv weights created directly in [K, Cin, Cout] layout
        w1=0.1 * jax.random.normal(ks[1], (K1, emb_size, 16), f32),
        cb1=0.1 * jax.random.normal(ks[2], (16,), f32),
        w2=0.1 * jax.random.normal(ks[3], (K2, 16, cnn_size), f32),
        cb2=0.1 * jax.random.normal(ks[4], (cnn_size,), f32),
        # BatchNorm (eval-mode running stats + affine)
        g1=1.0 + 0.1 * jax.random.normal(ks[5], (16,), f32),
        beta1=0.1 * jax.random.normal(ks[6], (16,), f32),
        mu1=0.05 * jax.random.normal(ks[7], (16,), f32),
        var1=0.8 + 0.2 * jnp.abs(jax.random.normal(ks[8], (16,), f32)),
        g2=1.0 + 0.1 * jax.random.normal(ks[9], (cnn_size,), f32),
        beta2=0.1 * jax.random.normal(ks[10], (cnn_size,), f32),
        mu2=0.05 * jax.random.normal(ks[11], (cnn_size,), f32),
        var2=0.8 + 0.2 * jnp.abs(jax.random.normal(ks[12], (cnn_size,), f32)),
    )
    scale1 = raw["g1"] / jnp.sqrt(raw["var1"] + BN_EPS)
    scale2 = raw["g2"] / jnp.sqrt(raw["var2"] + BN_EPS)
    params = dict(
        emb=raw["emb"],
        w1_eff=raw["w1"] * scale1[None, None, :],
        b1_eff=((raw["cb1"] - raw["mu1"]) * scale1 + raw["beta1"])[None, :],
        w2_eff=raw["w2"] * scale2[None, None, :],
        b2_eff=((raw["cb2"] - raw["mu2"]) * scale2 + raw["beta2"])[None, :],
    )
    return raw, params


def reference(tokens, raw):
    """Pure-JAX reference matching the PyTorch eval-mode forward (f32 gold)."""
    x = raw["emb"][tokens]                        # [B, L, E]
    x = jnp.transpose(x, (0, 2, 1))               # [B, E, L]  (NCW)

    def conv1d(x, w_kio, b, stride):
        w = jnp.transpose(w_kio, (2, 1, 0))       # [Cout, Cin, K]
        y = lax.conv_general_dilated(
            x, w, window_strides=(stride,), padding="VALID",
            dimension_numbers=("NCH", "OIH", "NCH"),
            precision=lax.Precision.HIGHEST)
        return y + b[None, :, None]

    def bn(x, g, bt, mu, var):
        return ((x - mu[None, :, None]) / jnp.sqrt(var[None, :, None] + BN_EPS)
                * g[None, :, None] + bt[None, :, None])

    h = conv1d(x, raw["w1"], raw["cb1"], S1)
    h = bn(h, raw["g1"], raw["beta1"], raw["mu1"], raw["var1"])
    h = h * jax.nn.sigmoid(h)
    y = conv1d(h, raw["w2"], raw["cb2"], S2)
    y = bn(y, raw["g2"], raw["beta2"], raw["mu2"], raw["var2"])
    return y * jax.nn.sigmoid(y)


if __name__ == "__main__":
    input_size, emb_size, cnn_size = 6, 8, 32
    B, L = 2, 64

    key = jax.random.PRNGKey(0)
    kp, kt = jax.random.split(key)
    raw, params = init_params(kp, input_size, emb_size, cnn_size)
    tokens = jax.random.randint(kt, (B, L), 0, input_size, dtype=jnp.int32)

    out = jax.block_until_ready(remora_seq_cnn(tokens, params))

    L1 = (L - K1) // S1 + 1
    L2 = (L1 - K2) // S2 + 1
    assert out.shape == (B, cnn_size, L2), out.shape

    ref = reference(tokens, raw)
    err = float(jnp.max(jnp.abs(out - ref)))
    # bf16 MXU operands (weights rounded to bf16, f32 accumulation) vs an f32
    # HIGHEST-precision reference: a few 1e-3 of absolute error is expected.
    assert err < 2e-2, f"max abs err {err}"

    print("KERNEL_OK")
</pallas_src>

<mosaic_0001>
module attributes {stable_mosaic.version = 11 : i64} {
  func.func @_seq_cnn_kernel(%arg0: i32, %arg1: memref<1x3x26x1xi32, #tpu.memory_space<vmem>>, %arg2: memref<128x128xbf16, #tpu.memory_space<vmem>>, %arg3: memref<1x128xf32, #tpu.memory_space<vmem>>, %arg4: memref<13x128x128xbf16, #tpu.memory_space<vmem>>, %arg5: memref<1x128xf32, #tpu.memory_space<vmem>>, %arg6: memref<16x128xf32, #tpu.memory_space<vmem>>) attributes {dimension_semantics = [#tpu.dimension_semantics<parallel>], iteration_bounds = array<i64: 2>, scalar_prefetch = 0 : i64, scratch_operands = 0 : i64, tpu.core_type = #tpu.core_type<tc>, window_params = [{transform_indices = @transform_0, window_bounds = array<i64: 1, 3, 26, 1>}, {pipeline_mode = #tpu.pipeline_mode<synchronous>, transform_indices = @transform_1, window_bounds = array<i64: 128, 128>}, {pipeline_mode = #tpu.pipeline_mode<synchronous>, transform_indices = @transform_2, window_bounds = array<i64: 1, 128>}, {pipeline_mode = #tpu.pipeline_mode<synchronous>, transform_indices = @transform_3, window_bounds = array<i64: 13, 128, 128>}, {pipeline_mode = #tpu.pipeline_mode<synchronous>, transform_indices = @transform_4, window_bounds = array<i64: 1, 128>}, {transform_indices = @transform_5, window_bounds = array<i64: 16, 128>}]} {
    %c0 = arith.constant 0 : index
    %c0_0 = arith.constant 0 : index
    %c0_1 = arith.constant 0 : index
    %c0_2 = arith.constant 0 : index
    %0 = vector.load %arg1[%c0, %c0_0, %c0_1, %c0_2] : memref<1x3x26x1xi32, #tpu.memory_space<vmem>>, vector<1x3x26x1xi32>
    %1 = vector.shape_cast %0 : vector<1x3x26x1xi32> to vector<3x26x1xi32>
    %2 = tpu.iota {dimensions = array<i32: 3>} : vector<3x24x1x128xi32>
    %3 = vector.extract_strided_slice %1 {offsets = [0, 0, 0], sizes = [1, 24, 1], strides = [1, 1, 1]} : vector<3x26x1xi32> to vector<1x24x1xi32>
    %4 = vector.shape_cast %3 : vector<1x24x1xi32> to vector<24x1xi32>
    %5 = vector.extract_strided_slice %1 {offsets = [1, 0, 0], sizes = [1, 24, 1], strides = [1, 1, 1]} : vector<3x26x1xi32> to vector<1x24x1xi32>
    %6 = vector.shape_cast %5 : vector<1x24x1xi32> to vector<24x1xi32>
    %7 = vector.extract_strided_slice %1 {offsets = [2, 0, 0], sizes = [1, 24, 1], strides = [1, 1, 1]} : vector<3x26x1xi32> to vector<1x24x1xi32>
    %8 = vector.shape_cast %7 : vector<1x24x1xi32> to vector<24x1xi32>
    %9 = vector.shape_cast %4 : vector<24x1xi32> to vector<1x24x1xi32>
    %10 = vector.shape_cast %6 : vector<24x1xi32> to vector<1x24x1xi32>
    %11 = vector.shape_cast %8 : vector<24x1xi32> to vector<1x24x1xi32>
    %12 = tpu.concatenate %9, %10, %11 in 0 : vector<1x24x1xi32>, vector<1x24x1xi32>, vector<1x24x1xi32> -> vector<3x24x1xi32>
    %13 = vector.shape_cast %12 : vector<3x24x1xi32> to vector<3x24x1x1xi32>
    %c0_i32 = arith.constant 0 : i32
    %14 = vector.broadcast %c0_i32 : i32 to vector<3x24x1x1xi32>
    %15 = arith.addi %13, %14 : vector<3x24x1x1xi32>
    %16 = vector.broadcast %15 : vector<3x24x1x1xi32> to vector<3x24x1x128xi32>
    %17 = arith.cmpi eq, %2, %16 : vector<3x24x1x128xi32>
    %18 = vector.extract_strided_slice %1 {offsets = [1, 0, 0], sizes = [1, 24, 1], strides = [1, 1, 1]} : vector<3x26x1xi32> to vector<1x24x1xi32>
    %19 = vector.shape_cast %18 : vector<1x24x1xi32> to vector<24x1xi32>
    %20 = vector.extract_strided_slice %1 {offsets = [2, 0, 0], sizes = [1, 24, 1], strides = [1, 1, 1]} : vector<3x26x1xi32> to vector<1x24x1xi32>
    %21 = vector.shape_cast %20 : vector<1x24x1xi32> to vector<24x1xi32>
    %22 = vector.extract_strided_slice %1 {offsets = [0, 1, 0], sizes = [1, 24, 1], strides = [1, 1, 1]} : vector<3x26x1xi32> to vector<1x24x1xi32>
    %23 = vector.shape_cast %22 : vector<1x24x1xi32> to vector<24x1xi32>
    %24 = vector.shape_cast %19 : vector<24x1xi32> to vector<1x24x1xi32>
    %25 = vector.shape_cast %21 : vector<24x1xi32> to vector<1x24x1xi32>
    %26 = vector.shape_cast %23 : vector<24x1xi32> to vector<1x24x1xi32>
    %27 = tpu.concatenate %24, %25, %26 in 0 : vector<1x24x1xi32>, vector<1x24x1xi32>, vector<1x24x1xi32> -> vector<3x24x1xi32>
    %28 = vector.shape_cast %27 : vector<3x24x1xi32> to vector<3x24x1x1xi32>
    %c6_i32 = arith.constant 6 : i32
    %29 = vector.broadcast %c6_i32 : i32 to vector<3x24x1x1xi32>
    %30 = arith.addi %28, %29 : vector<3x24x1x1xi32>
    %31 = vector.broadcast %30 : vector<3x24x1x1xi32> to vector<3x24x1x128xi32>
    %32 = arith.cmpi eq, %2, %31 : vector<3x24x1x128xi32>
    %33 = arith.ori %17, %32 : vector<3x24x1x128xi1>
    %34 = vector.extract_strided_slice %1 {offsets = [2, 0, 0], sizes = [1, 24, 1], strides = [1, 1, 1]} : vector<3x26x1xi32> to vector<1x24x1xi32>
    %35 = vector.shape_cast %34 : vector<1x24x1xi32> to vector<24x1xi32>
    %36 = vector.extract_strided_slice %1 {offsets = [0, 1, 0], sizes = [1, 24, 1], strides = [1, 1, 1]} : vector<3x26x1xi32> to vector<1x24x1xi32>
    %37 = vector.shape_cast %36 : vector<1x24x1xi32> to vector<24x1xi32>
    %38 = vector.extract_strided_slice %1 {offsets = [1, 1, 0], sizes = [1, 24, 1], strides = [1, 1, 1]} : vector<3x26x1xi32> to vector<1x24x1xi32>
    %39 = vector.shape_cast %38 : vector<1x24x1xi32> to vector<24x1xi32>
    %40 = vector.shape_cast %35 : vector<24x1xi32> to vector<1x24x1xi32>
    %41 = vector.shape_cast %37 : vector<24x1xi32> to vector<1x24x1xi32>
    %42 = vector.shape_cast %39 : vector<24x1xi32> to vector<1x24x1xi32>
    %43 = tpu.concatenate %40, %41, %42 in 0 : vector<1x24x1xi32>, vector<1x24x1xi32>, vector<1x24x1xi32> -> vector<3x24x1xi32>
    %44 = vector.shape_cast %43 : vector<3x24x1xi32> to vector<3x24x1x1xi32>
    %c12_i32 = arith.constant 12 : i32
    %45 = vector.broadcast %c12_i32 : i32 to vector<3x24x1x1xi32>
    %46 = arith.addi %44, %45 : vector<3x24x1x1xi32>
    %47 = vector.broadcast %46 : vector<3x24x1x1xi32> to vector<3x24x1x128xi32>
    %48 = arith.cmpi eq, %2, %47 : vector<3x24x1x128xi32>
    %49 = arith.ori %33, %48 : vector<3x24x1x128xi1>
    %50 = vector.extract_strided_slice %1 {offsets = [0, 1, 0], sizes = [1, 24, 1], strides = [1, 1, 1]} : vector<3x26x1xi32> to vector<1x24x1xi32>
    %51 = vector.shape_cast %50 : vector<1x24x1xi32> to vector<24x1xi32>
    %52 = vector.extract_strided_slice %1 {offsets = [1, 1, 0], sizes = [1, 24, 1], strides = [1, 1, 1]} : vector<3x26x1xi32> to vector<1x24x1xi32>
    %53 = vector.shape_cast %52 : vector<1x24x1xi32> to vector<24x1xi32>
    %54 = vector.extract_strided_slice %1 {offsets = [2, 1, 0], sizes = [1, 24, 1], strides = [1, 1, 1]} : vector<3x26x1xi32> to vector<1x24x1xi32>
    %55 = vector.shape_cast %54 : vector<1x24x1xi32> to vector<24x1xi32>
    %56 = vector.shape_cast %51 : vector<24x1xi32> to vector<1x24x1xi32>
    %57 = vector.shape_cast %53 : vector<24x1xi32> to vector<1x24x1xi32>
    %58 = vector.shape_cast %55 : vector<24x1xi32> to vector<1x24x1xi32>
    %59 = tpu.concatenate %56, %57, %58 in 0 : vector<1x24x1xi32>, vector<1x24x1xi32>, vector<1x24x1xi32> -> vector<3x24x1xi32>
    %60 = vector.shape_cast %59 : vector<3x24x1xi32> to vector<3x24x1x1xi32>
    %c18_i32 = arith.constant 18 : i32
    %61 = vector.broadcast %c18_i32 : i32 to vector<3x24x1x1xi32>
    %62 = arith.addi %60, %61 : vector<3x24x1x1xi32>
    %63 = vector.broadcast %62 : vector<3x24x1x1xi32> to vector<3x24x1x128xi32>
    %64 = arith.cmpi eq, %2, %63 : vector<3x24x1x128xi32>
    %65 = arith.ori %49, %64 : vector<3x24x1x128xi1>
    %66 = vector.extract_strided_slice %1 {offsets = [1, 1, 0], sizes = [1, 24, 1], strides = [1, 1, 1]} : vector<3x26x1xi32> to vector<1x24x1xi32>
    %67 = vector.shape_cast %66 : vector<1x24x1xi32> to vector<24x1xi32>
    %68 = vector.extract_strided_slice %1 {offsets = [2, 1, 0], sizes = [1, 24, 1], strides = [1, 1, 1]} : vector<3x26x1xi32> to vector<1x24x1xi32>
    %69 = vector.shape_cast %68 : vector<1x24x1xi32> to vector<24x1xi32>
    %70 = vector.extract_strided_slice %1 {offsets = [0, 2, 0], sizes = [1, 24, 1], strides = [1, 1, 1]} : vector<3x26x1xi32> to vector<1x24x1xi32>
    %71 = vector.shape_cast %70 : vector<1x24x1xi32> to vector<24x1xi32>
    %72 = vector.shape_cast %67 : vector<24x1xi32> to vector<1x24x1xi32>
    %73 = vector.shape_cast %69 : vector<24x1xi32> to vector<1x24x1xi32>
    %74 = vector.shape_cast %71 : vector<24x1xi32> to vector<1x24x1xi32>
    %75 = tpu.concatenate %72, %73, %74 in 0 : vector<1x24x1xi32>, vector<1x24x1xi32>, vector<1x24x1xi32> -> vector<3x24x1xi32>
    %76 = vector.shape_cast %75 : vector<3x24x1xi32> to vector<3x24x1x1xi32>
    %c24_i32 = arith.constant 24 : i32
    %77 = vector.broadcast %c24_i32 : i32 to vector<3x24x1x1xi32>
    %78 = arith.addi %76, %77 : vector<3x24x1x1xi32>
    %79 = vector.broadcast %78 : vector<3x24x1x1xi32> to vector<3x24x1x128xi32>
    %80 = arith.cmpi eq, %2, %79 : vector<3x24x1x128xi32>
    %81 = arith.ori %65, %80 : vector<3x24x1x128xi1>
    %82 = arith.extui %81 : vector<3x24x1x128xi1> to vector<3x24x1x128xi32>
    %83 = arith.sitofp %82 : vector<3x24x1x128xi32> to vector<3x24x1x128xf32>
    %84 = arith.truncf %83 : vector<3x24x1x128xf32> to vector<3x24x1x128xbf16>
    %85 = vector.shape_cast %84 : vector<3x24x1x128xbf16> to vector<72x128xbf16>
    %c0_3 = arith.constant 0 : index
    %c0_4 = arith.constant 0 : index
    %86 = vector.load %arg2[%c0_3, %c0_4] : memref<128x128xbf16, #tpu.memory_space<vmem>>, vector<128x128xbf16>
    %cst = arith.constant dense<0.000000e+00> : vector<72x128xf32>
    %87 = tpu.matmul %85, %86, %cst {dimension_numbers = #tpu.dot_dimension_numbers<[1], [0], [0], [1], [0, 0, 1, 1], [], []>} : vector<72x128xbf16>, vector<128x128xbf16>, vector<72x128xf32> -> vector<72x128xf32>
    %c0_5 = arith.constant 0 : index
    %c0_6 = arith.constant 0 : index
    %88 = vector.load %arg3[%c0_5, %c0_6] : memref<1x128xf32, #tpu.memory_space<vmem>>, vector<1x128xf32>
    %89 = vector.broadcast %88 : vector<1x128xf32> to vector<72x128xf32>
    %90 = arith.addf %87, %89 : vector<72x128xf32>
    %91 = arith.negf %90 : vector<72x128xf32>
    %92 = math.exp %91 : vector<72x128xf32>
    %cst_7 = arith.constant 1.000000e+00 : f32
    %93 = vector.broadcast %cst_7 : f32 to vector<72x128xf32>
    %94 = arith.addf %93, %92 : vector<72x128xf32>
    %95 = arith.divf %93, %94 : vector<72x128xf32>
    %96 = arith.mulf %90, %95 : vector<72x128xf32>
    %97 = arith.truncf %96 : vector<72x128xf32> to vector<72x128xbf16>
    %98 = vector.shape_cast %97 : vector<72x128xbf16> to vector<3x24x128xbf16>
    %99 = vector.extract_strided_slice %98 {offsets = [0, 0, 0], sizes = [1, 16, 128], strides = [1, 1, 1]} : vector<3x24x128xbf16> to vector<1x16x128xbf16>
    %100 = vector.shape_cast %99 : vector<1x16x128xbf16> to vector<16x128xbf16>
    %c0_8 = arith.constant 0 : index
    %c0_9 = arith.constant 0 : index
    %c0_10 = arith.constant 0 : index
    %101 = vector.load %arg4[%c0_8, %c0_9, %c0_10] : memref<13x128x128xbf16, #tpu.memory_space<vmem>>, vector<1x128x128xbf16>
    %102 = vector.shape_cast %101 : vector<1x128x128xbf16> to vector<128x128xbf16>
    %cst_11 = arith.constant dense<0.000000e+00> : vector<16x128xf32>
    %103 = tpu.matmul %100, %102, %cst_11 {dimension_numbers = #tpu.dot_dimension_numbers<[1], [0], [0], [1], [0, 0, 1, 1], [], []>} : vector<16x128xbf16>, vector<128x128xbf16>, vector<16x128xf32> -> vector<16x128xf32>
    %104 = vector.extract_strided_slice %98 {offsets = [1, 0, 0], sizes = [1, 16, 128], strides = [1, 1, 1]} : vector<3x24x128xbf16> to vector<1x16x128xbf16>
    %105 = vector.shape_cast %104 : vector<1x16x128xbf16> to vector<16x128xbf16>
    %c1 = arith.constant 1 : index
    %c0_12 = arith.constant 0 : index
    %c0_13 = arith.constant 0 : index
    %106 = vector.load %arg4[%c1, %c0_12, %c0_13] : memref<13x128x128xbf16, #tpu.memory_space<vmem>>, vector<1x128x128xbf16>
    %107 = vector.shape_cast %106 : vector<1x128x128xbf16> to vector<128x128xbf16>
    %cst_14 = arith.constant dense<0.000000e+00> : vector<16x128xf32>
    %108 = tpu.matmul %105, %107, %cst_14 {dimension_numbers = #tpu.dot_dimension_numbers<[1], [0], [0], [1], [0, 0, 1, 1], [], []>} : vector<16x128xbf16>, vector<128x128xbf16>, vector<16x128xf32> -> vector<16x128xf32>
    %109 = arith.addf %103, %108 : vector<16x128xf32>
    %110 = vector.extract_strided_slice %98 {offsets = [2, 0, 0], sizes = [1, 16, 128], strides = [1, 1, 1]} : vector<3x24x128xbf16> to vector<1x16x128xbf16>
    %111 = vector.shape_cast %110 : vector<1x16x128xbf16> to vector<16x128xbf16>
    %c2 = arith.constant 2 : index
    %c0_15 = arith.constant 0 : index
    %c0_16 = arith.constant 0 : index
    %112 = vector.load %arg4[%c2, %c0_15, %c0_16] : memref<13x128x128xbf16, #tpu.memory_space<vmem>>, vector<1x128x128xbf16>
    %113 = vector.shape_cast %112 : vector<1x128x128xbf16> to vector<128x128xbf16>
    %cst_17 = arith.constant dense<0.000000e+00> : vector<16x128xf32>
    %114 = tpu.matmul %111, %113, %cst_17 {dimension_numbers = #tpu.dot_dimension_numbers<[1], [0], [0], [1], [0, 0, 1, 1], [], []>} : vector<16x128xbf16>, vector<128x128xbf16>, vector<16x128xf32> -> vector<16x128xf32>
    %115 = arith.addf %109, %114 : vector<16x128xf32>
    %116 = vector.extract_strided_slice %98 {offsets = [0, 1, 0], sizes = [1, 16, 128], strides = [1, 1, 1]} : vector<3x24x128xbf16> to vector<1x16x128xbf16>
    %117 = vector.shape_cast %116 : vector<1x16x128xbf16> to vector<16x128xbf16>
    %c3 = arith.constant 3 : index
    %c0_18 = arith.constant 0 : index
    %c0_19 = arith.constant 0 : index
    %118 = vector.load %arg4[%c3, %c0_18, %c0_19] : memref<13x128x128xbf16, #tpu.memory_space<vmem>>, vector<1x128x128xbf16>
    %119 = vector.shape_cast %118 : vector<1x128x128xbf16> to vector<128x128xbf16>
    %cst_20 = arith.constant dense<0.000000e+00> : vector<16x128xf32>
    %120 = tpu.matmul %117, %119, %cst_20 {dimension_numbers = #tpu.dot_dimension_numbers<[1], [0], [0], [1], [0, 0, 1, 1], [], []>} : vector<16x128xbf16>, vector<128x128xbf16>, vector<16x128xf32> -> vector<16x128xf32>
    %121 = arith.addf %115, %120 : vector<16x128xf32>
    %122 = vector.extract_strided_slice %98 {offsets = [1, 1, 0], sizes = [1, 16, 128], strides = [1, 1, 1]} : vector<3x24x128xbf16> to vector<1x16x128xbf16>
    %123 = vector.shape_cast %122 : vector<1x16x128xbf16> to vector<16x128xbf16>
    %c4 = arith.constant 4 : index
    %c0_21 = arith.constant 0 : index
    %c0_22 = arith.constant 0 : index
    %124 = vector.load %arg4[%c4, %c0_21, %c0_22] : memref<13x128x128xbf16, #tpu.memory_space<vmem>>, vector<1x128x128xbf16>
    %125 = vector.shape_cast %124 : vector<1x128x128xbf16> to vector<128x128xbf16>
    %cst_23 = arith.constant dense<0.000000e+00> : vector<16x128xf32>
    %126 = tpu.matmul %123, %125, %cst_23 {dimension_numbers = #tpu.dot_dimension_numbers<[1], [0], [0], [1], [0, 0, 1, 1], [], []>} : vector<16x128xbf16>, vector<128x128xbf16>, vector<16x128xf32> -> vector<16x128xf32>
    %127 = arith.addf %121, %126 : vector<16x128xf32>
    %128 = vector.extract_strided_slice %98 {offsets = [2, 1, 0], sizes = [1, 16, 128], strides = [1, 1, 1]} : vector<3x24x128xbf16> to vector<1x16x128xbf16>
    %129 = vector.shape_cast %128 : vector<1x16x128xbf16> to vector<16x128xbf16>
    %c5 = arith.constant 5 : index
    %c0_24 = arith.constant 0 : index
    %c0_25 = arith.constant 0 : index
    %130 = vector.load %arg4[%c5, %c0_24, %c0_25] : memref<13x128x128xbf16, #tpu.memory_space<vmem>>, vector<1x128x128xbf16>
    %131 = vector.shape_cast %130 : vector<1x128x128xbf16> to vector<128x128xbf16>
    %cst_26 = arith.constant dense<0.000000e+00> : vector<16x128xf32>
    %132 = tpu.matmul %129, %131, %cst_26 {dimension_numbers = #tpu.dot_dimension_numbers<[1], [0], [0], [1], [0, 0, 1, 1], [], []>} : vector<16x128xbf16>, vector<128x128xbf16>, vector<16x128xf32> -> vector<16x128xf32>
    %133 = arith.addf %127, %132 : vector<16x128xf32>
    %134 = vector.extract_strided_slice %98 {offsets = [0, 2, 0], sizes = [1, 16, 128], strides = [1, 1, 1]} : vector<3x24x128xbf16> to vector<1x16x128xbf16>
    %135 = vector.shape_cast %134 : vector<1x16x128xbf16> to vector<16x128xbf16>
    %c6 = arith.constant 6 : index
    %c0_27 = arith.constant 0 : index
    %c0_28 = arith.constant 0 : index
    %136 = vector.load %arg4[%c6, %c0_27, %c0_28] : memref<13x128x128xbf16, #tpu.memory_space<vmem>>, vector<1x128x128xbf16>
    %137 = vector.shape_cast %136 : vector<1x128x128xbf16> to vector<128x128xbf16>
    %cst_29 = arith.constant dense<0.000000e+00> : vector<16x128xf32>
    %138 = tpu.matmul %135, %137, %cst_29 {dimension_numbers = #tpu.dot_dimension_numbers<[1], [0], [0], [1], [0, 0, 1, 1], [], []>} : vector<16x128xbf16>, vector<128x128xbf16>, vector<16x128xf32> -> vector<16x128xf32>
    %139 = arith.addf %133, %138 : vector<16x128xf32>
    %140 = vector.extract_strided_slice %98 {offsets = [1, 2, 0], sizes = [1, 16, 128], strides = [1, 1, 1]} : vector<3x24x128xbf16> to vector<1x16x128xbf16>
    %141 = vector.shape_cast %140 : vector<1x16x128xbf16> to vector<16x128xbf16>
    %c7 = arith.constant 7 : index
    %c0_30 = arith.constant 0 : index
    %c0_31 = arith.constant 0 : index
    %142 = vector.load %arg4[%c7, %c0_30, %c0_31] : memref<13x128x128xbf16, #tpu.memory_space<vmem>>, vector<1x128x128xbf16>
    %143 = vector.shape_cast %142 : vector<1x128x128xbf16> to vector<128x128xbf16>
    %cst_32 = arith.constant dense<0.000000e+00> : vector<16x128xf32>
    %144 = tpu.matmul %141, %143, %cst_32 {dimension_numbers = #tpu.dot_dimension_numbers<[1], [0], [0], [1], [0, 0, 1, 1], [], []>} : vector<16x128xbf16>, vector<128x128xbf16>, vector<16x128xf32> -> vector<16x128xf32>
    %145 = arith.addf %139, %144 : vector<16x128xf32>
    %146 = vector.extract_strided_slice %98 {offsets = [2, 2, 0], sizes = [1, 16, 128], strides = [1, 1, 1]} : vector<3x24x128xbf16> to vector<1x16x128xbf16>
    %147 = vector.shape_cast %146 : vector<1x16x128xbf16> to vector<16x128xbf16>
    %c8 = arith.constant 8 : index
    %c0_33 = arith.constant 0 : index
    %c0_34 = arith.constant 0 : index
    %148 = vector.load %arg4[%c8, %c0_33, %c0_34] : memref<13x128x128xbf16, #tpu.memory_space<vmem>>, vector<1x128x128xbf16>
    %149 = vector.shape_cast %148 : vector<1x128x128xbf16> to vector<128x128xbf16>
    %cst_35 = arith.constant dense<0.000000e+00> : vector<16x128xf32>
    %150 = tpu.matmul %147, %149, %cst_35 {dimension_numbers = #tpu.dot_dimension_numbers<[1], [0], [0], [1], [0, 0, 1, 1], [], []>} : vector<16x128xbf16>, vector<128x128xbf16>, vector<16x128xf32> -> vector<16x128xf32>
    %151 = arith.addf %145, %150 : vector<16x128xf32>
    %152 = vector.extract_strided_slice %98 {offsets = [0, 3, 0], sizes = [1, 16, 128], strides = [1, 1, 1]} : vector<3x24x128xbf16> to vector<1x16x128xbf16>
    %153 = vector.shape_cast %152 : vector<1x16x128xbf16> to vector<16x128xbf16>
    %c9 = arith.constant 9 : index
    %c0_36 = arith.constant 0 : index
    %c0_37 = arith.constant 0 : index
    %154 = vector.load %arg4[%c9, %c0_36, %c0_37] : memref<13x128x128xbf16, #tpu.memory_space<vmem>>, vector<1x128x128xbf16>
    %155 = vector.shape_cast %154 : vector<1x128x128xbf16> to vector<128x128xbf16>
    %cst_38 = arith.constant dense<0.000000e+00> : vector<16x128xf32>
    %156 = tpu.matmul %153, %155, %cst_38 {dimension_numbers = #tpu.dot_dimension_numbers<[1], [0], [0], [1], [0, 0, 1, 1], [], []>} : vector<16x128xbf16>, vector<128x128xbf16>, vector<16x128xf32> -> vector<16x128xf32>
    %157 = arith.addf %151, %156 : vector<16x128xf32>
    %158 = vector.extract_strided_slice %98 {offsets = [1, 3, 0], sizes = [1, 16, 128], strides = [1, 1, 1]} : vector<3x24x128xbf16> to vector<1x16x128xbf16>
    %159 = vector.shape_cast %158 : vector<1x16x128xbf16> to vector<16x128xbf16>
    %c10 = arith.constant 10 : index
    %c0_39 = arith.constant 0 : index
    %c0_40 = arith.constant 0 : index
    %160 = vector.load %arg4[%c10, %c0_39, %c0_40] : memref<13x128x128xbf16, #tpu.memory_space<vmem>>, vector<1x128x128xbf16>
    %161 = vector.shape_cast %160 : vector<1x128x128xbf16> to vector<128x128xbf16>
    %cst_41 = arith.constant dense<0.000000e+00> : vector<16x128xf32>
    %162 = tpu.matmul %159, %161, %cst_41 {dimension_numbers = #tpu.dot_dimension_numbers<[1], [0], [0], [1], [0, 0, 1, 1], [], []>} : vector<16x128xbf16>, vector<128x128xbf16>, vector<16x128xf32> -> vector<16x128xf32>
    %163 = arith.addf %157, %162 : vector<16x128xf32>
    %164 = vector.extract_strided_slice %98 {offsets = [2, 3, 0], sizes = [1, 16, 128], strides = [1, 1, 1]} : vector<3x24x128xbf16> to vector<1x16x128xbf16>
    %165 = vector.shape_cast %164 : vector<1x16x128xbf16> to vector<16x128xbf16>
    %c11 = arith.constant 11 : index
    %c0_42 = arith.constant 0 : index
    %c0_43 = arith.constant 0 : index
    %166 = vector.load %arg4[%c11, %c0_42, %c0_43] : memref<13x128x128xbf16, #tpu.memory_space<vmem>>, vector<1x128x128xbf16>
    %167 = vector.shape_cast %166 : vector<1x128x128xbf16> to vector<128x128xbf16>
    %cst_44 = arith.constant dense<0.000000e+00> : vector<16x128xf32>
    %168 = tpu.matmul %165, %167, %cst_44 {dimension_numbers = #tpu.dot_dimension_numbers<[1], [0], [0], [1], [0, 0, 1, 1], [], []>} : vector<16x128xbf16>, vector<128x128xbf16>, vector<16x128xf32> -> vector<16x128xf32>
    %169 = arith.addf %163, %168 : vector<16x128xf32>
    %170 = vector.extract_strided_slice %98 {offsets = [0, 4, 0], sizes = [1, 16, 128], strides = [1, 1, 1]} : vector<3x24x128xbf16> to vector<1x16x128xbf16>
    %171 = vector.shape_cast %170 : vector<1x16x128xbf16> to vector<16x128xbf16>
    %c12 = arith.constant 12 : index
    %c0_45 = arith.constant 0 : index
    %c0_46 = arith.constant 0 : index
    %172 = vector.load %arg4[%c12, %c0_45, %c0_46] : memref<13x128x128xbf16, #tpu.memory_space<vmem>>, vector<1x128x128xbf16>
    %173 = vector.shape_cast %172 : vector<1x128x128xbf16> to vector<128x128xbf16>
    %cst_47 = arith.constant dense<0.000000e+00> : vector<16x128xf32>
    %174 = tpu.matmul %171, %173, %cst_47 {dimension_numbers = #tpu.dot_dimension_numbers<[1], [0], [0], [1], [0, 0, 1, 1], [], []>} : vector<16x128xbf16>, vector<128x128xbf16>, vector<16x128xf32> -> vector<16x128xf32>
    %175 = arith.addf %169, %174 : vector<16x128xf32>
    %c0_48 = arith.constant 0 : index
    %c0_49 = arith.constant 0 : index
    %176 = vector.load %arg5[%c0_48, %c0_49] : memref<1x128xf32, #tpu.memory_space<vmem>>, vector<1x128xf32>
    %177 = vector.broadcast %176 : vector<1x128xf32> to vector<16x128xf32>
    %178 = arith.addf %175, %177 : vector<16x128xf32>
    %179 = arith.negf %178 : vector<16x128xf32>
    %180 = math.exp %179 : vector<16x128xf32>
    %cst_50 = arith.constant 1.000000e+00 : f32
    %181 = vector.broadcast %cst_50 : f32 to vector<16x128xf32>
    %182 = arith.addf %181, %180 : vector<16x128xf32>
    %183 = arith.divf %181, %182 : vector<16x128xf32>
    %184 = arith.mulf %178, %183 : vector<16x128xf32>
    %c0_51 = arith.constant 0 : index
    %c0_52 = arith.constant 0 : index
    %185 = vector.load %arg6[%c0_51, %c0_52] : memref<16x128xf32, #tpu.memory_space<vmem>>, vector<16x128xf32>
    tpu.vector_store %arg6[%c0_51, %c0_52], %184 {strides = array<i32>} : memref<16x128xf32, #tpu.memory_space<vmem>>, vector<16x128xf32>,
    return
  }
  func.func @transform_0(%arg0: i32) -> (i32, i32, i32, i32) {
    %c0_i32 = arith.constant 0 : i32
    %c0_i32_0 = arith.constant 0 : i32
    %c0_i32_1 = arith.constant 0 : i32
    %c0_i32_2 = arith.constant 0 : i32
    return %arg0, %c0_i32, %c0_i32_0, %c0_i32_1 : i32, i32, i32, i32
  }
  func.func @transform_1(%arg0: i32) -> (i32, i32) {
    %c0_i32 = arith.constant 0 : i32
    %c0_i32_0 = arith.constant 0 : i32
    %c0_i32_1 = arith.constant 0 : i32
    return %c0_i32, %c0_i32_0 : i32, i32
  }
  func.func @transform_2(%arg0: i32) -> (i32, i32) {
    %c0_i32 = arith.constant 0 : i32
    %c0_i32_0 = arith.constant 0 : i32
    %c0_i32_1 = arith.constant 0 : i32
    return %c0_i32, %c0_i32_0 : i32, i32
  }
  func.func @transform_3(%arg0: i32) -> (i32, i32, i32) {
    %c0_i32 = arith.constant 0 : i32
    %c0_i32_0 = arith.constant 0 : i32
    %c0_i32_1 = arith.constant 0 : i32
    %c0_i32_2 = arith.constant 0 : i32
    return %c0_i32, %c0_i32_0, %c0_i32_1 : i32, i32, i32
  }
  func.func @transform_4(%arg0: i32) -> (i32, i32) {
    %c0_i32 = arith.constant 0 : i32
    %c0_i32_0 = arith.constant 0 : i32
    %c0_i32_1 = arith.constant 0 : i32
    return %c0_i32, %c0_i32_0 : i32, i32
  }
  func.func @transform_5(%arg0: i32) -> (i32, i32) {
    %c0_i32 = arith.constant 0 : i32
    %c0_i32_0 = arith.constant 0 : i32
    return %arg0, %c0_i32 : i32, i32
  }
}

</mosaic_0001>

<llo_original>
// kernel: tpu_custom_call.1
$region0: #{tpu_custom_call.1}
  #allocation0 [shape = 'u32[]', space=smem, size = 0x4, offset = 0x4, fixed_abs, tag = 'smem constant byte address 0x4 - core index']
  #allocation1 [shape = 'u32[144,128]{1,0:T(1,128)}', space=vmem, size = 0x12000, scoped, tag = 'internal scratch']
  %s0 = inlined_call_operand.vmem [shape: s32[2,3,26,1], index: 0, kind: input, shape index: {}]
  %s1 = inlined_call_operand.vmem [shape: bf16[128,128], index: 1, kind: input, shape index: {}]
  %s2 = inlined_call_operand.vmem [shape: f32[1,128], index: 2, kind: input, shape index: {}]
  %s3 = inlined_call_operand.hbm [shape: bf16[13,128,128], index: 3, kind: input, shape index: {}]
  %s4 = inlined_call_operand.vmem [shape: f32[1,128], index: 4, kind: input, shape index: {}]
  %s5 = inlined_call_operand.hbm [shape: f32[32,128], index: 5, kind: output, shape index: {}]
  %s6 = sld [smem:[#allocation0]]
  $region57: #{tpu_custom_call.1} parent=0
    _
  %s8 = ssub.s32 1, %s6
  %s9 = scalar_select 0, %s8, %s6
  $region1: #{tpu_custom_call.1} parent=0
    #allocation2 [shape = 'u8[425984]{0}', space=vmem, size = 0x68000, scoped, tag = 'input window, operand 3, single buffered']
    #allocation3 [shape = 's32[2]{0}', space=sflag, size = 0x8, scoped, tag = 'scoped memory for tpu_custom_call.1']
    #allocation4 [shape = 's32[2]{0}', space=sflag, size = 0x8, scoped, tag = 'scoped memory for tpu_custom_call.1']
    #allocation5 [shape = 'u8[16384]{0}', space=vmem, size = 0x4000, scoped, tag = 'output window, operand 0']
    %10 = vsyncpa [#allocation3], 0
    %11 = vsyncpa [#allocation4], 0
    %s12 = scalar_lea.sflag [#allocation4], 1
    %13 = vsyncpa %s12, 0
    loop: start=0, step=1, limit=4
    $region2: #{tpu_custom_call.1} parent=1 // loop_pre_header
      _
    $region3: #{tpu_custom_call.1} parent=1 // loop_header
      %s15 = sphi 0, %s19
      %p16 = scmp.ge.s32.totalorder %s15, 4
      %s25 = sphi 0, %s27
      %s28 = sphi 0, %s25
      %s29 = sphi 0, %s28
      %s45 = sphi 0, %s29
      %s49 = sphi 0, %s49
      %s51 = sphi 0, %s49
      %s52 = sphi 0, %s51
      %s66 = sphi 0, %s52
      %s70 = sphi 0, %s70
      %s72 = sphi 0, %s70
      %s73 = sphi 0, %s72
      %s87 = sphi 0, %s73
      %s91 = sphi 0, %s91
      %s93 = sphi 0, %s91
      %s94 = sphi 0, %s93
      %s108 = sphi 0, %s94
      %s112 = sphi 0, %s112
      %s114 = sphi 0, %s112
      %s115 = sphi 0, %s114
      %s129 = sphi 0, %s115
      %s135 = sphi 0, %s137
      %s138 = sphi 0, %s135
      %s139 = sphi 0, %s138
      %s155 = sphi 0, %s139
    $region4: #{tpu_custom_call.1} parent=1 // loop_header_branch
      %18 = sbr.rel (%p16) target = $region8
    $region5: #{tpu_custom_call.1} parent=1 // loop_body
      %s20 = ssub.s32 %s15, 1
      %s21 = ssub.s32 %s15, 2
      %s22 = sadd.s32 %s15, 1
      %s23 = ssub.s32 %s15, %s22
      %p24 = scmp.eq.s32.totalorder %s23, 0
      %s26 = sadd.s32 %s25, 1
      %s27 = scalar_select %p24, %s25, %s26
      %p30 = pneg %p24
      %p31 = scmp.eq.s32.totalorder %s15, 1
      %p32 = por %p30, %p31
      %p33 = scmp.ne.s32.totalorder %s25, %s28
      %p34 = scmp.eq.s32.totalorder %s15, 0
      %p35 = por %p33, %p34
      %p36 = scmp.ne.s32.totalorder %s25, %s28
      %p37 = scmp.eq.s32.totalorder %s20, 1
      %p38 = por %p36, %p37
      %p39 = scmp.ne.s32.totalorder %s28, %s29
      %p40 = scmp.eq.s32.totalorder %s20, 0
      %p41 = por %p39, %p40
      %p42 = scmp.ne.s32.totalorder %s28, %s29
      %p43 = scmp.eq.s32.totalorder %s21, 1
      %p44 = por %p42, %p43
      %p46 = scmp.ne.s32.totalorder %s29, %s45
      %p47 = scmp.eq.s32.totalorder %s21, 0
      %p48 = por %p46, %p47
      %s50 = sadd.s32 %s49, 1
      %p53 = scmp.eq.s32.totalorder %s15, 1
      %p54 = scmp.ne.s32.totalorder %s49, %s51
      %p55 = scmp.eq.s32.totalorder %s15, 0
      %p56 = por %p54, %p55
      %p57 = scmp.ne.s32.totalorder %s49, %s51
      %p58 = scmp.eq.s32.totalorder %s20, 1
      %p59 = por %p57, %p58
      %p60 = scmp.ne.s32.totalorder %s51, %s52
      %p61 = scmp.eq.s32.totalorder %s20, 0
      %p62 = por %p60, %p61
      %p63 = scmp.ne.s32.totalorder %s51, %s52
      %p64 = scmp.eq.s32.totalorder %s21, 1
      %p65 = por %p63, %p64
      %p67 = scmp.ne.s32.totalorder %s52, %s66
      %p68 = scmp.eq.s32.totalorder %s21, 0
      %p69 = por %p67, %p68
      %s71 = sadd.s32 %s70, 1
      %p74 = scmp.eq.s32.totalorder %s15, 1
      %p75 = scmp.ne.s32.totalorder %s70, %s72
      %p76 = scmp.eq.s32.totalorder %s15, 0
      %p77 = por %p75, %p76
      %p78 = scmp.ne.s32.totalorder %s70, %s72
      %p79 = scmp.eq.s32.totalorder %s20, 1
      %p80 = por %p78, %p79
      %p81 = scmp.ne.s32.totalorder %s72, %s73
      %p82 = scmp.eq.s32.totalorder %s20, 0
      %p83 = por %p81, %p82
      %p84 = scmp.ne.s32.totalorder %s72, %s73
      %p85 = scmp.eq.s32.totalorder %s21, 1
      %p86 = por %p84, %p85
      %p88 = scmp.ne.s32.totalorder %s73, %s87
      %p89 = scmp.eq.s32.totalorder %s21, 0
      %p90 = por %p88, %p89
      %s92 = sadd.s32 %s91, 1
      %p95 = scmp.eq.s32.totalorder %s15, 1
      %p96 = scmp.ne.s32.totalorder %s91, %s93
      %p97 = scmp.eq.s32.totalorder %s15, 0
      %p98 = por %p96, %p97
      %p99 = scmp.ne.s32.totalorder %s91, %s93
      %p100 = scmp.eq.s32.totalorder %s20, 1
      %p101 = por %p99, %p100
      %p102 = scmp.ne.s32.totalorder %s93, %s94
      %p103 = scmp.eq.s32.totalorder %s20, 0
      %p104 = por %p102, %p103
      %p105 = scmp.ne.s32.totalorder %s93, %s94
      %p106 = scmp.eq.s32.totalorder %s21, 1
      %p107 = por %p105, %p106
      %p109 = scmp.ne.s32.totalorder %s94, %s108
      %p110 = scmp.eq.s32.totalorder %s21, 0
      %p111 = por %p109, %p110
      %s113 = sadd.s32 %s112, 1
      %p116 = scmp.eq.s32.totalorder %s15, 1
      %p117 = scmp.ne.s32.totalorder %s112, %s114
      %p118 = scmp.eq.s32.totalorder %s15, 0
      %p119 = por %p117, %p118
      %p120 = scmp.ne.s32.totalorder %s112, %s114
      %p121 = scmp.eq.s32.totalorder %s20, 1
      %p122 = por %p120, %p121
      %p123 = scmp.ne.s32.totalorder %s114, %s115
      %p124 = scmp.eq.s32.totalorder %s20, 0
      %p125 = por %p123, %p124
      %p126 = scmp.ne.s32.totalorder %s114, %s115
      %p127 = scmp.eq.s32.totalorder %s21, 1
      %p128 = por %p126, %p127
      %p130 = scmp.ne.s32.totalorder %s115, %s129
      %p131 = scmp.eq.s32.totalorder %s21, 0
      %p132 = por %p130, %p131
      %s133 = ssub.s32 %s15, %s22
      %p134 = scmp.eq.s32.totalorder %s133, 0
      %s136 = sadd.s32 %s135, 1
      %s137 = scalar_select %p134, %s135, %s136
      %p140 = pneg %p134
      %p141 = scmp.eq.s32.totalorder %s15, 1
      %p142 = por %p140, %p141
      %p143 = scmp.ne.s32.totalorder %s135, %s138
      %p144 = scmp.eq.s32.totalorder %s15, 0
      %p145 = por %p143, %p144
      %p146 = scmp.ne.s32.totalorder %s135, %s138
      %p147 = scmp.eq.s32.totalorder %s20, 1
      %p148 = por %p146, %p147
      %p149 = scmp.ne.s32.totalorder %s138, %s139
      %p150 = scmp.eq.s32.totalorder %s20, 0
      %p151 = por %p149, %p150
      %p152 = scmp.ne.s32.totalorder %s138, %s139
      %p153 = scmp.eq.s32.totalorder %s21, 1
      %p154 = por %p152, %p153
      %p156 = scmp.ne.s32.totalorder %s139, %s155
      %p157 = scmp.eq.s32.totalorder %s21, 0
      %p158 = por %p156, %p157
      %p159 = scmp.le.s32.totalorder 1, %s15
      %p160 = scmp.lt.s32.totalorder %s15, 3
      %p161 = pnand %p159, %p160
      %p162 = pneg %p161
      // Predicated region
      $region9: #{tpu_custom_call.1} parent=5 // pred_check
        _
      $region10: #{tpu_custom_call.1} parent=5 // pred_check_branch
        %164 = sbr.rel (%p161) target = $region12
      $region11: #{tpu_custom_call.1} parent=5 // pred_region
        %s165 = ssub.s32 %s15, 1
        // Predicated region
        $region13: #{tpu_custom_call.1} parent=11 // pred_check
          %p166 = pneg %p62
        $region14: #{tpu_custom_call.1} parent=11 // pred_check_branch
          %168 = sbr.rel (%p166) target = $region16
        $region15: #{tpu_custom_call.1} parent=11 // pred_region
          _
        $region16: #{tpu_custom_call.1} parent=11 // pred_fallthru
          _
        // Predicated region
        $region17: #{tpu_custom_call.1} parent=11 // pred_check
          %p169 = pneg %p83
        $region18: #{tpu_custom_call.1} parent=11 // pred_check_branch
          %171 = sbr.rel (%p169) target = $region20
        $region19: #{tpu_custom_call.1} parent=11 // pred_region
          _
        $region20: #{tpu_custom_call.1} parent=11 // pred_fallthru
          _
        // Predicated region
        $region21: #{tpu_custom_call.1} parent=11 // pred_check
          %p172 = pneg %p104
        $region22: #{tpu_custom_call.1} parent=11 // pred_check_branch
          %174 = sbr.rel (%p172) target = $region24
        $region23: #{tpu_custom_call.1} parent=11 // pred_region
          %s176 = ssub.s32 13312, 13312
          %177 = vsyncadd [#allocation3], %s176
          %s178 = sshll.u32 [#allocation2], 4
          %s179 = int_to_ptr.vmem [resolvable:$true] %s178
          %184 = dma.hbm_to_vmem [thread:$0]  %s3, 13312, %s179, [#allocation3], 64, 64, 4
        $region24: #{tpu_custom_call.1} parent=11 // pred_fallthru
          _
        // Predicated region
        $region25: #{tpu_custom_call.1} parent=11 // pred_check
          %p185 = pneg %p125
        $region26: #{tpu_custom_call.1} parent=11 // pred_check_branch
          %187 = sbr.rel (%p185) target = $region28
        $region27: #{tpu_custom_call.1} parent=11 // pred_region
          _
        $region28: #{tpu_custom_call.1} parent=11 // pred_fallthru
          _
      $region12: #{tpu_custom_call.1} parent=5 // pred_fallthru
        _
      %p188 = scmp.lt.s32.totalorder %s15, 2
      // Predicated region
      $region29: #{tpu_custom_call.1} parent=5 // pred_check
        %p189 = pneg %p188
      $region30: #{tpu_custom_call.1} parent=5 // pred_check_branch
        %191 = sbr.rel (%p189) target = $region32
      $region31: #{tpu_custom_call.1} parent=5 // pred_region
        // Predicated region
        $region33: #{tpu_custom_call.1} parent=31 // pred_check
          %p192 = pneg %p35
        $region34: #{tpu_custom_call.1} parent=31 // pred_check_branch
          %194 = sbr.rel (%p192) target = $region36
        $region35: #{tpu_custom_call.1} parent=31 // pred_region
          %p195 = scmp.lt.s32.totalorder %s15, 1
          %s196 = scalar_select %p195, %s15, 1
          %s197 = smul.addr %s196, 12
          %s198 = smul.addr %s197, 8
          %s199 = scalar_lea.vmem %s0, %s198
        $region36: #{tpu_custom_call.1} parent=31 // pred_fallthru
          _
      $region32: #{tpu_custom_call.1} parent=5 // pred_fallthru
        _
      %p200 = scmp.le.s32.totalorder 1, %s15
      %p201 = scmp.lt.s32.totalorder %s15, 3
      %p202 = pnand %p200, %p201
      %p203 = pneg %p202
      // Predicated region
      $region37: #{tpu_custom_call.1} parent=5 // pred_check
        _
      $region38: #{tpu_custom_call.1} parent=5 // pred_check_branch
        %205 = sbr.rel (%p202) target = $region40
      $region39: #{tpu_custom_call.1} parent=5 // pred_region
        %s206 = ssub.s32 %s15, 1
        // Predicated region
        $region41: #{tpu_custom_call.1} parent=39 // pred_check
          %p207 = pneg %p104
        $region42: #{tpu_custom_call.1} parent=39 // pred_check_branch
          %209 = sbr.rel (%p207) target = $region44
        $region43: #{tpu_custom_call.1} parent=39 // pred_region
          %210 = dma.done [#allocation3], 13312
        $region44: #{tpu_custom_call.1} parent=39 // pred_fallthru
          _
        %p211 = scmp.lt.s32.totalorder %s20, 1
        %s212 = scalar_select %p211, %s20, 1
        %s213 = smul.addr %s212, 12
        %s214 = smul.addr %s213, 8
        %s215 = scalar_lea.vmem %s0, %s214
        %p216 = pneg %p41
        %p217 = pneg %p38
        %p218 = pneg %p62
        %p219 = pneg %p59
        %p220 = pneg %p83
        %p221 = pneg %p80
        %p222 = pneg %p104
        %p223 = pneg %p101
        %p224 = pneg %p125
        %p225 = pneg %p122
        %p226 = pneg %p151
        %p227 = pneg %p148
        %s228 = sand.u32 %s138, 1
        %s229 = scalar_lea.sflag [#allocation4], %s228
        %s230 = sand.u32 %s138, 1
        %s231 = smul.addr %s230, 16
        %s232 = scalar_lea.vmem [#allocation5], %s231
        %p233 = scmp.lt.s32.totalorder %s20, 1
        %s234 = scalar_select %p233, %s20, 1
        %s235 = smul.addr %s234, 12
        %s236 = smul.addr %s235, 8
        %s237 = scalar_lea.vmem %s0, %s236
        %s238 = smul.u32 2, %s20
        %v240 = vld [vmem:[%s237] sm:$0xff]
        %v241 = vld [vmem:[%s237 + $0x8] sm:$0xff]
        %v242 = vld [vmem:[%s237 + $0x10] sm:$0xff]
        %v243 = vld [vmem:[%s237 + $0x18] sm:$0x3]
        %v244 = vld [vmem:[%s237 + $0x20] sm:$0xff]
        %v245 = vld [vmem:[%s237 + $0x28] sm:$0xff]
        %v246 = vld [vmem:[%s237 + $0x30] sm:$0xff]
        %v247 = vld [vmem:[%s237 + $0x38] sm:$0x3]
        %v248 = vld [vmem:[%s237 + $0x40] sm:$0xff]
        %v249 = vld [vmem:[%s237 + $0x48] sm:$0xff]
        %v250 = vld [vmem:[%s237 + $0x50] sm:$0xff]
        %v251 = vld [vmem:[%s237 + $0x58] sm:$0x3]
        %v252 = vlaneseq
        %v253 = vand.u32 %v252, 127
        %v254 = vcombine.high %v240, %v240
        %v256 = vunpack.c.l.s4 1966171168
        %v257 = vunpack.c.0.s8 %v256
        %v258 = vlaneseq
        %v259 = vshrl.u32 %v258, 7
        %v260 = vsub.s32 %v257, %v259
        %v261 = vrot.slane %v240, %v260
        %v263 = vunpack.c.l.s4 1966171168
        %v264 = vunpack.c.0.s8 %v263
        %v265 = vlaneseq
        %v266 = vshrl.u32 %v265, 7
        %v267 = vsub.s32 %v264, %v266
        %v268 = vrot.slane %v254, %v267
        %v269 = vcombine.high %v261, %v261
        %v270 = vcombine.high %v268, %v268
        %v272 = vunpack.c.l.s4 1966171168
        %v273 = vunpack.c.0.s8 %v272
        %v274 = vlaneseq
        %v275 = vshrl.u32 %v274, 7
        %v276 = vsub.s32 %v273, %v275
        %v277 = vrot.slane %v261, %v276
        %v279 = vunpack.c.l.s4 1966171168
        %v280 = vunpack.c.0.s8 %v279
        %v281 = vlaneseq
        %v282 = vshrl.u32 %v281, 7
        %v283 = vsub.s32 %v280, %v282
        %v284 = vrot.slane %v268, %v283
        %v286 = vunpack.c.l.s4 1966171168
        %v287 = vunpack.c.0.s8 %v286
        %v288 = vlaneseq
        %v289 = vshrl.u32 %v288, 7
        %v290 = vsub.s32 %v287, %v289
        %v291 = vrot.slane %v269, %v290
        %v293 = vunpack.c.l.s4 1966171168
        %v294 = vunpack.c.0.s8 %v293
        %v295 = vlaneseq
        %v296 = vshrl.u32 %v295, 7
        %v297 = vsub.s32 %v294, %v296
        %v298 = vrot.slane %v270, %v297
        %v299 = vcombine.high %v277, %v277
        %v300 = vcombine.high %v284, %v284
        %v301 = vcombine.high %v291, %v291
        %v302 = vcombine.high %v298, %v298
        %v303 = vcombine.high %v241, %v241
        %v305 = vunpack.c.l.s4 1966171168
        %v306 = vunpack.c.0.s8 %v305
        %v307 = vlaneseq
        %v308 = vshrl.u32 %v307, 7
        %v309 = vsub.s32 %v306, %v308
        %v310 = vrot.slane %v241, %v309
        %v312 = vunpack.c.l.s4 1966171168
        %v313 = vunpack.c.0.s8 %v312
        %v314 = vlaneseq
        %v315 = vshrl.u32 %v314, 7
        %v316 = vsub.s32 %v313, %v315
        %v317 = vrot.slane %v303, %v316
        %v318 = vcombine.high %v310, %v310
        %v319 = vcombine.high %v317, %v317
        %v321 = vunpack.c.l.s4 1966171168
        %v322 = vunpack.c.0.s8 %v321
        %v323 = vlaneseq
        %v324 = vshrl.u32 %v323, 7
        %v325 = vsub.s32 %v322, %v324
        %v326 = vrot.slane %v310, %v325
        %v328 = vunpack.c.l.s4 1966171168
        %v329 = vunpack.c.0.s8 %v328
        %v330 = vlaneseq
        %v331 = vshrl.u32 %v330, 7
        %v332 = vsub.s32 %v329, %v331
        %v333 = vrot.slane %v317, %v332
        %v335 = vunpack.c.l.s4 1966171168
        %v336 = vunpack.c.0.s8 %v335
        %v337 = vlaneseq
        %v338 = vshrl.u32 %v337, 7
        %v339 = vsub.s32 %v336, %v338
        %v340 = vrot.slane %v318, %v339
        %v342 = vunpack.c.l.s4 1966171168
        %v343 = vunpack.c.0.s8 %v342
        %v344 = vlaneseq
        %v345 = vshrl.u32 %v344, 7
        %v346 = vsub.s32 %v343, %v345
        %v347 = vrot.slane %v319, %v346
        %v348 = vcombine.high %v326, %v326
        %v349 = vcombine.high %v333, %v333
        %v350 = vcombine.high %v340, %v340
        %v351 = vcombine.high %v347, %v347
        %v352 = vcombine.high %v242, %v242
        %v354 = vunpack.c.l.s4 1966171168
        %v355 = vunpack.c.0.s8 %v354
        %v356 = vlaneseq
        %v357 = vshrl.u32 %v356, 7
        %v358 = vsub.s32 %v355, %v357
        %v359 = vrot.slane %v242, %v358
        %v361 = vunpack.c.l.s4 1966171168
        %v362 = vunpack.c.0.s8 %v361
        %v363 = vlaneseq
        %v364 = vshrl.u32 %v363, 7
        %v365 = vsub.s32 %v362, %v364
        %v366 = vrot.slane %v352, %v365
        %v367 = vcombine.high %v359, %v359
        %v368 = vcombine.high %v366, %v366
        %v370 = vunpack.c.l.s4 1966171168
        %v371 = vunpack.c.0.s8 %v370
        %v372 = vlaneseq
        %v373 = vshrl.u32 %v372, 7
        %v374 = vsub.s32 %v371, %v373
        %v375 = vrot.slane %v359, %v374
        %v377 = vunpack.c.l.s4 1966171168
        %v378 = vunpack.c.0.s8 %v377
        %v379 = vlaneseq
        %v380 = vshrl.u32 %v379, 7
        %v381 = vsub.s32 %v378, %v380
        %v382 = vrot.slane %v366, %v381
        %v384 = vunpack.c.l.s4 1966171168
        %v385 = vunpack.c.0.s8 %v384
        %v386 = vlaneseq
        %v387 = vshrl.u32 %v386, 7
        %v388 = vsub.s32 %v385, %v387
        %v389 = vrot.slane %v367, %v388
        %v391 = vunpack.c.l.s4 1966171168
        %v392 = vunpack.c.0.s8 %v391
        %v393 = vlaneseq
        %v394 = vshrl.u32 %v393, 7
        %v395 = vsub.s32 %v392, %v394
        %v396 = vrot.slane %v368, %v395
        %v397 = vcombine.high %v375, %v375
        %v398 = vcombine.high %v382, %v382
        %v399 = vcombine.high %v389, %v389
        %v400 = vcombine.high %v396, %v396
        %v401 = vcombine.high %v244, %v244
        %v403 = vunpack.c.l.s4 1966171168
        %v404 = vunpack.c.0.s8 %v403
        %v405 = vlaneseq
        %v406 = vshrl.u32 %v405, 7
        %v407 = vsub.s32 %v404, %v406
        %v408 = vrot.slane %v244, %v407
        %v410 = vunpack.c.l.s4 1966171168
        %v411 = vunpack.c.0.s8 %v410
        %v412 = vlaneseq
        %v413 = vshrl.u32 %v412, 7
        %v414 = vsub.s32 %v411, %v413
        %v415 = vrot.slane %v401, %v414
        %v416 = vcombine.high %v408, %v408
        %v417 = vcombine.high %v415, %v415
        %v419 = vunpack.c.l.s4 1966171168
        %v420 = vunpack.c.0.s8 %v419
        %v421 = vlaneseq
        %v422 = vshrl.u32 %v421, 7
        %v423 = vsub.s32 %v420, %v422
        %v424 = vrot.slane %v408, %v423
        %v426 = vunpack.c.l.s4 1966171168
        %v427 = vunpack.c.0.s8 %v426
        %v428 = vlaneseq
        %v429 = vshrl.u32 %v428, 7
        %v430 = vsub.s32 %v427, %v429
        %v431 = vrot.slane %v415, %v430
        %v433 = vunpack.c.l.s4 1966171168
        %v434 = vunpack.c.0.s8 %v433
        %v435 = vlaneseq
        %v436 = vshrl.u32 %v435, 7
        %v437 = vsub.s32 %v434, %v436
        %v438 = vrot.slane %v416, %v437
        %v440 = vunpack.c.l.s4 1966171168
        %v441 = vunpack.c.0.s8 %v440
        %v442 = vlaneseq
        %v443 = vshrl.u32 %v442, 7
        %v444 = vsub.s32 %v441, %v443
        %v445 = vrot.slane %v417, %v444
        %v446 = vcombine.high %v424, %v424
        %v447 = vcombine.high %v431, %v431
        %v448 = vcombine.high %v438, %v438
        %v449 = vcombine.high %v445, %v445
        %v450 = vcombine.high %v245, %v245
        %v452 = vunpack.c.l.s4 1966171168
        %v453 = vunpack.c.0.s8 %v452
        %v454 = vlaneseq
        %v455 = vshrl.u32 %v454, 7
        %v456 = vsub.s32 %v453, %v455
        %v457 = vrot.slane %v245, %v456
        %v459 = vunpack.c.l.s4 1966171168
        %v460 = vunpack.c.0.s8 %v459
        %v461 = vlaneseq
        %v462 = vshrl.u32 %v461, 7
        %v463 = vsub.s32 %v460, %v462
        %v464 = vrot.slane %v450, %v463
        %v465 = vcombine.high %v457, %v457
        %v466 = vcombine.high %v464, %v464
        %v468 = vunpack.c.l.s4 1966171168
        %v469 = vunpack.c.0.s8 %v468
        %v470 = vlaneseq
        %v471 = vshrl.u32 %v470, 7
        %v472 = vsub.s32 %v469, %v471
        %v473 = vrot.slane %v457, %v472
        %v475 = vunpack.c.l.s4 1966171168
        %v476 = vunpack.c.0.s8 %v475
        %v477 = vlaneseq
        %v478 = vshrl.u32 %v477, 7
        %v479 = vsub.s32 %v476, %v478
        %v480 = vrot.slane %v464, %v479
        %v482 = vunpack.c.l.s4 1966171168
        %v483 = vunpack.c.0.s8 %v482
        %v484 = vlaneseq
        %v485 = vshrl.u32 %v484, 7
        %v486 = vsub.s32 %v483, %v485
        %v487 = vrot.slane %v465, %v486
        %v489 = vunpack.c.l.s4 1966171168
        %v490 = vunpack.c.0.s8 %v489
        %v491 = vlaneseq
        %v492 = vshrl.u32 %v491, 7
        %v493 = vsub.s32 %v490, %v492
        %v494 = vrot.slane %v466, %v493
        %v495 = vcombine.high %v473, %v473
        %v496 = vcombine.high %v480, %v480
        %v497 = vcombine.high %v487, %v487
        %v498 = vcombine.high %v494, %v494
        %v499 = vcombine.high %v246, %v246
        %v501 = vunpack.c.l.s4 1966171168
        %v502 = vunpack.c.0.s8 %v501
        %v503 = vlaneseq
        %v504 = vshrl.u32 %v503, 7
        %v505 = vsub.s32 %v502, %v504
        %v506 = vrot.slane %v246, %v505
        %v508 = vunpack.c.l.s4 1966171168
        %v509 = vunpack.c.0.s8 %v508
        %v510 = vlaneseq
        %v511 = vshrl.u32 %v510, 7
        %v512 = vsub.s32 %v509, %v511
        %v513 = vrot.slane %v499, %v512
        %v514 = vcombine.high %v506, %v506
        %v515 = vcombine.high %v513, %v513
        %v517 = vunpack.c.l.s4 1966171168
        %v518 = vunpack.c.0.s8 %v517
        %v519 = vlaneseq
        %v520 = vshrl.u32 %v519, 7
        %v521 = vsub.s32 %v518, %v520
        %v522 = vrot.slane %v506, %v521
        %v524 = vunpack.c.l.s4 1966171168
        %v525 = vunpack.c.0.s8 %v524
        %v526 = vlaneseq
        %v527 = vshrl.u32 %v526, 7
        %v528 = vsub.s32 %v525, %v527
        %v529 = vrot.slane %v513, %v528
        %v531 = vunpack.c.l.s4 1966171168
        %v532 = vunpack.c.0.s8 %v531
        %v533 = vlaneseq
        %v534 = vshrl.u32 %v533, 7
        %v535 = vsub.s32 %v532, %v534
        %v536 = vrot.slane %v514, %v535
        %v538 = vunpack.c.l.s4 1966171168
        %v539 = vunpack.c.0.s8 %v538
        %v540 = vlaneseq
        %v541 = vshrl.u32 %v540, 7
        %v542 = vsub.s32 %v539, %v541
        %v543 = vrot.slane %v515, %v542
        %v544 = vcombine.high %v522, %v522
        %v545 = vcombine.high %v529, %v529
        %v546 = vcombine.high %v536, %v536
        %v547 = vcombine.high %v543, %v543
        %v548 = vcombine.high %v248, %v248
        %v550 = vunpack.c.l.s4 1966171168
        %v551 = vunpack.c.0.s8 %v550
        %v552 = vlaneseq
        %v553 = vshrl.u32 %v552, 7
        %v554 = vsub.s32 %v551, %v553
        %v555 = vrot.slane %v248, %v554
        %v557 = vunpack.c.l.s4 1966171168
        %v558 = vunpack.c.0.s8 %v557
        %v559 = vlaneseq
        %v560 = vshrl.u32 %v559, 7
        %v561 = vsub.s32 %v558, %v560
        %v562 = vrot.slane %v548, %v561
        %v563 = vcombine.high %v555, %v555
        %v564 = vcombine.high %v562, %v562
        %v566 = vunpack.c.l.s4 1966171168
        %v567 = vunpack.c.0.s8 %v566
        %v568 = vlaneseq
        %v569 = vshrl.u32 %v568, 7
        %v570 = vsub.s32 %v567, %v569
        %v571 = vrot.slane %v555, %v570
        %v573 = vunpack.c.l.s4 1966171168
        %v574 = vunpack.c.0.s8 %v573
        %v575 = vlaneseq
        %v576 = vshrl.u32 %v575, 7
        %v577 = vsub.s32 %v574, %v576
        %v578 = vrot.slane %v562, %v577
        %v580 = vunpack.c.l.s4 1966171168
        %v581 = vunpack.c.0.s8 %v580
        %v582 = vlaneseq
        %v583 = vshrl.u32 %v582, 7
        %v584 = vsub.s32 %v581, %v583
        %v585 = vrot.slane %v563, %v584
        %v587 = vunpack.c.l.s4 1966171168
        %v588 = vunpack.c.0.s8 %v587
        %v589 = vlaneseq
        %v590 = vshrl.u32 %v589, 7
        %v591 = vsub.s32 %v588, %v590
        %v592 = vrot.slane %v564, %v591
        %v593 = vcombine.high %v571, %v571
        %v594 = vcombine.high %v578, %v578
        %v595 = vcombine.high %v585, %v585
        %v596 = vcombine.high %v592, %v592
        %v597 = vcombine.high %v249, %v249
        %v599 = vunpack.c.l.s4 1966171168
        %v600 = vunpack.c.0.s8 %v599
        %v601 = vlaneseq
        %v602 = vshrl.u32 %v601, 7
        %v603 = vsub.s32 %v600, %v602
        %v604 = vrot.slane %v249, %v603
        %v606 = vunpack.c.l.s4 1966171168
        %v607 = vunpack.c.0.s8 %v606
        %v608 = vlaneseq
        %v609 = vshrl.u32 %v608, 7
        %v610 = vsub.s32 %v607, %v609
        %v611 = vrot.slane %v597, %v610
        %v612 = vcombine.high %v604, %v604
        %v613 = vcombine.high %v611, %v611
        %v615 = vunpack.c.l.s4 1966171168
        %v616 = vunpack.c.0.s8 %v615
        %v617 = vlaneseq
        %v618 = vshrl.u32 %v617, 7
        %v619 = vsub.s32 %v616, %v618
        %v620 = vrot.slane %v604, %v619
        %v622 = vunpack.c.l.s4 1966171168
        %v623 = vunpack.c.0.s8 %v622
        %v624 = vlaneseq
        %v625 = vshrl.u32 %v624, 7
        %v626 = vsub.s32 %v623, %v625
        %v627 = vrot.slane %v611, %v626
        %v629 = vunpack.c.l.s4 1966171168
        %v630 = vunpack.c.0.s8 %v629
        %v631 = vlaneseq
        %v632 = vshrl.u32 %v631, 7
        %v633 = vsub.s32 %v630, %v632
        %v634 = vrot.slane %v612, %v633
        %v636 = vunpack.c.l.s4 1966171168
        %v637 = vunpack.c.0.s8 %v636
        %v638 = vlaneseq
        %v639 = vshrl.u32 %v638, 7
        %v640 = vsub.s32 %v637, %v639
        %v641 = vrot.slane %v613, %v640
        %v642 = vcombine.high %v620, %v620
        %v643 = vcombine.high %v627, %v627
        %v644 = vcombine.high %v634, %v634
        %v645 = vcombine.high %v641, %v641
        %v646 = vcombine.high %v250, %v250
        %v648 = vunpack.c.l.s4 1966171168
        %v649 = vunpack.c.0.s8 %v648
        %v650 = vlaneseq
        %v651 = vshrl.u32 %v650, 7
        %v652 = vsub.s32 %v649, %v651
        %v653 = vrot.slane %v250, %v652
        %v655 = vunpack.c.l.s4 1966171168
        %v656 = vunpack.c.0.s8 %v655
        %v657 = vlaneseq
        %v658 = vshrl.u32 %v657, 7
        %v659 = vsub.s32 %v656, %v658
        %v660 = vrot.slane %v646, %v659
        %v661 = vcombine.high %v653, %v653
        %v662 = vcombine.high %v660, %v660
        %v664 = vunpack.c.l.s4 1966171168
        %v665 = vunpack.c.0.s8 %v664
        %v666 = vlaneseq
        %v667 = vshrl.u32 %v666, 7
        %v668 = vsub.s32 %v665, %v667
        %v669 = vrot.slane %v653, %v668
        %v671 = vunpack.c.l.s4 1966171168
        %v672 = vunpack.c.0.s8 %v671
        %v673 = vlaneseq
        %v674 = vshrl.u32 %v673, 7
        %v675 = vsub.s32 %v672, %v674
        %v676 = vrot.slane %v660, %v675
        %v678 = vunpack.c.l.s4 1966171168
        %v679 = vunpack.c.0.s8 %v678
        %v680 = vlaneseq
        %v681 = vshrl.u32 %v680, 7
        %v682 = vsub.s32 %v679, %v681
        %v683 = vrot.slane %v661, %v682
        %v685 = vunpack.c.l.s4 1966171168
        %v686 = vunpack.c.0.s8 %v685
        %v687 = vlaneseq
        %v688 = vshrl.u32 %v687, 7
        %v689 = vsub.s32 %v686, %v688
        %v690 = vrot.slane %v662, %v689
        %v691 = vcombine.high %v669, %v669
        %v692 = vcombine.high %v676, %v676
        %v693 = vcombine.high %v683, %v683
        %v694 = vcombine.high %v690, %v690
        %695 = vset.pattern.permute.xlu0 0
        %696 = vperm.xlu0 %695, %v277
        %v697 = vpop.permute.xlu0 %696
        %v698 = vlaneseq
        %v699 = vshrl.u32 %v698, 7
        %v700 = vsub.s32 0, %v699
        %v701 = vrot.slane %v697, %v700
        %702 = vset.pattern.permute.xlu0 0
        %703 = vperm.xlu0 %702, %v291
        %v704 = vpop.permute.xlu0 %703
        %v705 = vlaneseq
        %v706 = vshrl.u32 %v705, 7
        %v707 = vsub.s32 0, %v706
        %v708 = vrot.slane %v704, %v707
        %709 = vset.pattern.permute.xlu0 0
        %710 = vperm.xlu0 %709, %v299
        %v711 = vpop.permute.xlu0 %710
        %v712 = vlaneseq
        %v713 = vshrl.u32 %v712, 7
        %v714 = vsub.s32 0, %v713
        %v715 = vrot.slane %v711, %v714
        %716 = vset.pattern.permute.xlu0 0
        %717 = vperm.xlu0 %716, %v301
        %v718 = vpop.permute.xlu0 %717
        %v719 = vlaneseq
        %v720 = vshrl.u32 %v719, 7
        %v721 = vsub.s32 0, %v720
        %v722 = vrot.slane %v718, %v721
        %723 = vset.pattern.permute.xlu0 0
        %724 = vperm.xlu0 %723, %v284
        %v725 = vpop.permute.xlu0 %724
        %v726 = vlaneseq
        %v727 = vshrl.u32 %v726, 7
        %v728 = vsub.s32 0, %v727
        %v729 = vrot.slane %v725, %v728
        %730 = vset.pattern.permute.xlu0 0
        %731 = vperm.xlu0 %730, %v298
        %v732 = vpop.permute.xlu0 %731
        %v733 = vlaneseq
        %v734 = vshrl.u32 %v733, 7
        %v735 = vsub.s32 0, %v734
        %v736 = vrot.slane %v732, %v735
        %737 = vset.pattern.permute.xlu0 0
        %738 = vperm.xlu0 %737, %v300
        %v739 = vpop.permute.xlu0 %738
        %v740 = vlaneseq
        %v741 = vshrl.u32 %v740, 7
        %v742 = vsub.s32 0, %v741
        %v743 = vrot.slane %v739, %v742
        %744 = vset.pattern.permute.xlu0 0
        %745 = vperm.xlu0 %744, %v302
        %v746 = vpop.permute.xlu0 %745
        %v747 = vlaneseq
        %v748 = vshrl.u32 %v747, 7
        %v749 = vsub.s32 0, %v748
        %v750 = vrot.slane %v746, %v749
        %751 = vset.pattern.permute.xlu0 0
        %752 = vperm.xlu0 %751, %v326
        %v753 = vpop.permute.xlu0 %752
        %v754 = vlaneseq
        %v755 = vshrl.u32 %v754, 7
        %v756 = vsub.s32 0, %v755
        %v757 = vrot.slane %v753, %v756
        %758 = vset.pattern.permute.xlu0 0
        %759 = vperm.xlu0 %758, %v340
        %v760 = vpop.permute.xlu0 %759
        %v761 = vlaneseq
        %v762 = vshrl.u32 %v761, 7
        %v763 = vsub.s32 0, %v762
        %v764 = vrot.slane %v760, %v763
        %765 = vset.pattern.permute.xlu0 0
        %766 = vperm.xlu0 %765, %v348
        %v767 = vpop.permute.xlu0 %766
        %v768 = vlaneseq
        %v769 = vshrl.u32 %v768, 7
        %v770 = vsub.s32 0, %v769
        %v771 = vrot.slane %v767, %v770
        %772 = vset.pattern.permute.xlu0 0
        %773 = vperm.xlu0 %772, %v350
        %v774 = vpop.permute.xlu0 %773
        %v775 = vlaneseq
        %v776 = vshrl.u32 %v775, 7
        %v777 = vsub.s32 0, %v776
        %v778 = vrot.slane %v774, %v777
        %779 = vset.pattern.permute.xlu0 0
        %780 = vperm.xlu0 %779, %v333
        %v781 = vpop.permute.xlu0 %780
        %v782 = vlaneseq
        %v783 = vshrl.u32 %v782, 7
        %v784 = vsub.s32 0, %v783
        %v785 = vrot.slane %v781, %v784
        %786 = vset.pattern.permute.xlu0 0
        %787 = vperm.xlu0 %786, %v347
        %v788 = vpop.permute.xlu0 %787
        %v789 = vlaneseq
        %v790 = vshrl.u32 %v789, 7
        %v791 = vsub.s32 0, %v790
        %v792 = vrot.slane %v788, %v791
        %793 = vset.pattern.permute.xlu0 0
        %794 = vperm.xlu0 %793, %v349
        %v795 = vpop.permute.xlu0 %794
        %v796 = vlaneseq
        %v797 = vshrl.u32 %v796, 7
        %v798 = vsub.s32 0, %v797
        %v799 = vrot.slane %v795, %v798
        %800 = vset.pattern.permute.xlu0 0
        %801 = vperm.xlu0 %800, %v351
        %v802 = vpop.permute.xlu0 %801
        %v803 = vlaneseq
        %v804 = vshrl.u32 %v803, 7
        %v805 = vsub.s32 0, %v804
        %v806 = vrot.slane %v802, %v805
        %807 = vset.pattern.permute.xlu0 0
        %808 = vperm.xlu0 %807, %v375
        %v809 = vpop.permute.xlu0 %808
        %v810 = vlaneseq
        %v811 = vshrl.u32 %v810, 7
        %v812 = vsub.s32 0, %v811
        %v813 = vrot.slane %v809, %v812
        %814 = vset.pattern.permute.xlu0 0
        %815 = vperm.xlu0 %814, %v389
        %v816 = vpop.permute.xlu0 %815
        %v817 = vlaneseq
        %v818 = vshrl.u32 %v817, 7
        %v819 = vsub.s32 0, %v818
        %v820 = vrot.slane %v816, %v819
        %821 = vset.pattern.permute.xlu0 0
        %822 = vperm.xlu0 %821, %v397
        %v823 = vpop.permute.xlu0 %822
        %v824 = vlaneseq
        %v825 = vshrl.u32 %v824, 7
        %v826 = vsub.s32 0, %v825
        %v827 = vrot.slane %v823, %v826
        %828 = vset.pattern.permute.xlu0 0
        %829 = vperm.xlu0 %828, %v399
        %v830 = vpop.permute.xlu0 %829
        %v831 = vlaneseq
        %v832 = vshrl.u32 %v831, 7
        %v833 = vsub.s32 0, %v832
        %v834 = vrot.slane %v830, %v833
        %835 = vset.pattern.permute.xlu0 0
        %836 = vperm.xlu0 %835, %v382
        %v837 = vpop.permute.xlu0 %836
        %v838 = vlaneseq
        %v839 = vshrl.u32 %v838, 7
        %v840 = vsub.s32 0, %v839
        %v841 = vrot.slane %v837, %v840
        %842 = vset.pattern.permute.xlu0 0
        %843 = vperm.xlu0 %842, %v396
        %v844 = vpop.permute.xlu0 %843
        %v845 = vlaneseq
        %v846 = vshrl.u32 %v845, 7
        %v847 = vsub.s32 0, %v846
        %v848 = vrot.slane %v844, %v847
        %849 = vset.pattern.permute.xlu0 0
        %850 = vperm.xlu0 %849, %v398
        %v851 = vpop.permute.xlu0 %850
        %v852 = vlaneseq
        %v853 = vshrl.u32 %v852, 7
        %v854 = vsub.s32 0, %v853
        %v855 = vrot.slane %v851, %v854
        %856 = vset.pattern.permute.xlu0 0
        %857 = vperm.xlu0 %856, %v400
        %v858 = vpop.permute.xlu0 %857
        %v859 = vlaneseq
        %v860 = vshrl.u32 %v859, 7
        %v861 = vsub.s32 0, %v860
        %v862 = vrot.slane %v858, %v861
        %863 = vset.pattern.permute.xlu0 0
        %864 = vperm.xlu0 %863, %v424
        %v865 = vpop.permute.xlu0 %864
        %v866 = vlaneseq
        %v867 = vshrl.u32 %v866, 7
        %v868 = vsub.s32 0, %v867
        %v869 = vrot.slane %v865, %v868
        %870 = vset.pattern.permute.xlu0 0
        %871 = vperm.xlu0 %870, %v438
        %v872 = vpop.permute.xlu0 %871
        %v873 = vlaneseq
        %v874 = vshrl.u32 %v873, 7
        %v875 = vsub.s32 0, %v874
        %v876 = vrot.slane %v872, %v875
        %877 = vset.pattern.permute.xlu0 0
        %878 = vperm.xlu0 %877, %v446
        %v879 = vpop.permute.xlu0 %878
        %v880 = vlaneseq
        %v881 = vshrl.u32 %v880, 7
        %v882 = vsub.s32 0, %v881
        %v883 = vrot.slane %v879, %v882
        %884 = vset.pattern.permute.xlu0 0
        %885 = vperm.xlu0 %884, %v448
        %v886 = vpop.permute.xlu0 %885
        %v887 = vlaneseq
        %v888 = vshrl.u32 %v887, 7
        %v889 = vsub.s32 0, %v888
        %v890 = vrot.slane %v886, %v889
        %891 = vset.pattern.permute.xlu0 0
        %892 = vperm.xlu0 %891, %v431
        %v893 = vpop.permute.xlu0 %892
        %v894 = vlaneseq
        %v895 = vshrl.u32 %v894, 7
        %v896 = vsub.s32 0, %v895
        %v897 = vrot.slane %v893, %v896
        %898 = vset.pattern.permute.xlu0 0
        %899 = vperm.xlu0 %898, %v445
        %v900 = vpop.permute.xlu0 %899
        %v901 = vlaneseq
        %v902 = vshrl.u32 %v901, 7
        %v903 = vsub.s32 0, %v902
        %v904 = vrot.slane %v900, %v903
        %905 = vset.pattern.permute.xlu0 0
        %906 = vperm.xlu0 %905, %v447
        %v907 = vpop.permute.xlu0 %906
        %v908 = vlaneseq
        %v909 = vshrl.u32 %v908, 7
        %v910 = vsub.s32 0, %v909
        %v911 = vrot.slane %v907, %v910
        %912 = vset.pattern.permute.xlu0 0
        %913 = vperm.xlu0 %912, %v449
        %v914 = vpop.permute.xlu0 %913
        %v915 = vlaneseq
        %v916 = vshrl.u32 %v915, 7
        %v917 = vsub.s32 0, %v916
        %v918 = vrot.slane %v914, %v917
        %919 = vset.pattern.permute.xlu0 0
        %920 = vperm.xlu0 %919, %v473
        %v921 = vpop.permute.xlu0 %920
        %v922 = vlaneseq
        %v923 = vshrl.u32 %v922, 7
        %v924 = vsub.s32 0, %v923
        %v925 = vrot.slane %v921, %v924
        %926 = vset.pattern.permute.xlu0 0
        %927 = vperm.xlu0 %926, %v487
        %v928 = vpop.permute.xlu0 %927
        %v929 = vlaneseq
        %v930 = vshrl.u32 %v929, 7
        %v931 = vsub.s32 0, %v930
        %v932 = vrot.slane %v928, %v931
        %933 = vset.pattern.permute.xlu0 0
        %934 = vperm.xlu0 %933, %v495
        %v935 = vpop.permute.xlu0 %934
        %v936 = vlaneseq
        %v937 = vshrl.u32 %v936, 7
        %v938 = vsub.s32 0, %v937
        %v939 = vrot.slane %v935, %v938
        %940 = vset.pattern.permute.xlu0 0
        %941 = vperm.xlu0 %940, %v497
        %v942 = vpop.permute.xlu0 %941
        %v943 = vlaneseq
        %v944 = vshrl.u32 %v943, 7
        %v945 = vsub.s32 0, %v944
        %v946 = vrot.slane %v942, %v945
        %947 = vset.pattern.permute.xlu0 0
        %948 = vperm.xlu0 %947, %v480
        %v949 = vpop.permute.xlu0 %948
        %v950 = vlaneseq
        %v951 = vshrl.u32 %v950, 7
        %v952 = vsub.s32 0, %v951
        %v953 = vrot.slane %v949, %v952
        %954 = vset.pattern.permute.xlu0 0
        %955 = vperm.xlu0 %954, %v494
        %v956 = vpop.permute.xlu0 %955
        %v957 = vlaneseq
        %v958 = vshrl.u32 %v957, 7
        %v959 = vsub.s32 0, %v958
        %v960 = vrot.slane %v956, %v959
        %961 = vset.pattern.permute.xlu0 0
        %962 = vperm.xlu0 %961, %v496
        %v963 = vpop.permute.xlu0 %962
        %v964 = vlaneseq
        %v965 = vshrl.u32 %v964, 7
        %v966 = vsub.s32 0, %v965
        %v967 = vrot.slane %v963, %v966
        %968 = vset.pattern.permute.xlu0 0
        %969 = vperm.xlu0 %968, %v498
        %v970 = vpop.permute.xlu0 %969
        %v971 = vlaneseq
        %v972 = vshrl.u32 %v971, 7
        %v973 = vsub.s32 0, %v972
        %v974 = vrot.slane %v970, %v973
        %975 = vset.pattern.permute.xlu0 0
        %976 = vperm.xlu0 %975, %v522
        %v977 = vpop.permute.xlu0 %976
        %v978 = vlaneseq
        %v979 = vshrl.u32 %v978, 7
        %v980 = vsub.s32 0, %v979
        %v981 = vrot.slane %v977, %v980
        %982 = vset.pattern.permute.xlu0 0
        %983 = vperm.xlu0 %982, %v536
        %v984 = vpop.permute.xlu0 %983
        %v985 = vlaneseq
        %v986 = vshrl.u32 %v985, 7
        %v987 = vsub.s32 0, %v986
        %v988 = vrot.slane %v984, %v987
        %989 = vset.pattern.permute.xlu0 0
        %990 = vperm.xlu0 %989, %v544
        %v991 = vpop.permute.xlu0 %990
        %v992 = vlaneseq
        %v993 = vshrl.u32 %v992, 7
        %v994 = vsub.s32 0, %v993
        %v995 = vrot.slane %v991, %v994
        %996 = vset.pattern.permute.xlu0 0
        %997 = vperm.xlu0 %996, %v546
        %v998 = vpop.permute.xlu0 %997
        %v999 = vlaneseq
        %v1000 = vshrl.u32 %v999, 7
        %v1001 = vsub.s32 0, %v1000
        %v1002 = vrot.slane %v998, %v1001
        %1003 = vset.pattern.permute.xlu0 0
        %1004 = vperm.xlu0 %1003, %v529
        %v1005 = vpop.permute.xlu0 %1004
        %v1006 = vlaneseq
        %v1007 = vshrl.u32 %v1006, 7
        %v1008 = vsub.s32 0, %v1007
        %v1009 = vrot.slane %v1005, %v1008
        %1010 = vset.pattern.permute.xlu0 0
        %1011 = vperm.xlu0 %1010, %v543
        %v1012 = vpop.permute.xlu0 %1011
        %v1013 = vlaneseq
        %v1014 = vshrl.u32 %v1013, 7
        %v1015 = vsub.s32 0, %v1014
        %v1016 = vrot.slane %v1012, %v1015
        %1017 = vset.pattern.permute.xlu0 0
        %1018 = vperm.xlu0 %1017, %v545
        %v1019 = vpop.permute.xlu0 %1018
        %v1020 = vlaneseq
        %v1021 = vshrl.u32 %v1020, 7
        %v1022 = vsub.s32 0, %v1021
        %v1023 = vrot.slane %v1019, %v1022
        %1024 = vset.pattern.permute.xlu0 0
        %1025 = vperm.xlu0 %1024, %v547
        %v1026 = vpop.permute.xlu0 %1025
        %v1027 = vlaneseq
        %v1028 = vshrl.u32 %v1027, 7
        %v1029 = vsub.s32 0, %v1028
        %v1030 = vrot.slane %v1026, %v1029
        %1031 = vset.pattern.permute.xlu0 0
        %1032 = vperm.xlu0 %1031, %v571
        %v1033 = vpop.permute.xlu0 %1032
        %v1034 = vlaneseq
        %v1035 = vshrl.u32 %v1034, 7
        %v1036 = vsub.s32 0, %v1035
        %v1037 = vrot.slane %v1033, %v1036
        %1038 = vset.pattern.permute.xlu0 0
        %1039 = vperm.xlu0 %1038, %v585
        %v1040 = vpop.permute.xlu0 %1039
        %v1041 = vlaneseq
        %v1042 = vshrl.u32 %v1041, 7
        %v1043 = vsub.s32 0, %v1042
        %v1044 = vrot.slane %v1040, %v1043
        %1045 = vset.pattern.permute.xlu0 0
        %1046 = vperm.xlu0 %1045, %v593
        %v1047 = vpop.permute.xlu0 %1046
        %v1048 = vlaneseq
        %v1049 = vshrl.u32 %v1048, 7
        %v1050 = vsub.s32 0, %v1049
        %v1051 = vrot.slane %v1047, %v1050
        %1052 = vset.pattern.permute.xlu0 0
        %1053 = vperm.xlu0 %1052, %v595
        %v1054 = vpop.permute.xlu0 %1053
        %v1055 = vlaneseq
        %v1056 = vshrl.u32 %v1055, 7
        %v1057 = vsub.s32 0, %v1056
        %v1058 = vrot.slane %v1054, %v1057
        %1059 = vset.pattern.permute.xlu0 0
        %1060 = vperm.xlu0 %1059, %v578
        %v1061 = vpop.permute.xlu0 %1060
        %v1062 = vlaneseq
        %v1063 = vshrl.u32 %v1062, 7
        %v1064 = vsub.s32 0, %v1063
        %v1065 = vrot.slane %v1061, %v1064
        %1066 = vset.pattern.permute.xlu0 0
        %1067 = vperm.xlu0 %1066, %v592
        %v1068 = vpop.permute.xlu0 %1067
        %v1069 = vlaneseq
        %v1070 = vshrl.u32 %v1069, 7
        %v1071 = vsub.s32 0, %v1070
        %v1072 = vrot.slane %v1068, %v1071
        %1073 = vset.pattern.permute.xlu0 0
        %1074 = vperm.xlu0 %1073, %v594
        %v1075 = vpop.permute.xlu0 %1074
        %v1076 = vlaneseq
        %v1077 = vshrl.u32 %v1076, 7
        %v1078 = vsub.s32 0, %v1077
        %v1079 = vrot.slane %v1075, %v1078
        %1080 = vset.pattern.permute.xlu0 0
        %1081 = vperm.xlu0 %1080, %v596
        %v1082 = vpop.permute.xlu0 %1081
        %v1083 = vlaneseq
        %v1084 = vshrl.u32 %v1083, 7
        %v1085 = vsub.s32 0, %v1084
        %v1086 = vrot.slane %v1082, %v1085
        %1087 = vset.pattern.permute.xlu0 0
        %1088 = vperm.xlu0 %1087, %v620
        %v1089 = vpop.permute.xlu0 %1088
        %v1090 = vlaneseq
        %v1091 = vshrl.u32 %v1090, 7
        %v1092 = vsub.s32 0, %v1091
        %v1093 = vrot.slane %v1089, %v1092
        %1094 = vset.pattern.permute.xlu0 0
        %1095 = vperm.xlu0 %1094, %v634
        %v1096 = vpop.permute.xlu0 %1095
        %v1097 = vlaneseq
        %v1098 = vshrl.u32 %v1097, 7
        %v1099 = vsub.s32 0, %v1098
        %v1100 = vrot.slane %v1096, %v1099
        %1101 = vset.pattern.permute.xlu0 0
        %1102 = vperm.xlu0 %1101, %v642
        %v1103 = vpop.permute.xlu0 %1102
        %v1104 = vlaneseq
        %v1105 = vshrl.u32 %v1104, 7
        %v1106 = vsub.s32 0, %v1105
        %v1107 = vrot.slane %v1103, %v1106
        %1108 = vset.pattern.permute.xlu0 0
        %1109 = vperm.xlu0 %1108, %v644
        %v1110 = vpop.permute.xlu0 %1109
        %v1111 = vlaneseq
        %v1112 = vshrl.u32 %v1111, 7
        %v1113 = vsub.s32 0, %v1112
        %v1114 = vrot.slane %v1110, %v1113
        %1115 = vset.pattern.permute.xlu0 0
        %1116 = vperm.xlu0 %1115, %v627
        %v1117 = vpop.permute.xlu0 %1116
        %v1118 = vlaneseq
        %v1119 = vshrl.u32 %v1118, 7
        %v1120 = vsub.s32 0, %v1119
        %v1121 = vrot.slane %v1117, %v1120
        %1122 = vset.pattern.permute.xlu0 0
        %1123 = vperm.xlu0 %1122, %v641
        %v1124 = vpop.permute.xlu0 %1123
        %v1125 = vlaneseq
        %v1126 = vshrl.u32 %v1125, 7
        %v1127 = vsub.s32 0, %v1126
        %v1128 = vrot.slane %v1124, %v1127
        %1129 = vset.pattern.permute.xlu0 0
        %1130 = vperm.xlu0 %1129, %v643
        %v1131 = vpop.permute.xlu0 %1130
        %v1132 = vlaneseq
        %v1133 = vshrl.u32 %v1132, 7
        %v1134 = vsub.s32 0, %v1133
        %v1135 = vrot.slane %v1131, %v1134
        %1136 = vset.pattern.permute.xlu0 0
        %1137 = vperm.xlu0 %1136, %v645
        %v1138 = vpop.permute.xlu0 %1137
        %v1139 = vlaneseq
        %v1140 = vshrl.u32 %v1139, 7
        %v1141 = vsub.s32 0, %v1140
        %v1142 = vrot.slane %v1138, %v1141
        %1143 = vset.pattern.permute.xlu0 0
        %1144 = vperm.xlu0 %1143, %v669
        %v1145 = vpop.permute.xlu0 %1144
        %v1146 = vlaneseq
        %v1147 = vshrl.u32 %v1146, 7
        %v1148 = vsub.s32 0, %v1147
        %v1149 = vrot.slane %v1145, %v1148
        %1150 = vset.pattern.permute.xlu0 0
        %1151 = vperm.xlu0 %1150, %v683
        %v1152 = vpop.permute.xlu0 %1151
        %v1153 = vlaneseq
        %v1154 = vshrl.u32 %v1153, 7
        %v1155 = vsub.s32 0, %v1154
        %v1156 = vrot.slane %v1152, %v1155
        %1157 = vset.pattern.permute.xlu0 0
        %1158 = vperm.xlu0 %1157, %v691
        %v1159 = vpop.permute.xlu0 %1158
        %v1160 = vlaneseq
        %v1161 = vshrl.u32 %v1160, 7
        %v1162 = vsub.s32 0, %v1161
        %v1163 = vrot.slane %v1159, %v1162
        %1164 = vset.pattern.permute.xlu0 0
        %1165 = vperm.xlu0 %1164, %v693
        %v1166 = vpop.permute.xlu0 %1165
        %v1167 = vlaneseq
        %v1168 = vshrl.u32 %v1167, 7
        %v1169 = vsub.s32 0, %v1168
        %v1170 = vrot.slane %v1166, %v1169
        %1171 = vset.pattern.permute.xlu0 0
        %1172 = vperm.xlu0 %1171, %v676
        %v1173 = vpop.permute.xlu0 %1172
        %v1174 = vlaneseq
        %v1175 = vshrl.u32 %v1174, 7
        %v1176 = vsub.s32 0, %v1175
        %v1177 = vrot.slane %v1173, %v1176
        %1178 = vset.pattern.permute.xlu0 0
        %1179 = vperm.xlu0 %1178, %v690
        %v1180 = vpop.permute.xlu0 %1179
        %v1181 = vlaneseq
        %v1182 = vshrl.u32 %v1181, 7
        %v1183 = vsub.s32 0, %v1182
        %v1184 = vrot.slane %v1180, %v1183
        %1185 = vset.pattern.permute.xlu0 0
        %1186 = vperm.xlu0 %1185, %v692
        %v1187 = vpop.permute.xlu0 %1186
        %v1188 = vlaneseq
        %v1189 = vshrl.u32 %v1188, 7
        %v1190 = vsub.s32 0, %v1189
        %v1191 = vrot.slane %v1187, %v1190
        %1192 = vset.pattern.permute.xlu0 0
        %1193 = vperm.xlu0 %1192, %v694
        %v1194 = vpop.permute.xlu0 %1193
        %v1195 = vlaneseq
        %v1196 = vshrl.u32 %v1195, 7
        %v1197 = vsub.s32 0, %v1196
        %v1198 = vrot.slane %v1194, %v1197
        %vm1199 = vcmp.eq.s32.totalorder %v253, %v701
        %vm1200 = vcmp.eq.s32.totalorder %v253, %v708
        %vm1201 = vcmp.eq.s32.totalorder %v253, %v715
        %vm1202 = vcmp.eq.s32.totalorder %v253, %v722
        %vm1203 = vcmp.eq.s32.totalorder %v253, %v729
        %vm1204 = vcmp.eq.s32.totalorder %v253, %v736
        %vm1205 = vcmp.eq.s32.totalorder %v253, %v743
        %vm1206 = vcmp.eq.s32.totalorder %v253, %v750
        %vm1207 = vcmp.eq.s32.totalorder %v253, %v757
        %vm1208 = vcmp.eq.s32.totalorder %v253, %v764
        %vm1209 = vcmp.eq.s32.totalorder %v253, %v771
        %vm1210 = vcmp.eq.s32.totalorder %v253, %v778
        %vm1211 = vcmp.eq.s32.totalorder %v253, %v785
        %vm1212 = vcmp.eq.s32.totalorder %v253, %v792
        %vm1213 = vcmp.eq.s32.totalorder %v253, %v799
        %vm1214 = vcmp.eq.s32.totalorder %v253, %v806
        %vm1215 = vcmp.eq.s32.totalorder %v253, %v813
        %vm1216 = vcmp.eq.s32.totalorder %v253, %v820
        %vm1217 = vcmp.eq.s32.totalorder %v253, %v827
        %vm1218 = vcmp.eq.s32.totalorder %v253, %v834
        %vm1219 = vcmp.eq.s32.totalorder %v253, %v841
        %vm1220 = vcmp.eq.s32.totalorder %v253, %v848
        %vm1221 = vcmp.eq.s32.totalorder %v253, %v855
        %vm1222 = vcmp.eq.s32.totalorder %v253, %v862
        %vm1223 = vcmp.eq.s32.totalorder %v253, %v869
        %vm1224 = vcmp.eq.s32.totalorder %v253, %v876
        %vm1225 = vcmp.eq.s32.totalorder %v253, %v883
        %vm1226 = vcmp.eq.s32.totalorder %v253, %v890
        %vm1227 = vcmp.eq.s32.totalorder %v253, %v897
        %vm1228 = vcmp.eq.s32.totalorder %v253, %v904
        %vm1229 = vcmp.eq.s32.totalorder %v253, %v911
        %vm1230 = vcmp.eq.s32.totalorder %v253, %v918
        %vm1231 = vcmp.eq.s32.totalorder %v253, %v925
        %vm1232 = vcmp.eq.s32.totalorder %v253, %v932
        %vm1233 = vcmp.eq.s32.totalorder %v253, %v939
        %vm1234 = vcmp.eq.s32.totalorder %v253, %v946
        %vm1235 = vcmp.eq.s32.totalorder %v253, %v953
        %vm1236 = vcmp.eq.s32.totalorder %v253, %v960
        %vm1237 = vcmp.eq.s32.totalorder %v253, %v967
        %vm1238 = vcmp.eq.s32.totalorder %v253, %v974
        %vm1239 = vcmp.eq.s32.totalorder %v253, %v981
        %vm1240 = vcmp.eq.s32.totalorder %v253, %v988
        %vm1241 = vcmp.eq.s32.totalorder %v253, %v995
        %vm1242 = vcmp.eq.s32.totalorder %v253, %v1002
        %vm1243 = vcmp.eq.s32.totalorder %v253, %v1009
        %vm1244 = vcmp.eq.s32.totalorder %v253, %v1016
        %vm1245 = vcmp.eq.s32.totalorder %v253, %v1023
        %vm1246 = vcmp.eq.s32.totalorder %v253, %v1030
        %vm1247 = vcmp.eq.s32.totalorder %v253, %v1037
        %vm1248 = vcmp.eq.s32.totalorder %v253, %v1044
        %vm1249 = vcmp.eq.s32.totalorder %v253, %v1051
        %vm1250 = vcmp.eq.s32.totalorder %v253, %v1058
        %vm1251 = vcmp.eq.s32.totalorder %v253, %v1065
        %vm1252 = vcmp.eq.s32.totalorder %v253, %v1072
        %vm1253 = vcmp.eq.s32.totalorder %v253, %v1079
        %vm1254 = vcmp.eq.s32.totalorder %v253, %v1086
        %vm1255 = vcmp.eq.s32.totalorder %v253, %v1093
        %vm1256 = vcmp.eq.s32.totalorder %v253, %v1100
        %vm1257 = vcmp.eq.s32.totalorder %v253, %v1107
        %vm1258 = vcmp.eq.s32.totalorder %v253, %v1114
        %vm1259 = vcmp.eq.s32.totalorder %v253, %v1121
        %vm1260 = vcmp.eq.s32.totalorder %v253, %v1128
        %vm1261 = vcmp.eq.s32.totalorder %v253, %v1135
        %vm1262 = vcmp.eq.s32.totalorder %v253, %v1142
        %vm1263 = vcmp.eq.s32.totalorder %v253, %v1149
        %vm1264 = vcmp.eq.s32.totalorder %v253, %v1156
        %vm1265 = vcmp.eq.s32.totalorder %v253, %v1163
        %vm1266 = vcmp.eq.s32.totalorder %v253, %v1170
        %vm1267 = vcmp.eq.s32.totalorder %v253, %v1177
        %vm1268 = vcmp.eq.s32.totalorder %v253, %v1184
        %vm1269 = vcmp.eq.s32.totalorder %v253, %v1191
        %vm1270 = vcmp.eq.s32.totalorder %v253, %v1198
        %vm1271 = vcmask 1046528
        %v1272 = vrot.slane %v240, 1
        %v1273 = vrot.slane %v241, 1
        %v1274 = vsel %vm1271, %v1272, %v1273
        %v1275 = vrot.slane %v242, 1
        %v1276 = vsel %vm1271, %v1273, %v1275
        %v1277 = vrot.slane %v243, 1
        %v1278 = vsel %vm1271, %v1275, %v1277
        %v1279 = vcombine.high %v1274, %v1274
        %v1281 = vunpack.c.l.s4 1966171168
        %v1282 = vunpack.c.0.s8 %v1281
        %v1283 = vlaneseq
        %v1284 = vshrl.u32 %v1283, 7
        %v1285 = vsub.s32 %v1282, %v1284
        %v1286 = vrot.slane %v1274, %v1285
        %v1288 = vunpack.c.l.s4 1966171168
        %v1289 = vunpack.c.0.s8 %v1288
        %v1290 = vlaneseq
        %v1291 = vshrl.u32 %v1290, 7
        %v1292 = vsub.s32 %v1289, %v1291
        %v1293 = vrot.slane %v1279, %v1292
        %v1294 = vcombine.high %v1286, %v1286
        %v1295 = vcombine.high %v1293, %v1293
        %v1297 = vunpack.c.l.s4 1966171168
        %v1298 = vunpack.c.0.s8 %v1297
        %v1299 = vlaneseq
        %v1300 = vshrl.u32 %v1299, 7
        %v1301 = vsub.s32 %v1298, %v1300
        %v1302 = vrot.slane %v1286, %v1301
        %v1304 = vunpack.c.l.s4 1966171168
        %v1305 = vunpack.c.0.s8 %v1304
        %v1306 = vlaneseq
        %v1307 = vshrl.u32 %v1306, 7
        %v1308 = vsub.s32 %v1305, %v1307
        %v1309 = vrot.slane %v1293, %v1308
        %v1311 = vunpack.c.l.s4 1966171168
        %v1312 = vunpack.c.0.s8 %v1311
        %v1313 = vlaneseq
        %v1314 = vshrl.u32 %v1313, 7
        %v1315 = vsub.s32 %v1312, %v1314
        %v1316 = vrot.slane %v1294, %v1315
        %v1318 = vunpack.c.l.s4 1966171168
        %v1319 = vunpack.c.0.s8 %v1318
        %v1320 = vlaneseq
        %v1321 = vshrl.u32 %v1320, 7
        %v1322 = vsub.s32 %v1319, %v1321
        %v1323 = vrot.slane %v1295, %v1322
        %v1324 = vcombine.high %v1302, %v1302
        %v1325 = vcombine.high %v1309, %v1309
        %v1326 = vcombine.high %v1316, %v1316
        %v1327 = vcombine.high %v1323, %v1323
        %v1328 = vcombine.high %v1276, %v1276
        %v1330 = vunpack.c.l.s4 1966171168
        %v1331 = vunpack.c.0.s8 %v1330
        %v1332 = vlaneseq
        %v1333 = vshrl.u32 %v1332, 7
        %v1334 = vsub.s32 %v1331, %v1333
        %v1335 = vrot.slane %v1276, %v1334
        %v1337 = vunpack.c.l.s4 1966171168
        %v1338 = vunpack.c.0.s8 %v1337
        %v1339 = vlaneseq
        %v1340 = vshrl.u32 %v1339, 7
        %v1341 = vsub.s32 %v1338, %v1340
        %v1342 = vrot.slane %v1328, %v1341
        %v1343 = vcombine.high %v1335, %v1335
        %v1344 = vcombine.high %v1342, %v1342
        %v1346 = vunpack.c.l.s4 1966171168
        %v1347 = vunpack.c.0.s8 %v1346
        %v1348 = vlaneseq
        %v1349 = vshrl.u32 %v1348, 7
        %v1350 = vsub.s32 %v1347, %v1349
        %v1351 = vrot.slane %v1335, %v1350
        %v1353 = vunpack.c.l.s4 1966171168
        %v1354 = vunpack.c.0.s8 %v1353
        %v1355 = vlaneseq
        %v1356 = vshrl.u32 %v1355, 7
        %v1357 = vsub.s32 %v1354, %v1356
        %v1358 = vrot.slane %v1342, %v1357
        %v1360 = vunpack.c.l.s4 1966171168
        %v1361 = vunpack.c.0.s8 %v1360
        %v1362 = vlaneseq
        %v1363 = vshrl.u32 %v1362, 7
        %v1364 = vsub.s32 %v1361, %v1363
        %v1365 = vrot.slane %v1343, %v1364
        %v1367 = vunpack.c.l.s4 1966171168
        %v1368 = vunpack.c.0.s8 %v1367
        %v1369 = vlaneseq
        %v1370 = vshrl.u32 %v1369, 7
        %v1371 = vsub.s32 %v1368, %v1370
        %v1372 = vrot.slane %v1344, %v1371
        %v1373 = vcombine.high %v1351, %v1351
        %v1374 = vcombine.high %v1358, %v1358
        %v1375 = vcombine.high %v1365, %v1365
        %v1376 = vcombine.high %v1372, %v1372
        %v1377 = vcombine.high %v1278, %v1278
        %v1379 = vunpack.c.l.s4 1966171168
        %v1380 = vunpack.c.0.s8 %v1379
        %v1381 = vlaneseq
        %v1382 = vshrl.u32 %v1381, 7
        %v1383 = vsub.s32 %v1380, %v1382
        %v1384 = vrot.slane %v1278, %v1383
        %v1386 = vunpack.c.l.s4 1966171168
        %v1387 = vunpack.c.0.s8 %v1386
        %v1388 = vlaneseq
        %v1389 = vshrl.u32 %v1388, 7
        %v1390 = vsub.s32 %v1387, %v1389
        %v1391 = vrot.slane %v1377, %v1390
        %v1392 = vcombine.high %v1384, %v1384
        %v1393 = vcombine.high %v1391, %v1391
        %v1395 = vunpack.c.l.s4 1966171168
        %v1396 = vunpack.c.0.s8 %v1395
        %v1397 = vlaneseq
        %v1398 = vshrl.u32 %v1397, 7
        %v1399 = vsub.s32 %v1396, %v1398
        %v1400 = vrot.slane %v1384, %v1399
        %v1402 = vunpack.c.l.s4 1966171168
        %v1403 = vunpack.c.0.s8 %v1402
        %v1404 = vlaneseq
        %v1405 = vshrl.u32 %v1404, 7
        %v1406 = vsub.s32 %v1403, %v1405
        %v1407 = vrot.slane %v1391, %v1406
        %v1409 = vunpack.c.l.s4 1966171168
        %v1410 = vunpack.c.0.s8 %v1409
        %v1411 = vlaneseq
        %v1412 = vshrl.u32 %v1411, 7
        %v1413 = vsub.s32 %v1410, %v1412
        %v1414 = vrot.slane %v1392, %v1413
        %v1416 = vunpack.c.l.s4 1966171168
        %v1417 = vunpack.c.0.s8 %v1416
        %v1418 = vlaneseq
        %v1419 = vshrl.u32 %v1418, 7
        %v1420 = vsub.s32 %v1417, %v1419
        %v1421 = vrot.slane %v1393, %v1420
        %v1422 = vcombine.high %v1400, %v1400
        %v1423 = vcombine.high %v1407, %v1407
        %v1424 = vcombine.high %v1414, %v1414
        %v1425 = vcombine.high %v1421, %v1421
        %v1426 = vadd.s32 %v424, 6
        %v1427 = vadd.s32 %v438, 6
        %v1428 = vadd.s32 %v446, 6
        %v1429 = vadd.s32 %v448, 6
        %v1430 = vadd.s32 %v431, 6
        %v1431 = vadd.s32 %v445, 6
        %v1432 = vadd.s32 %v447, 6
        %v1433 = vadd.s32 %v449, 6
        %v1434 = vadd.s32 %v473, 6
        %v1435 = vadd.s32 %v487, 6
        %v1436 = vadd.s32 %v495, 6
        %v1437 = vadd.s32 %v497, 6
        %v1438 = vadd.s32 %v480, 6
        %v1439 = vadd.s32 %v494, 6
        %v1440 = vadd.s32 %v496, 6
        %v1441 = vadd.s32 %v498, 6
        %v1442 = vadd.s32 %v522, 6
        %v1443 = vadd.s32 %v536, 6
        %v1444 = vadd.s32 %v544, 6
        %v1445 = vadd.s32 %v546, 6
        %v1446 = vadd.s32 %v529, 6
        %v1447 = vadd.s32 %v543, 6
        %v1448 = vadd.s32 %v545, 6
        %v1449 = vadd.s32 %v547, 6
        %v1450 = vadd.s32 %v571, 6
        %v1451 = vadd.s32 %v585, 6
        %v1452 = vadd.s32 %v593, 6
        %v1453 = vadd.s32 %v595, 6
        %v1454 = vadd.s32 %v578, 6
        %v1455 = vadd.s32 %v592, 6
        %v1456 = vadd.s32 %v594, 6
        %v1457 = vadd.s32 %v596, 6
        %v1458 = vadd.s32 %v620, 6
        %v1459 = vadd.s32 %v634, 6
        %v1460 = vadd.s32 %v642, 6
        %v1461 = vadd.s32 %v644, 6
        %v1462 = vadd.s32 %v627, 6
        %v1463 = vadd.s32 %v641, 6
        %v1464 = vadd.s32 %v643, 6
        %v1465 = vadd.s32 %v645, 6
        %v1466 = vadd.s32 %v669, 6
        %v1467 = vadd.s32 %v683, 6
        %v1468 = vadd.s32 %v691, 6
        %v1469 = vadd.s32 %v693, 6
        %v1470 = vadd.s32 %v676, 6
        %v1471 = vadd.s32 %v690, 6
        %v1472 = vadd.s32 %v692, 6
        %v1473 = vadd.s32 %v694, 6
        %v1474 = vadd.s32 %v1302, 6
        %v1475 = vadd.s32 %v1316, 6
        %v1476 = vadd.s32 %v1324, 6
        %v1477 = vadd.s32 %v1326, 6
        %v1478 = vadd.s32 %v1309, 6
        %v1479 = vadd.s32 %v1323, 6
        %v1480 = vadd.s32 %v1325, 6
        %v1481 = vadd.s32 %v1327, 6
        %v1482 = vadd.s32 %v1351, 6
        %v1483 = vadd.s32 %v1365, 6
        %v1484 = vadd.s32 %v1373, 6
        %v1485 = vadd.s32 %v1375, 6
        %v1486 = vadd.s32 %v1358, 6
        %v1487 = vadd.s32 %v1372, 6
        %v1488 = vadd.s32 %v1374, 6
        %v1489 = vadd.s32 %v1376, 6
        %v1490 = vadd.s32 %v1400, 6
        %v1491 = vadd.s32 %v1414, 6
        %v1492 = vadd.s32 %v1422, 6
        %v1493 = vadd.s32 %v1424, 6
        %v1494 = vadd.s32 %v1407, 6
        %v1495 = vadd.s32 %v1421, 6
        %v1496 = vadd.s32 %v1423, 6
        %v1497 = vadd.s32 %v1425, 6
        %1498 = vset.pattern.permute.xlu0 0
        %1499 = vperm.xlu0 %1498, %v1426
        %v1500 = vpop.permute.xlu0 %1499
        %v1501 = vlaneseq
        %v1502 = vshrl.u32 %v1501, 7
        %v1503 = vsub.s32 0, %v1502
        %v1504 = vrot.slane %v1500, %v1503
        %1505 = vset.pattern.permute.xlu0 0
        %1506 = vperm.xlu0 %1505, %v1427
        %v1507 = vpop.permute.xlu0 %1506
        %v1508 = vlaneseq
        %v1509 = vshrl.u32 %v1508, 7
        %v1510 = vsub.s32 0, %v1509
        %v1511 = vrot.slane %v1507, %v1510
        %1512 = vset.pattern.permute.xlu0 0
        %1513 = vperm.xlu0 %1512, %v1428
        %v1514 = vpop.permute.xlu0 %1513
        %v1515 = vlaneseq
        %v1516 = vshrl.u32 %v1515, 7
        %v1517 = vsub.s32 0, %v1516
        %v1518 = vrot.slane %v1514, %v1517
        %1519 = vset.pattern.permute.xlu0 0
        %1520 = vperm.xlu0 %1519, %v1429
        %v1521 = vpop.permute.xlu0 %1520
        %v1522 = vlaneseq
        %v1523 = vshrl.u32 %v1522, 7
        %v1524 = vsub.s32 0, %v1523
        %v1525 = vrot.slane %v1521, %v1524
        %1526 = vset.pattern.permute.xlu0 0
        %1527 = vperm.xlu0 %1526, %v1430
        %v1528 = vpop.permute.xlu0 %1527
        %v1529 = vlaneseq
        %v1530 = vshrl.u32 %v1529, 7
        %v1531 = vsub.s32 0, %v1530
        %v1532 = vrot.slane %v1528, %v1531
        %1533 = vset.pattern.permute.xlu0 0
        %1534 = vperm.xlu0 %1533, %v1431
        %v1535 = vpop.permute.xlu0 %1534
        %v1536 = vlaneseq
        %v1537 = vshrl.u32 %v1536, 7
        %v1538 = vsub.s32 0, %v1537
        %v1539 = vrot.slane %v1535, %v1538
        %1540 = vset.pattern.permute.xlu0 0
        %1541 = vperm.xlu0 %1540, %v1432
        %v1542 = vpop.permute.xlu0 %1541
        %v1543 = vlaneseq
        %v1544 = vshrl.u32 %v1543, 7
        %v1545 = vsub.s32 0, %v1544
        %v1546 = vrot.slane %v1542, %v1545
        %1547 = vset.pattern.permute.xlu0 0
        %1548 = vperm.xlu0 %1547, %v1433
        %v1549 = vpop.permute.xlu0 %1548
        %v1550 = vlaneseq
        %v1551 = vshrl.u32 %v1550, 7
        %v1552 = vsub.s32 0, %v1551
        %v1553 = vrot.slane %v1549, %v1552
        %1554 = vset.pattern.permute.xlu0 0
        %1555 = vperm.xlu0 %1554, %v1434
        %v1556 = vpop.permute.xlu0 %1555
        %v1557 = vlaneseq
        %v1558 = vshrl.u32 %v1557, 7
        %v1559 = vsub.s32 0, %v1558
        %v1560 = vrot.slane %v1556, %v1559
        %1561 = vset.pattern.permute.xlu0 0
        %1562 = vperm.xlu0 %1561, %v1435
        %v1563 = vpop.permute.xlu0 %1562
        %v1564 = vlaneseq
        %v1565 = vshrl.u32 %v1564, 7
        %v1566 = vsub.s32 0, %v1565
        %v1567 = vrot.slane %v1563, %v1566
        %1568 = vset.pattern.permute.xlu0 0
        %1569 = vperm.xlu0 %1568, %v1436
        %v1570 = vpop.permute.xlu0 %1569
        %v1571 = vlaneseq
        %v1572 = vshrl.u32 %v1571, 7
        %v1573 = vsub.s32 0, %v1572
        %v1574 = vrot.slane %v1570, %v1573
        %1575 = vset.pattern.permute.xlu0 0
        %1576 = vperm.xlu0 %1575, %v1437
        %v1577 = vpop.permute.xlu0 %1576
        %v1578 = vlaneseq
        %v1579 = vshrl.u32 %v1578, 7
        %v1580 = vsub.s32 0, %v1579
        %v1581 = vrot.slane %v1577, %v1580
        %1582 = vset.pattern.permute.xlu0 0
        %1583 = vperm.xlu0 %1582, %v1438
        %v1584 = vpop.permute.xlu0 %1583
        %v1585 = vlaneseq
        %v1586 = vshrl.u32 %v1585, 7
        %v1587 = vsub.s32 0, %v1586
        %v1588 = vrot.slane %v1584, %v1587
        %1589 = vset.pattern.permute.xlu0 0
        %1590 = vperm.xlu0 %1589, %v1439
        %v1591 = vpop.permute.xlu0 %1590
        %v1592 = vlaneseq
        %v1593 = vshrl.u32 %v1592, 7
        %v1594 = vsub.s32 0, %v1593
        %v1595 = vrot.slane %v1591, %v1594
        %1596 = vset.pattern.permute.xlu0 0
        %1597 = vperm.xlu0 %1596, %v1440
        %v1598 = vpop.permute.xlu0 %1597
        %v1599 = vlaneseq
        %v1600 = vshrl.u32 %v1599, 7
        %v1601 = vsub.s32 0, %v1600
        %v1602 = vrot.slane %v1598, %v1601
        %1603 = vset.pattern.permute.xlu0 0
        %1604 = vperm.xlu0 %1603, %v1441
        %v1605 = vpop.permute.xlu0 %1604
        %v1606 = vlaneseq
        %v1607 = vshrl.u32 %v1606, 7
        %v1608 = vsub.s32 0, %v1607
        %v1609 = vrot.slane %v1605, %v1608
        %1610 = vset.pattern.permute.xlu0 0
        %1611 = vperm.xlu0 %1610, %v1442
        %v1612 = vpop.permute.xlu0 %1611
        %v1613 = vlaneseq
        %v1614 = vshrl.u32 %v1613, 7
        %v1615 = vsub.s32 0, %v1614
        %v1616 = vrot.slane %v1612, %v1615
        %1617 = vset.pattern.permute.xlu0 0
        %1618 = vperm.xlu0 %1617, %v1443
        %v1619 = vpop.permute.xlu0 %1618
        %v1620 = vlaneseq
        %v1621 = vshrl.u32 %v1620, 7
        %v1622 = vsub.s32 0, %v1621
        %v1623 = vrot.slane %v1619, %v1622
        %1624 = vset.pattern.permute.xlu0 0
        %1625 = vperm.xlu0 %1624, %v1444
        %v1626 = vpop.permute.xlu0 %1625
        %v1627 = vlaneseq
        %v1628 = vshrl.u32 %v1627, 7
        %v1629 = vsub.s32 0, %v1628
        %v1630 = vrot.slane %v1626, %v1629
        %1631 = vset.pattern.permute.xlu0 0
        %1632 = vperm.xlu0 %1631, %v1445
        %v1633 = vpop.permute.xlu0 %1632
        %v1634 = vlaneseq
        %v1635 = vshrl.u32 %v1634, 7
        %v1636 = vsub.s32 0, %v1635
        %v1637 = vrot.slane %v1633, %v1636
        %1638 = vset.pattern.permute.xlu0 0
        %1639 = vperm.xlu0 %1638, %v1446
        %v1640 = vpop.permute.xlu0 %1639
        %v1641 = vlaneseq
        %v1642 = vshrl.u32 %v1641, 7
        %v1643 = vsub.s32 0, %v1642
        %v1644 = vrot.slane %v1640, %v1643
        %1645 = vset.pattern.permute.xlu0 0
        %1646 = vperm.xlu0 %1645, %v1447
        %v1647 = vpop.permute.xlu0 %1646
        %v1648 = vlaneseq
        %v1649 = vshrl.u32 %v1648, 7
        %v1650 = vsub.s32 0, %v1649
        %v1651 = vrot.slane %v1647, %v1650
        %1652 = vset.pattern.permute.xlu0 0
        %1653 = vperm.xlu0 %1652, %v1448
        %v1654 = vpop.permute.xlu0 %1653
        %v1655 = vlaneseq
        %v1656 = vshrl.u32 %v1655, 7
        %v1657 = vsub.s32 0, %v1656
        %v1658 = vrot.slane %v1654, %v1657
        %1659 = vset.pattern.permute.xlu0 0
        %1660 = vperm.xlu0 %1659, %v1449
        %v1661 = vpop.permute.xlu0 %1660
        %v1662 = vlaneseq
        %v1663 = vshrl.u32 %v1662, 7
        %v1664 = vsub.s32 0, %v1663
        %v1665 = vrot.slane %v1661, %v1664
        %1666 = vset.pattern.permute.xlu0 0
        %1667 = vperm.xlu0 %1666, %v1450
        %v1668 = vpop.permute.xlu0 %1667
        %v1669 = vlaneseq
        %v1670 = vshrl.u32 %v1669, 7
        %v1671 = vsub.s32 0, %v1670
        %v1672 = vrot.slane %v1668, %v1671
        %1673 = vset.pattern.permute.xlu0 0
        %1674 = vperm.xlu0 %1673, %v1451
        %v1675 = vpop.permute.xlu0 %1674
        %v1676 = vlaneseq
        %v1677 = vshrl.u32 %v1676, 7
        %v1678 = vsub.s32 0, %v1677
        %v1679 = vrot.slane %v1675, %v1678
        %1680 = vset.pattern.permute.xlu0 0
        %1681 = vperm.xlu0 %1680, %v1452
        %v1682 = vpop.permute.xlu0 %1681
        %v1683 = vlaneseq
        %v1684 = vshrl.u32 %v1683, 7
        %v1685 = vsub.s32 0, %v1684
        %v1686 = vrot.slane %v1682, %v1685
        %1687 = vset.pattern.permute.xlu0 0
        %1688 = vperm.xlu0 %1687, %v1453
        %v1689 = vpop.permute.xlu0 %1688
        %v1690 = vlaneseq
        %v1691 = vshrl.u32 %v1690, 7
        %v1692 = vsub.s32 0, %v1691
        %v1693 = vrot.slane %v1689, %v1692
        %1694 = vset.pattern.permute.xlu0 0
        %1695 = vperm.xlu0 %1694, %v1454
        %v1696 = vpop.permute.xlu0 %1695
        %v1697 = vlaneseq
        %v1698 = vshrl.u32 %v1697, 7
        %v1699 = vsub.s32 0, %v1698
        %v1700 = vrot.slane %v1696, %v1699
        %1701 = vset.pattern.permute.xlu0 0
        %1702 = vperm.xlu0 %1701, %v1455
        %v1703 = vpop.permute.xlu0 %1702
        %v1704 = vlaneseq
        %v1705 = vshrl.u32 %v1704, 7
        %v1706 = vsub.s32 0, %v1705
        %v1707 = vrot.slane %v1703, %v1706
        %1708 = vset.pattern.permute.xlu0 0
        %1709 = vperm.xlu0 %1708, %v1456
        %v1710 = vpop.permute.xlu0 %1709
        %v1711 = vlaneseq
        %v1712 = vshrl.u32 %v1711, 7
        %v1713 = vsub.s32 0, %v1712
        %v1714 = vrot.slane %v1710, %v1713
        %1715 = vset.pattern.permute.xlu0 0
        %1716 = vperm.xlu0 %1715, %v1457
        %v1717 = vpop.permute.xlu0 %1716
        %v1718 = vlaneseq
        %v1719 = vshrl.u32 %v1718, 7
        %v1720 = vsub.s32 0, %v1719
        %v1721 = vrot.slane %v1717, %v1720
        %1722 = vset.pattern.permute.xlu0 0
        %1723 = vperm.xlu0 %1722, %v1458
        %v1724 = vpop.permute.xlu0 %1723
        %v1725 = vlaneseq
        %v1726 = vshrl.u32 %v1725, 7
        %v1727 = vsub.s32 0, %v1726
        %v1728 = vrot.slane %v1724, %v1727
        %1729 = vset.pattern.permute.xlu0 0
        %1730 = vperm.xlu0 %1729, %v1459
        %v1731 = vpop.permute.xlu0 %1730
        %v1732 = vlaneseq
        %v1733 = vshrl.u32 %v1732, 7
        %v1734 = vsub.s32 0, %v1733
        %v1735 = vrot.slane %v1731, %v1734
        %1736 = vset.pattern.permute.xlu0 0
        %1737 = vperm.xlu0 %1736, %v1460
        %v1738 = vpop.permute.xlu0 %1737
        %v1739 = vlaneseq
        %v1740 = vshrl.u32 %v1739, 7
        %v1741 = vsub.s32 0, %v1740
        %v1742 = vrot.slane %v1738, %v1741
        %1743 = vset.pattern.permute.xlu0 0
        %1744 = vperm.xlu0 %1743, %v1461
        %v1745 = vpop.permute.xlu0 %1744
        %v1746 = vlaneseq
        %v1747 = vshrl.u32 %v1746, 7
        %v1748 = vsub.s32 0, %v1747
        %v1749 = vrot.slane %v1745, %v1748
        %1750 = vset.pattern.permute.xlu0 0
        %1751 = vperm.xlu0 %1750, %v1462
        %v1752 = vpop.permute.xlu0 %1751
        %v1753 = vlaneseq
        %v1754 = vshrl.u32 %v1753, 7
        %v1755 = vsub.s32 0, %v1754
        %v1756 = vrot.slane %v1752, %v1755
        %1757 = vset.pattern.permute.xlu0 0
        %1758 = vperm.xlu0 %1757, %v1463
        %v1759 = vpop.permute.xlu0 %1758
        %v1760 = vlaneseq
        %v1761 = vshrl.u32 %v1760, 7
        %v1762 = vsub.s32 0, %v1761
        %v1763 = vrot.slane %v1759, %v1762
        %1764 = vset.pattern.permute.xlu0 0
        %1765 = vperm.xlu0 %1764, %v1464
        %v1766 = vpop.permute.xlu0 %1765
        %v1767 = vlaneseq
        %v1768 = vshrl.u32 %v1767, 7
        %v1769 = vsub.s32 0, %v1768
        %v1770 = vrot.slane %v1766, %v1769
        %1771 = vset.pattern.permute.xlu0 0
        %1772 = vperm.xlu0 %1771, %v1465
        %v1773 = vpop.permute.xlu0 %1772
        %v1774 = vlaneseq
        %v1775 = vshrl.u32 %v1774, 7
        %v1776 = vsub.s32 0, %v1775
        %v1777 = vrot.slane %v1773, %v1776
        %1778 = vset.pattern.permute.xlu0 0
        %1779 = vperm.xlu0 %1778, %v1466
        %v1780 = vpop.permute.xlu0 %1779
        %v1781 = vlaneseq
        %v1782 = vshrl.u32 %v1781, 7
        %v1783 = vsub.s32 0, %v1782
        %v1784 = vrot.slane %v1780, %v1783
        %1785 = vset.pattern.permute.xlu0 0
        %1786 = vperm.xlu0 %1785, %v1467
        %v1787 = vpop.permute.xlu0 %1786
        %v1788 = vlaneseq
        %v1789 = vshrl.u32 %v1788, 7
        %v1790 = vsub.s32 0, %v1789
        %v1791 = vrot.slane %v1787, %v1790
        %1792 = vset.pattern.permute.xlu0 0
        %1793 = vperm.xlu0 %1792, %v1468
        %v1794 = vpop.permute.xlu0 %1793
        %v1795 = vlaneseq
        %v1796 = vshrl.u32 %v1795, 7
        %v1797 = vsub.s32 0, %v1796
        %v1798 = vrot.slane %v1794, %v1797
        %1799 = vset.pattern.permute.xlu0 0
        %1800 = vperm.xlu0 %1799, %v1469
        %v1801 = vpop.permute.xlu0 %1800
        %v1802 = vlaneseq
        %v1803 = vshrl.u32 %v1802, 7
        %v1804 = vsub.s32 0, %v1803
        %v1805 = vrot.slane %v1801, %v1804
        %1806 = vset.pattern.permute.xlu0 0
        %1807 = vperm.xlu0 %1806, %v1470
        %v1808 = vpop.permute.xlu0 %1807
        %v1809 = vlaneseq
        %v1810 = vshrl.u32 %v1809, 7
        %v1811 = vsub.s32 0, %v1810
        %v1812 = vrot.slane %v1808, %v1811
        %1813 = vset.pattern.permute.xlu0 0
        %1814 = vperm.xlu0 %1813, %v1471
        %v1815 = vpop.permute.xlu0 %1814
        %v1816 = vlaneseq
        %v1817 = vshrl.u32 %v1816, 7
        %v1818 = vsub.s32 0, %v1817
        %v1819 = vrot.slane %v1815, %v1818
        %1820 = vset.pattern.permute.xlu0 0
        %1821 = vperm.xlu0 %1820, %v1472
        %v1822 = vpop.permute.xlu0 %1821
        %v1823 = vlaneseq
        %v1824 = vshrl.u32 %v1823, 7
        %v1825 = vsub.s32 0, %v1824
        %v1826 = vrot.slane %v1822, %v1825
        %1827 = vset.pattern.permute.xlu0 0
        %1828 = vperm.xlu0 %1827, %v1473
        %v1829 = vpop.permute.xlu0 %1828
        %v1830 = vlaneseq
        %v1831 = vshrl.u32 %v1830, 7
        %v1832 = vsub.s32 0, %v1831
        %v1833 = vrot.slane %v1829, %v1832
        %1834 = vset.pattern.permute.xlu0 0
        %1835 = vperm.xlu0 %1834, %v1474
        %v1836 = vpop.permute.xlu0 %1835
        %v1837 = vlaneseq
        %v1838 = vshrl.u32 %v1837, 7
        %v1839 = vsub.s32 0, %v1838
        %v1840 = vrot.slane %v1836, %v1839
        %1841 = vset.pattern.permute.xlu0 0
        %1842 = vperm.xlu0 %1841, %v1475
        %v1843 = vpop.permute.xlu0 %1842
        %v1844 = vlaneseq
        %v1845 = vshrl.u32 %v1844, 7
        %v1846 = vsub.s32 0, %v1845
        %v1847 = vrot.slane %v1843, %v1846
        %1848 = vset.pattern.permute.xlu0 0
        %1849 = vperm.xlu0 %1848, %v1476
        %v1850 = vpop.permute.xlu0 %1849
        %v1851 = vlaneseq
        %v1852 = vshrl.u32 %v1851, 7
        %v1853 = vsub.s32 0, %v1852
        %v1854 = vrot.slane %v1850, %v1853
        %1855 = vset.pattern.permute.xlu0 0
        %1856 = vperm.xlu0 %1855, %v1477
        %v1857 = vpop.permute.xlu0 %1856
        %v1858 = vlaneseq
        %v1859 = vshrl.u32 %v1858, 7
        %v1860 = vsub.s32 0, %v1859
        %v1861 = vrot.slane %v1857, %v1860
        %1862 = vset.pattern.permute.xlu0 0
        %1863 = vperm.xlu0 %1862, %v1478
        %v1864 = vpop.permute.xlu0 %1863
        %v1865 = vlaneseq
        %v1866 = vshrl.u32 %v1865, 7
        %v1867 = vsub.s32 0, %v1866
        %v1868 = vrot.slane %v1864, %v1867
        %1869 = vset.pattern.permute.xlu0 0
        %1870 = vperm.xlu0 %1869, %v1479
        %v1871 = vpop.permute.xlu0 %1870
        %v1872 = vlaneseq
        %v1873 = vshrl.u32 %v1872, 7
        %v1874 = vsub.s32 0, %v1873
        %v1875 = vrot.slane %v1871, %v1874
        %1876 = vset.pattern.permute.xlu0 0
        %1877 = vperm.xlu0 %1876, %v1480
        %v1878 = vpop.permute.xlu0 %1877
        %v1879 = vlaneseq
        %v1880 = vshrl.u32 %v1879, 7
        %v1881 = vsub.s32 0, %v1880
        %v1882 = vrot.slane %v1878, %v1881
        %1883 = vset.pattern.permute.xlu0 0
        %1884 = vperm.xlu0 %1883, %v1481
        %v1885 = vpop.permute.xlu0 %1884
        %v1886 = vlaneseq
        %v1887 = vshrl.u32 %v1886, 7
        %v1888 = vsub.s32 0, %v1887
        %v1889 = vrot.slane %v1885, %v1888
        %1890 = vset.pattern.permute.xlu0 0
        %1891 = vperm.xlu0 %1890, %v1482
        %v1892 = vpop.permute.xlu0 %1891
        %v1893 = vlaneseq
        %v1894 = vshrl.u32 %v1893, 7
        %v1895 = vsub.s32 0, %v1894
        %v1896 = vrot.slane %v1892, %v1895
        %1897 = vset.pattern.permute.xlu0 0
        %1898 = vperm.xlu0 %1897, %v1483
        %v1899 = vpop.permute.xlu0 %1898
        %v1900 = vlaneseq
        %v1901 = vshrl.u32 %v1900, 7
        %v1902 = vsub.s32 0, %v1901
        %v1903 = vrot.slane %v1899, %v1902
        %1904 = vset.pattern.permute.xlu0 0
        %1905 = vperm.xlu0 %1904, %v1484
        %v1906 = vpop.permute.xlu0 %1905
        %v1907 = vlaneseq
        %v1908 = vshrl.u32 %v1907, 7
        %v1909 = vsub.s32 0, %v1908
        %v1910 = vrot.slane %v1906, %v1909
        %1911 = vset.pattern.permute.xlu0 0
        %1912 = vperm.xlu0 %1911, %v1485
        %v1913 = vpop.permute.xlu0 %1912
        %v1914 = vlaneseq
        %v1915 = vshrl.u32 %v1914, 7
        %v1916 = vsub.s32 0, %v1915
        %v1917 = vrot.slane %v1913, %v1916
        %1918 = vset.pattern.permute.xlu0 0
        %1919 = vperm.xlu0 %1918, %v1486
        %v1920 = vpop.permute.xlu0 %1919
        %v1921 = vlaneseq
        %v1922 = vshrl.u32 %v1921, 7
        %v1923 = vsub.s32 0, %v1922
        %v1924 = vrot.slane %v1920, %v1923
        %1925 = vset.pattern.permute.xlu0 0
        %1926 = vperm.xlu0 %1925, %v1487
        %v1927 = vpop.permute.xlu0 %1926
        %v1928 = vlaneseq
        %v1929 = vshrl.u32 %v1928, 7
        %v1930 = vsub.s32 0, %v1929
        %v1931 = vrot.slane %v1927, %v1930
        %1932 = vset.pattern.permute.xlu0 0
        %1933 = vperm.xlu0 %1932, %v1488
        %v1934 = vpop.permute.xlu0 %1933
        %v1935 = vlaneseq
        %v1936 = vshrl.u32 %v1935, 7
        %v1937 = vsub.s32 0, %v1936
        %v1938 = vrot.slane %v1934, %v1937
        %1939 = vset.pattern.permute.xlu0 0
        %1940 = vperm.xlu0 %1939, %v1489
        %v1941 = vpop.permute.xlu0 %1940
        %v1942 = vlaneseq
        %v1943 = vshrl.u32 %v1942, 7
        %v1944 = vsub.s32 0, %v1943
        %v1945 = vrot.slane %v1941, %v1944
        %1946 = vset.pattern.permute.xlu0 0
        %1947 = vperm.xlu0 %1946, %v1490
        %v1948 = vpop.permute.xlu0 %1947
        %v1949 = vlaneseq
        %v1950 = vshrl.u32 %v1949, 7
        %v1951 = vsub.s32 0, %v1950
        %v1952 = vrot.slane %v1948, %v1951
        %1953 = vset.pattern.permute.xlu0 0
        %1954 = vperm.xlu0 %1953, %v1491
        %v1955 = vpop.permute.xlu0 %1954
        %v1956 = vlaneseq
        %v1957 = vshrl.u32 %v1956, 7
        %v1958 = vsub.s32 0, %v1957
        %v1959 = vrot.slane %v1955, %v1958
        %1960 = vset.pattern.permute.xlu0 0
        %1961 = vperm.xlu0 %1960, %v1492
        %v1962 = vpop.permute.xlu0 %1961
        %v1963 = vlaneseq
        %v1964 = vshrl.u32 %v1963, 7
        %v1965 = vsub.s32 0, %v1964
        %v1966 = vrot.slane %v1962, %v1965
        %1967 = vset.pattern.permute.xlu0 0
        %1968 = vperm.xlu0 %1967, %v1493
        %v1969 = vpop.permute.xlu0 %1968
        %v1970 = vlaneseq
        %v1971 = vshrl.u32 %v1970, 7
        %v1972 = vsub.s32 0, %v1971
        %v1973 = vrot.slane %v1969, %v1972
        %1974 = vset.pattern.permute.xlu0 0
        %1975 = vperm.xlu0 %1974, %v1494
        %v1976 = vpop.permute.xlu0 %1975
        %v1977 = vlaneseq
        %v1978 = vshrl.u32 %v1977, 7
        %v1979 = vsub.s32 0, %v1978
        %v1980 = vrot.slane %v1976, %v1979
        %1981 = vset.pattern.permute.xlu0 0
        %1982 = vperm.xlu0 %1981, %v1495
        %v1983 = vpop.permute.xlu0 %1982
        %v1984 = vlaneseq
        %v1985 = vshrl.u32 %v1984, 7
        %v1986 = vsub.s32 0, %v1985
        %v1987 = vrot.slane %v1983, %v1986
        %1988 = vset.pattern.permute.xlu0 0
        %1989 = vperm.xlu0 %1988, %v1496
        %v1990 = vpop.permute.xlu0 %1989
        %v1991 = vlaneseq
        %v1992 = vshrl.u32 %v1991, 7
        %v1993 = vsub.s32 0, %v1992
        %v1994 = vrot.slane %v1990, %v1993
        %1995 = vset.pattern.permute.xlu0 0
        %1996 = vperm.xlu0 %1995, %v1497
        %v1997 = vpop.permute.xlu0 %1996
        %v1998 = vlaneseq
        %v1999 = vshrl.u32 %v1998, 7
        %v2000 = vsub.s32 0, %v1999
        %v2001 = vrot.slane %v1997, %v2000
        %vm2002 = vcmp.eq.s32.totalorder %v253, %v1504
        %vm2003 = vcmp.eq.s32.totalorder %v253, %v1511
        %vm2004 = vcmp.eq.s32.totalorder %v253, %v1518
        %vm2005 = vcmp.eq.s32.totalorder %v253, %v1525
        %vm2006 = vcmp.eq.s32.totalorder %v253, %v1532
        %vm2007 = vcmp.eq.s32.totalorder %v253, %v1539
        %vm2008 = vcmp.eq.s32.totalorder %v253, %v1546
        %vm2009 = vcmp.eq.s32.totalorder %v253, %v1553
        %vm2010 = vcmp.eq.s32.totalorder %v253, %v1560
        %vm2011 = vcmp.eq.s32.totalorder %v253, %v1567
        %vm2012 = vcmp.eq.s32.totalorder %v253, %v1574
        %vm2013 = vcmp.eq.s32.totalorder %v253, %v1581
        %vm2014 = vcmp.eq.s32.totalorder %v253, %v1588
        %vm2015 = vcmp.eq.s32.totalorder %v253, %v1595
        %vm2016 = vcmp.eq.s32.totalorder %v253, %v1602
        %vm2017 = vcmp.eq.s32.totalorder %v253, %v1609
        %vm2018 = vcmp.eq.s32.totalorder %v253, %v1616
        %vm2019 = vcmp.eq.s32.totalorder %v253, %v1623
        %vm2020 = vcmp.eq.s32.totalorder %v253, %v1630
        %vm2021 = vcmp.eq.s32.totalorder %v253, %v1637
        %vm2022 = vcmp.eq.s32.totalorder %v253, %v1644
        %vm2023 = vcmp.eq.s32.totalorder %v253, %v1651
        %vm2024 = vcmp.eq.s32.totalorder %v253, %v1658
        %vm2025 = vcmp.eq.s32.totalorder %v253, %v1665
        %vm2026 = vcmp.eq.s32.totalorder %v253, %v1672
        %vm2027 = vcmp.eq.s32.totalorder %v253, %v1679
        %vm2028 = vcmp.eq.s32.totalorder %v253, %v1686
        %vm2029 = vcmp.eq.s32.totalorder %v253, %v1693
        %vm2030 = vcmp.eq.s32.totalorder %v253, %v1700
        %vm2031 = vcmp.eq.s32.totalorder %v253, %v1707
        %vm2032 = vcmp.eq.s32.totalorder %v253, %v1714
        %vm2033 = vcmp.eq.s32.totalorder %v253, %v1721
        %vm2034 = vcmp.eq.s32.totalorder %v253, %v1728
        %vm2035 = vcmp.eq.s32.totalorder %v253, %v1735
        %vm2036 = vcmp.eq.s32.totalorder %v253, %v1742
        %vm2037 = vcmp.eq.s32.totalorder %v253, %v1749
        %vm2038 = vcmp.eq.s32.totalorder %v253, %v1756
        %vm2039 = vcmp.eq.s32.totalorder %v253, %v1763
        %vm2040 = vcmp.eq.s32.totalorder %v253, %v1770
        %vm2041 = vcmp.eq.s32.totalorder %v253, %v1777
        %vm2042 = vcmp.eq.s32.totalorder %v253, %v1784
        %vm2043 = vcmp.eq.s32.totalorder %v253, %v1791
        %vm2044 = vcmp.eq.s32.totalorder %v253, %v1798
        %vm2045 = vcmp.eq.s32.totalorder %v253, %v1805
        %vm2046 = vcmp.eq.s32.totalorder %v253, %v1812
        %vm2047 = vcmp.eq.s32.totalorder %v253, %v1819
        %vm2048 = vcmp.eq.s32.totalorder %v253, %v1826
        %vm2049 = vcmp.eq.s32.totalorder %v253, %v1833
        %vm2050 = vcmp.eq.s32.totalorder %v253, %v1840
        %vm2051 = vcmp.eq.s32.totalorder %v253, %v1847
        %vm2052 = vcmp.eq.s32.totalorder %v253, %v1854
        %vm2053 = vcmp.eq.s32.totalorder %v253, %v1861
        %vm2054 = vcmp.eq.s32.totalorder %v253, %v1868
        %vm2055 = vcmp.eq.s32.totalorder %v253, %v1875
        %vm2056 = vcmp.eq.s32.totalorder %v253, %v1882
        %vm2057 = vcmp.eq.s32.totalorder %v253, %v1889
        %vm2058 = vcmp.eq.s32.totalorder %v253, %v1896
        %vm2059 = vcmp.eq.s32.totalorder %v253, %v1903
        %vm2060 = vcmp.eq.s32.totalorder %v253, %v1910
        %vm2061 = vcmp.eq.s32.totalorder %v253, %v1917
        %vm2062 = vcmp.eq.s32.totalorder %v253, %v1924
        %vm2063 = vcmp.eq.s32.totalorder %v253, %v1931
        %vm2064 = vcmp.eq.s32.totalorder %v253, %v1938
        %vm2065 = vcmp.eq.s32.totalorder %v253, %v1945
        %vm2066 = vcmp.eq.s32.totalorder %v253, %v1952
        %vm2067 = vcmp.eq.s32.totalorder %v253, %v1959
        %vm2068 = vcmp.eq.s32.totalorder %v253, %v1966
        %vm2069 = vcmp.eq.s32.totalorder %v253, %v1973
        %vm2070 = vcmp.eq.s32.totalorder %v253, %v1980
        %vm2071 = vcmp.eq.s32.totalorder %v253, %v1987
        %vm2072 = vcmp.eq.s32.totalorder %v253, %v1994
        %vm2073 = vcmp.eq.s32.totalorder %v253, %v2001
        %vm2074 = vmor %vm1199, %vm2002
        %vm2075 = vmor %vm1200, %vm2003
        %vm2076 = vmor %vm1201, %vm2004
        %vm2077 = vmor %vm1202, %vm2005
        %vm2078 = vmor %vm1203, %vm2006
        %vm2079 = vmor %vm1204, %vm2007
        %vm2080 = vmor %vm1205, %vm2008
        %vm2081 = vmor %vm1206, %vm2009
        %vm2082 = vmor %vm1207, %vm2010
        %vm2083 = vmor %vm1208, %vm2011
        %vm2084 = vmor %vm1209, %vm2012
        %vm2085 = vmor %vm1210, %vm2013
        %vm2086 = vmor %vm1211, %vm2014
        %vm2087 = vmor %vm1212, %vm2015
        %vm2088 = vmor %vm1213, %vm2016
        %vm2089 = vmor %vm1214, %vm2017
        %vm2090 = vmor %vm1215, %vm2018
        %vm2091 = vmor %vm1216, %vm2019
        %vm2092 = vmor %vm1217, %vm2020
        %vm2093 = vmor %vm1218, %vm2021
        %vm2094 = vmor %vm1219, %vm2022
        %vm2095 = vmor %vm1220, %vm2023
        %vm2096 = vmor %vm1221, %vm2024
        %vm2097 = vmor %vm1222, %vm2025
        %vm2098 = vmor %vm1223, %vm2026
        %vm2099 = vmor %vm1224, %vm2027
        %vm2100 = vmor %vm1225, %vm2028
        %vm2101 = vmor %vm1226, %vm2029
        %vm2102 = vmor %vm1227, %vm2030
        %vm2103 = vmor %vm1228, %vm2031
        %vm2104 = vmor %vm1229, %vm2032
        %vm2105 = vmor %vm1230, %vm2033
        %vm2106 = vmor %vm1231, %vm2034
        %vm2107 = vmor %vm1232, %vm2035
        %vm2108 = vmor %vm1233, %vm2036
        %vm2109 = vmor %vm1234, %vm2037
        %vm2110 = vmor %vm1235, %vm2038
        %vm2111 = vmor %vm1236, %vm2039
        %vm2112 = vmor %vm1237, %vm2040
        %vm2113 = vmor %vm1238, %vm2041
        %vm2114 = vmor %vm1239, %vm2042
        %vm2115 = vmor %vm1240, %vm2043
        %vm2116 = vmor %vm1241, %vm2044
        %vm2117 = vmor %vm1242, %vm2045
        %vm2118 = vmor %vm1243, %vm2046
        %vm2119 = vmor %vm1244, %vm2047
        %vm2120 = vmor %vm1245, %vm2048
        %vm2121 = vmor %vm1246, %vm2049
        %vm2122 = vmor %vm1247, %vm2050
        %vm2123 = vmor %vm1248, %vm2051
        %vm2124 = vmor %vm1249, %vm2052
        %vm2125 = vmor %vm1250, %vm2053
        %vm2126 = vmor %vm1251, %vm2054
        %vm2127 = vmor %vm1252, %vm2055
        %vm2128 = vmor %vm1253, %vm2056
        %vm2129 = vmor %vm1254, %vm2057
        %vm2130 = vmor %vm1255, %vm2058
        %vm2131 = vmor %vm1256, %vm2059
        %vm2132 = vmor %vm1257, %vm2060
        %vm2133 = vmor %vm1258, %vm2061
        %vm2134 = vmor %vm1259, %vm2062
        %vm2135 = vmor %vm1260, %vm2063
        %vm2136 = vmor %vm1261, %vm2064
        %vm2137 = vmor %vm1262, %vm2065
        %vm2138 = vmor %vm1263, %vm2066
        %vm2139 = vmor %vm1264, %vm2067
        %vm2140 = vmor %vm1265, %vm2068
        %vm2141 = vmor %vm1266, %vm2069
        %vm2142 = vmor %vm1267, %vm2070
        %vm2143 = vmor %vm1268, %vm2071
        %vm2144 = vmor %vm1269, %vm2072
        %vm2145 = vmor %vm1270, %vm2073
        %v2146 = vrot.slane %v244, 1
        %v2147 = vrot.slane %v245, 1
        %v2148 = vsel %vm1271, %v2146, %v2147
        %v2149 = vrot.slane %v246, 1
        %v2150 = vsel %vm1271, %v2147, %v2149
        %v2151 = vrot.slane %v247, 1
        %v2152 = vsel %vm1271, %v2149, %v2151
        %v2153 = vcombine.high %v2148, %v2148
        %v2155 = vunpack.c.l.s4 1966171168
        %v2156 = vunpack.c.0.s8 %v2155
        %v2157 = vlaneseq
        %v2158 = vshrl.u32 %v2157, 7
        %v2159 = vsub.s32 %v2156, %v2158
        %v2160 = vrot.slane %v2148, %v2159
        %v2162 = vunpack.c.l.s4 1966171168
        %v2163 = vunpack.c.0.s8 %v2162
        %v2164 = vlaneseq
        %v2165 = vshrl.u32 %v2164, 7
        %v2166 = vsub.s32 %v2163, %v2165
        %v2167 = vrot.slane %v2153, %v2166
        %v2168 = vcombine.high %v2160, %v2160
        %v2169 = vcombine.high %v2167, %v2167
        %v2171 = vunpack.c.l.s4 1966171168
        %v2172 = vunpack.c.0.s8 %v2171
        %v2173 = vlaneseq
        %v2174 = vshrl.u32 %v2173, 7
        %v2175 = vsub.s32 %v2172, %v2174
        %v2176 = vrot.slane %v2160, %v2175
        %v2178 = vunpack.c.l.s4 1966171168
        %v2179 = vunpack.c.0.s8 %v2178
        %v2180 = vlaneseq
        %v2181 = vshrl.u32 %v2180, 7
        %v2182 = vsub.s32 %v2179, %v2181
        %v2183 = vrot.slane %v2167, %v2182
        %v2185 = vunpack.c.l.s4 1966171168
        %v2186 = vunpack.c.0.s8 %v2185
        %v2187 = vlaneseq
        %v2188 = vshrl.u32 %v2187, 7
        %v2189 = vsub.s32 %v2186, %v2188
        %v2190 = vrot.slane %v2168, %v2189
        %v2192 = vunpack.c.l.s4 1966171168
        %v2193 = vunpack.c.0.s8 %v2192
        %v2194 = vlaneseq
        %v2195 = vshrl.u32 %v2194, 7
        %v2196 = vsub.s32 %v2193, %v2195
        %v2197 = vrot.slane %v2169, %v2196
        %v2198 = vcombine.high %v2176, %v2176
        %v2199 = vcombine.high %v2183, %v2183
        %v2200 = vcombine.high %v2190, %v2190
        %v2201 = vcombine.high %v2197, %v2197
        %v2202 = vcombine.high %v2150, %v2150
        %v2204 = vunpack.c.l.s4 1966171168
        %v2205 = vunpack.c.0.s8 %v2204
        %v2206 = vlaneseq
        %v2207 = vshrl.u32 %v2206, 7
        %v2208 = vsub.s32 %v2205, %v2207
        %v2209 = vrot.slane %v2150, %v2208
        %v2211 = vunpack.c.l.s4 1966171168
        %v2212 = vunpack.c.0.s8 %v2211
        %v2213 = vlaneseq
        %v2214 = vshrl.u32 %v2213, 7
        %v2215 = vsub.s32 %v2212, %v2214
        %v2216 = vrot.slane %v2202, %v2215
        %v2217 = vcombine.high %v2209, %v2209
        %v2218 = vcombine.high %v2216, %v2216
        %v2220 = vunpack.c.l.s4 1966171168
        %v2221 = vunpack.c.0.s8 %v2220
        %v2222 = vlaneseq
        %v2223 = vshrl.u32 %v2222, 7
        %v2224 = vsub.s32 %v2221, %v2223
        %v2225 = vrot.slane %v2209, %v2224
        %v2227 = vunpack.c.l.s4 1966171168
        %v2228 = vunpack.c.0.s8 %v2227
        %v2229 = vlaneseq
        %v2230 = vshrl.u32 %v2229, 7
        %v2231 = vsub.s32 %v2228, %v2230
        %v2232 = vrot.slane %v2216, %v2231
        %v2234 = vunpack.c.l.s4 1966171168
        %v2235 = vunpack.c.0.s8 %v2234
        %v2236 = vlaneseq
        %v2237 = vshrl.u32 %v2236, 7
        %v2238 = vsub.s32 %v2235, %v2237
        %v2239 = vrot.slane %v2217, %v2238
        %v2241 = vunpack.c.l.s4 1966171168
        %v2242 = vunpack.c.0.s8 %v2241
        %v2243 = vlaneseq
        %v2244 = vshrl.u32 %v2243, 7
        %v2245 = vsub.s32 %v2242, %v2244
        %v2246 = vrot.slane %v2218, %v2245
        %v2247 = vcombine.high %v2225, %v2225
        %v2248 = vcombine.high %v2232, %v2232
        %v2249 = vcombine.high %v2239, %v2239
        %v2250 = vcombine.high %v2246, %v2246
        %v2251 = vcombine.high %v2152, %v2152
        %v2253 = vunpack.c.l.s4 1966171168
        %v2254 = vunpack.c.0.s8 %v2253
        %v2255 = vlaneseq
        %v2256 = vshrl.u32 %v2255, 7
        %v2257 = vsub.s32 %v2254, %v2256
        %v2258 = vrot.slane %v2152, %v2257
        %v2260 = vunpack.c.l.s4 1966171168
        %v2261 = vunpack.c.0.s8 %v2260
        %v2262 = vlaneseq
        %v2263 = vshrl.u32 %v2262, 7
        %v2264 = vsub.s32 %v2261, %v2263
        %v2265 = vrot.slane %v2251, %v2264
        %v2266 = vcombine.high %v2258, %v2258
        %v2267 = vcombine.high %v2265, %v2265
        %v2269 = vunpack.c.l.s4 1966171168
        %v2270 = vunpack.c.0.s8 %v2269
        %v2271 = vlaneseq
        %v2272 = vshrl.u32 %v2271, 7
        %v2273 = vsub.s32 %v2270, %v2272
        %v2274 = vrot.slane %v2258, %v2273
        %v2276 = vunpack.c.l.s4 1966171168
        %v2277 = vunpack.c.0.s8 %v2276
        %v2278 = vlaneseq
        %v2279 = vshrl.u32 %v2278, 7
        %v2280 = vsub.s32 %v2277, %v2279
        %v2281 = vrot.slane %v2265, %v2280
        %v2283 = vunpack.c.l.s4 1966171168
        %v2284 = vunpack.c.0.s8 %v2283
        %v2285 = vlaneseq
        %v2286 = vshrl.u32 %v2285, 7
        %v2287 = vsub.s32 %v2284, %v2286
        %v2288 = vrot.slane %v2266, %v2287
        %v2290 = vunpack.c.l.s4 1966171168
        %v2291 = vunpack.c.0.s8 %v2290
        %v2292 = vlaneseq
        %v2293 = vshrl.u32 %v2292, 7
        %v2294 = vsub.s32 %v2291, %v2293
        %v2295 = vrot.slane %v2267, %v2294
        %v2296 = vcombine.high %v2274, %v2274
        %v2297 = vcombine.high %v2281, %v2281
        %v2298 = vcombine.high %v2288, %v2288
        %v2299 = vcombine.high %v2295, %v2295
        %v2300 = vadd.s32 %v571, 12
        %v2301 = vadd.s32 %v585, 12
        %v2302 = vadd.s32 %v593, 12
        %v2303 = vadd.s32 %v595, 12
        %v2304 = vadd.s32 %v578, 12
        %v2305 = vadd.s32 %v592, 12
        %v2306 = vadd.s32 %v594, 12
        %v2307 = vadd.s32 %v596, 12
        %v2308 = vadd.s32 %v620, 12
        %v2309 = vadd.s32 %v634, 12
        %v2310 = vadd.s32 %v642, 12
        %v2311 = vadd.s32 %v644, 12
        %v2312 = vadd.s32 %v627, 12
        %v2313 = vadd.s32 %v641, 12
        %v2314 = vadd.s32 %v643, 12
        %v2315 = vadd.s32 %v645, 12
        %v2316 = vadd.s32 %v669, 12
        %v2317 = vadd.s32 %v683, 12
        %v2318 = vadd.s32 %v691, 12
        %v2319 = vadd.s32 %v693, 12
        %v2320 = vadd.s32 %v676, 12
        %v2321 = vadd.s32 %v690, 12
        %v2322 = vadd.s32 %v692, 12
        %v2323 = vadd.s32 %v694, 12
        %v2324 = vadd.s32 %v1302, 12
        %v2325 = vadd.s32 %v1316, 12
        %v2326 = vadd.s32 %v1324, 12
        %v2327 = vadd.s32 %v1326, 12
        %v2328 = vadd.s32 %v1309, 12
        %v2329 = vadd.s32 %v1323, 12
        %v2330 = vadd.s32 %v1325, 12
        %v2331 = vadd.s32 %v1327, 12
        %v2332 = vadd.s32 %v1351, 12
        %v2333 = vadd.s32 %v1365, 12
        %v2334 = vadd.s32 %v1373, 12
        %v2335 = vadd.s32 %v1375, 12
        %v2336 = vadd.s32 %v1358, 12
        %v2337 = vadd.s32 %v1372, 12
        %v2338 = vadd.s32 %v1374, 12
        %v2339 = vadd.s32 %v1376, 12
        %v2340 = vadd.s32 %v1400, 12
        %v2341 = vadd.s32 %v1414, 12
        %v2342 = vadd.s32 %v1422, 12
        %v2343 = vadd.s32 %v1424, 12
        %v2344 = vadd.s32 %v1407, 12
        %v2345 = vadd.s32 %v1421, 12
        %v2346 = vadd.s32 %v1423, 12
        %v2347 = vadd.s32 %v1425, 12
        %v2348 = vadd.s32 %v2176, 12
        %v2349 = vadd.s32 %v2190, 12
        %v2350 = vadd.s32 %v2198, 12
        %v2351 = vadd.s32 %v2200, 12
        %v2352 = vadd.s32 %v2183, 12
        %v2353 = vadd.s32 %v2197, 12
        %v2354 = vadd.s32 %v2199, 12
        %v2355 = vadd.s32 %v2201, 12
        %v2356 = vadd.s32 %v2225, 12
        %v2357 = vadd.s32 %v2239, 12
        %v2358 = vadd.s32 %v2247, 12
        %v2359 = vadd.s32 %v2249, 12
        %v2360 = vadd.s32 %v2232, 12
        %v2361 = vadd.s32 %v2246, 12
        %v2362 = vadd.s32 %v2248, 12
        %v2363 = vadd.s32 %v2250, 12
        %v2364 = vadd.s32 %v2274, 12
        %v2365 = vadd.s32 %v2288, 12
        %v2366 = vadd.s32 %v2296, 12
        %v2367 = vadd.s32 %v2298, 12
        %v2368 = vadd.s32 %v2281, 12
        %v2369 = vadd.s32 %v2295, 12
        %v2370 = vadd.s32 %v2297, 12
        %v2371 = vadd.s32 %v2299, 12
        %2372 = vset.pattern.permute.xlu0 0
        %2373 = vperm.xlu0 %2372, %v2300
        %v2374 = vpop.permute.xlu0 %2373
        %v2375 = vlaneseq
        %v2376 = vshrl.u32 %v2375, 7
        %v2377 = vsub.s32 0, %v2376
        %v2378 = vrot.slane %v2374, %v2377
        %2379 = vset.pattern.permute.xlu0 0
        %2380 = vperm.xlu0 %2379, %v2301
        %v2381 = vpop.permute.xlu0 %2380
        %v2382 = vlaneseq
        %v2383 = vshrl.u32 %v2382, 7
        %v2384 = vsub.s32 0, %v2383
        %v2385 = vrot.slane %v2381, %v2384
        %2386 = vset.pattern.permute.xlu0 0
        %2387 = vperm.xlu0 %2386, %v2302
        %v2388 = vpop.permute.xlu0 %2387
        %v2389 = vlaneseq
        %v2390 = vshrl.u32 %v2389, 7
        %v2391 = vsub.s32 0, %v2390
        %v2392 = vrot.slane %v2388, %v2391
        %2393 = vset.pattern.permute.xlu0 0
        %2394 = vperm.xlu0 %2393, %v2303
        %v2395 = vpop.permute.xlu0 %2394
        %v2396 = vlaneseq
        %v2397 = vshrl.u32 %v2396, 7
        %v2398 = vsub.s32 0, %v2397
        %v2399 = vrot.slane %v2395, %v2398
        %2400 = vset.pattern.permute.xlu0 0
        %2401 = vperm.xlu0 %2400, %v2304
        %v2402 = vpop.permute.xlu0 %2401
        %v2403 = vlaneseq
        %v2404 = vshrl.u32 %v2403, 7
        %v2405 = vsub.s32 0, %v2404
        %v2406 = vrot.slane %v2402, %v2405
        %2407 = vset.pattern.permute.xlu0 0
        %2408 = vperm.xlu0 %2407, %v2305
        %v2409 = vpop.permute.xlu0 %2408
        %v2410 = vlaneseq
        %v2411 = vshrl.u32 %v2410, 7
        %v2412 = vsub.s32 0, %v2411
        %v2413 = vrot.slane %v2409, %v2412
        %2414 = vset.pattern.permute.xlu0 0
        %2415 = vperm.xlu0 %2414, %v2306
        %v2416 = vpop.permute.xlu0 %2415
        %v2417 = vlaneseq
        %v2418 = vshrl.u32 %v2417, 7
        %v2419 = vsub.s32 0, %v2418
        %v2420 = vrot.slane %v2416, %v2419
        %2421 = vset.pattern.permute.xlu0 0
        %2422 = vperm.xlu0 %2421, %v2307
        %v2423 = vpop.permute.xlu0 %2422
        %v2424 = vlaneseq
        %v2425 = vshrl.u32 %v2424, 7
        %v2426 = vsub.s32 0, %v2425
        %v2427 = vrot.slane %v2423, %v2426
        %2428 = vset.pattern.permute.xlu0 0
        %2429 = vperm.xlu0 %2428, %v2308
        %v2430 = vpop.permute.xlu0 %2429
        %v2431 = vlaneseq
        %v2432 = vshrl.u32 %v2431, 7
        %v2433 = vsub.s32 0, %v2432
        %v2434 = vrot.slane %v2430, %v2433
        %2435 = vset.pattern.permute.xlu0 0
        %2436 = vperm.xlu0 %2435, %v2309
        %v2437 = vpop.permute.xlu0 %2436
        %v2438 = vlaneseq
        %v2439 = vshrl.u32 %v2438, 7
        %v2440 = vsub.s32 0, %v2439
        %v2441 = vrot.slane %v2437, %v2440
        %2442 = vset.pattern.permute.xlu0 0
        %2443 = vperm.xlu0 %2442, %v2310
        %v2444 = vpop.permute.xlu0 %2443
        %v2445 = vlaneseq
        %v2446 = vshrl.u32 %v2445, 7
        %v2447 = vsub.s32 0, %v2446
        %v2448 = vrot.slane %v2444, %v2447
        %2449 = vset.pattern.permute.xlu0 0
        %2450 = vperm.xlu0 %2449, %v2311
        %v2451 = vpop.permute.xlu0 %2450
        %v2452 = vlaneseq
        %v2453 = vshrl.u32 %v2452, 7
        %v2454 = vsub.s32 0, %v2453
        %v2455 = vrot.slane %v2451, %v2454
        %2456 = vset.pattern.permute.xlu0 0
        %2457 = vperm.xlu0 %2456, %v2312
        %v2458 = vpop.permute.xlu0 %2457
        %v2459 = vlaneseq
        %v2460 = vshrl.u32 %v2459, 7
        %v2461 = vsub.s32 0, %v2460
        %v2462 = vrot.slane %v2458, %v2461
        %2463 = vset.pattern.permute.xlu0 0
        %2464 = vperm.xlu0 %2463, %v2313
        %v2465 = vpop.permute.xlu0 %2464
        %v2466 = vlaneseq
        %v2467 = vshrl.u32 %v2466, 7
        %v2468 = vsub.s32 0, %v2467
        %v2469 = vrot.slane %v2465, %v2468
        %2470 = vset.pattern.permute.xlu0 0
        %2471 = vperm.xlu0 %2470, %v2314
        %v2472 = vpop.permute.xlu0 %2471
        %v2473 = vlaneseq
        %v2474 = vshrl.u32 %v2473, 7
        %v2475 = vsub.s32 0, %v2474
        %v2476 = vrot.slane %v2472, %v2475
        %2477 = vset.pattern.permute.xlu0 0
        %2478 = vperm.xlu0 %2477, %v2315
        %v2479 = vpop.permute.xlu0 %2478
        %v2480 = vlaneseq
        %v2481 = vshrl.u32 %v2480, 7
        %v2482 = vsub.s32 0, %v2481
        %v2483 = vrot.slane %v2479, %v2482
        %2484 = vset.pattern.permute.xlu0 0
        %2485 = vperm.xlu0 %2484, %v2316
        %v2486 = vpop.permute.xlu0 %2485
        %v2487 = vlaneseq
        %v2488 = vshrl.u32 %v2487, 7
        %v2489 = vsub.s32 0, %v2488
        %v2490 = vrot.slane %v2486, %v2489
        %2491 = vset.pattern.permute.xlu0 0
        %2492 = vperm.xlu0 %2491, %v2317
        %v2493 = vpop.permute.xlu0 %2492
        %v2494 = vlaneseq
        %v2495 = vshrl.u32 %v2494, 7
        %v2496 = vsub.s32 0, %v2495
        %v2497 = vrot.slane %v2493, %v2496
        %2498 = vset.pattern.permute.xlu0 0
        %2499 = vperm.xlu0 %2498, %v2318
        %v2500 = vpop.permute.xlu0 %2499
        %v2501 = vlaneseq
        %v2502 = vshrl.u32 %v2501, 7
        %v2503 = vsub.s32 0, %v2502
        %v2504 = vrot.slane %v2500, %v2503
        %2505 = vset.pattern.permute.xlu0 0
        %2506 = vperm.xlu0 %2505, %v2319
        %v2507 = vpop.permute.xlu0 %2506
        %v2508 = vlaneseq
        %v2509 = vshrl.u32 %v2508, 7
        %v2510 = vsub.s32 0, %v2509
        %v2511 = vrot.slane %v2507, %v2510
        %2512 = vset.pattern.permute.xlu0 0
        %2513 = vperm.xlu0 %2512, %v2320
        %v2514 = vpop.permute.xlu0 %2513
        %v2515 = vlaneseq
        %v2516 = vshrl.u32 %v2515, 7
        %v2517 = vsub.s32 0, %v2516
        %v2518 = vrot.slane %v2514, %v2517
        %2519 = vset.pattern.permute.xlu0 0
        %2520 = vperm.xlu0 %2519, %v2321
        %v2521 = vpop.permute.xlu0 %2520
        %v2522 = vlaneseq
        %v2523 = vshrl.u32 %v2522, 7
        %v2524 = vsub.s32 0, %v2523
        %v2525 = vrot.slane %v2521, %v2524
        %2526 = vset.pattern.permute.xlu0 0
        %2527 = vperm.xlu0 %2526, %v2322
        %v2528 = vpop.permute.xlu0 %2527
        %v2529 = vlaneseq
        %v2530 = vshrl.u32 %v2529, 7
        %v2531 = vsub.s32 0, %v2530
        %v2532 = vrot.slane %v2528, %v2531
        %2533 = vset.pattern.permute.xlu0 0
        %2534 = vperm.xlu0 %2533, %v2323
        %v2535 = vpop.permute.xlu0 %2534
        %v2536 = vlaneseq
        %v2537 = vshrl.u32 %v2536, 7
        %v2538 = vsub.s32 0, %v2537
        %v2539 = vrot.slane %v2535, %v2538
        %2540 = vset.pattern.permute.xlu0 0
        %2541 = vperm.xlu0 %2540, %v2324
        %v2542 = vpop.permute.xlu0 %2541
        %v2543 = vlaneseq
        %v2544 = vshrl.u32 %v2543, 7
        %v2545 = vsub.s32 0, %v2544
        %v2546 = vrot.slane %v2542, %v2545
        %2547 = vset.pattern.permute.xlu0 0
        %2548 = vperm.xlu0 %2547, %v2325
        %v2549 = vpop.permute.xlu0 %2548
        %v2550 = vlaneseq
        %v2551 = vshrl.u32 %v2550, 7
        %v2552 = vsub.s32 0, %v2551
        %v2553 = vrot.slane %v2549, %v2552
        %2554 = vset.pattern.permute.xlu0 0
        %2555 = vperm.xlu0 %2554, %v2326
        %v2556 = vpop.permute.xlu0 %2555
        %v2557 = vlaneseq
        %v2558 = vshrl.u32 %v2557, 7
        %v2559 = vsub.s32 0, %v2558
        %v2560 = vrot.slane %v2556, %v2559
        %2561 = vset.pattern.permute.xlu0 0
        %2562 = vperm.xlu0 %2561, %v2327
        %v2563 = vpop.permute.xlu0 %2562
        %v2564 = vlaneseq
        %v2565 = vshrl.u32 %v2564, 7
        %v2566 = vsub.s32 0, %v2565
        %v2567 = vrot.slane %v2563, %v2566
        %2568 = vset.pattern.permute.xlu0 0
        %2569 = vperm.xlu0 %2568, %v2328
        %v2570 = vpop.permute.xlu0 %2569
        %v2571 = vlaneseq
        %v2572 = vshrl.u32 %v2571, 7
        %v2573 = vsub.s32 0, %v2572
        %v2574 = vrot.slane %v2570, %v2573
        %2575 = vset.pattern.permute.xlu0 0
        %2576 = vperm.xlu0 %2575, %v2329
        %v2577 = vpop.permute.xlu0 %2576
        %v2578 = vlaneseq
        %v2579 = vshrl.u32 %v2578, 7
        %v2580 = vsub.s32 0, %v2579
        %v2581 = vrot.slane %v2577, %v2580
        %2582 = vset.pattern.permute.xlu0 0
        %2583 = vperm.xlu0 %2582, %v2330
        %v2584 = vpop.permute.xlu0 %2583
        %v2585 = vlaneseq
        %v2586 = vshrl.u32 %v2585, 7
        %v2587 = vsub.s32 0, %v2586
        %v2588 = vrot.slane %v2584, %v2587
        %2589 = vset.pattern.permute.xlu0 0
        %2590 = vperm.xlu0 %2589, %v2331
        %v2591 = vpop.permute.xlu0 %2590
        %v2592 = vlaneseq
        %v2593 = vshrl.u32 %v2592, 7
        %v2594 = vsub.s32 0, %v2593
        %v2595 = vrot.slane %v2591, %v2594
        %2596 = vset.pattern.permute.xlu0 0
        %2597 = vperm.xlu0 %2596, %v2332
        %v2598 = vpop.permute.xlu0 %2597
        %v2599 = vlaneseq
        %v2600 = vshrl.u32 %v2599, 7
        %v2601 = vsub.s32 0, %v2600
        %v2602 = vrot.slane %v2598, %v2601
        %2603 = vset.pattern.permute.xlu0 0
        %2604 = vperm.xlu0 %2603, %v2333
        %v2605 = vpop.permute.xlu0 %2604
        %v2606 = vlaneseq
        %v2607 = vshrl.u32 %v2606, 7
        %v2608 = vsub.s32 0, %v2607
        %v2609 = vrot.slane %v2605, %v2608
        %2610 = vset.pattern.permute.xlu0 0
        %2611 = vperm.xlu0 %2610, %v2334
        %v2612 = vpop.permute.xlu0 %2611
        %v2613 = vlaneseq
        %v2614 = vshrl.u32 %v2613, 7
        %v2615 = vsub.s32 0, %v2614
        %v2616 = vrot.slane %v2612, %v2615
        %2617 = vset.pattern.permute.xlu0 0
        %2618 = vperm.xlu0 %2617, %v2335
        %v2619 = vpop.permute.xlu0 %2618
        %v2620 = vlaneseq
        %v2621 = vshrl.u32 %v2620, 7
        %v2622 = vsub.s32 0, %v2621
        %v2623 = vrot.slane %v2619, %v2622
        %2624 = vset.pattern.permute.xlu0 0
        %2625 = vperm.xlu0 %2624, %v2336
        %v2626 = vpop.permute.xlu0 %2625
        %v2627 = vlaneseq
        %v2628 = vshrl.u32 %v2627, 7
        %v2629 = vsub.s32 0, %v2628
        %v2630 = vrot.slane %v2626, %v2629
        %2631 = vset.pattern.permute.xlu0 0
        %2632 = vperm.xlu0 %2631, %v2337
        %v2633 = vpop.permute.xlu0 %2632
        %v2634 = vlaneseq
        %v2635 = vshrl.u32 %v2634, 7
        %v2636 = vsub.s32 0, %v2635
        %v2637 = vrot.slane %v2633, %v2636
        %2638 = vset.pattern.permute.xlu0 0
        %2639 = vperm.xlu0 %2638, %v2338
        %v2640 = vpop.permute.xlu0 %2639
        %v2641 = vlaneseq
        %v2642 = vshrl.u32 %v2641, 7
        %v2643 = vsub.s32 0, %v2642
        %v2644 = vrot.slane %v2640, %v2643
        %2645 = vset.pattern.permute.xlu0 0
        %2646 = vperm.xlu0 %2645, %v2339
        %v2647 = vpop.permute.xlu0 %2646
        %v2648 = vlaneseq
        %v2649 = vshrl.u32 %v2648, 7
        %v2650 = vsub.s32 0, %v2649
        %v2651 = vrot.slane %v2647, %v2650
        %2652 = vset.pattern.permute.xlu0 0
        %2653 = vperm.xlu0 %2652, %v2340
        %v2654 = vpop.permute.xlu0 %2653
        %v2655 = vlaneseq
        %v2656 = vshrl.u32 %v2655, 7
        %v2657 = vsub.s32 0, %v2656
        %v2658 = vrot.slane %v2654, %v2657
        %2659 = vset.pattern.permute.xlu0 0
        %2660 = vperm.xlu0 %2659, %v2341
        %v2661 = vpop.permute.xlu0 %2660
        %v2662 = vlaneseq
        %v2663 = vshrl.u32 %v2662, 7
        %v2664 = vsub.s32 0, %v2663
        %v2665 = vrot.slane %v2661, %v2664
        %2666 = vset.pattern.permute.xlu0 0
        %2667 = vperm.xlu0 %2666, %v2342
        %v2668 = vpop.permute.xlu0 %2667
        %v2669 = vlaneseq
        %v2670 = vshrl.u32 %v2669, 7
        %v2671 = vsub.s32 0, %v2670
        %v2672 = vrot.slane %v2668, %v2671
        %2673 = vset.pattern.permute.xlu0 0
        %2674 = vperm.xlu0 %2673, %v2343
        %v2675 = vpop.permute.xlu0 %2674
        %v2676 = vlaneseq
        %v2677 = vshrl.u32 %v2676, 7
        %v2678 = vsub.s32 0, %v2677
        %v2679 = vrot.slane %v2675, %v2678
        %2680 = vset.pattern.permute.xlu0 0
        %2681 = vperm.xlu0 %2680, %v2344
        %v2682 = vpop.permute.xlu0 %2681
        %v2683 = vlaneseq
        %v2684 = vshrl.u32 %v2683, 7
        %v2685 = vsub.s32 0, %v2684
        %v2686 = vrot.slane %v2682, %v2685
        %2687 = vset.pattern.permute.xlu0 0
        %2688 = vperm.xlu0 %2687, %v2345
        %v2689 = vpop.permute.xlu0 %2688
        %v2690 = vlaneseq
        %v2691 = vshrl.u32 %v2690, 7
        %v2692 = vsub.s32 0, %v2691
        %v2693 = vrot.slane %v2689, %v2692
        %2694 = vset.pattern.permute.xlu0 0
        %2695 = vperm.xlu0 %2694, %v2346
        %v2696 = vpop.permute.xlu0 %2695
        %v2697 = vlaneseq
        %v2698 = vshrl.u32 %v2697, 7
        %v2699 = vsub.s32 0, %v2698
        %v2700 = vrot.slane %v2696, %v2699
        %2701 = vset.pattern.permute.xlu0 0
        %2702 = vperm.xlu0 %2701, %v2347
        %v2703 = vpop.permute.xlu0 %2702
        %v2704 = vlaneseq
        %v2705 = vshrl.u32 %v2704, 7
        %v2706 = vsub.s32 0, %v2705
        %v2707 = vrot.slane %v2703, %v2706
        %2708 = vset.pattern.permute.xlu0 0
        %2709 = vperm.xlu0 %2708, %v2348
        %v2710 = vpop.permute.xlu0 %2709
        %v2711 = vlaneseq
        %v2712 = vshrl.u32 %v2711, 7
        %v2713 = vsub.s32 0, %v2712
        %v2714 = vrot.slane %v2710, %v2713
        %2715 = vset.pattern.permute.xlu0 0
        %2716 = vperm.xlu0 %2715, %v2349
        %v2717 = vpop.permute.xlu0 %2716
        %v2718 = vlaneseq
        %v2719 = vshrl.u32 %v2718, 7
        %v2720 = vsub.s32 0, %v2719
        %v2721 = vrot.slane %v2717, %v2720
        %2722 = vset.pattern.permute.xlu0 0
        %2723 = vperm.xlu0 %2722, %v2350
        %v2724 = vpop.permute.xlu0 %2723
        %v2725 = vlaneseq
        %v2726 = vshrl.u32 %v2725, 7
        %v2727 = vsub.s32 0, %v2726
        %v2728 = vrot.slane %v2724, %v2727
        %2729 = vset.pattern.permute.xlu0 0
        %2730 = vperm.xlu0 %2729, %v2351
        %v2731 = vpop.permute.xlu0 %2730
        %v2732 = vlaneseq
        %v2733 = vshrl.u32 %v2732, 7
        %v2734 = vsub.s32 0, %v2733
        %v2735 = vrot.slane %v2731, %v2734
        %2736 = vset.pattern.permute.xlu0 0
        %2737 = vperm.xlu0 %2736, %v2352
        %v2738 = vpop.permute.xlu0 %2737
        %v2739 = vlaneseq
        %v2740 = vshrl.u32 %v2739, 7
        %v2741 = vsub.s32 0, %v2740
        %v2742 = vrot.slane %v2738, %v2741
        %2743 = vset.pattern.permute.xlu0 0
        %2744 = vperm.xlu0 %2743, %v2353
        %v2745 = vpop.permute.xlu0 %2744
        %v2746 = vlaneseq
        %v2747 = vshrl.u32 %v2746, 7
        %v2748 = vsub.s32 0, %v2747
        %v2749 = vrot.slane %v2745, %v2748
        %2750 = vset.pattern.permute.xlu0 0
        %2751 = vperm.xlu0 %2750, %v2354
        %v2752 = vpop.permute.xlu0 %2751
        %v2753 = vlaneseq
        %v2754 = vshrl.u32 %v2753, 7
        %v2755 = vsub.s32 0, %v2754
        %v2756 = vrot.slane %v2752, %v2755
        %2757 = vset.pattern.permute.xlu0 0
        %2758 = vperm.xlu0 %2757, %v2355
        %v2759 = vpop.permute.xlu0 %2758
        %v2760 = vlaneseq
        %v2761 = vshrl.u32 %v2760, 7
        %v2762 = vsub.s32 0, %v2761
        %v2763 = vrot.slane %v2759, %v2762
        %2764 = vset.pattern.permute.xlu0 0
        %2765 = vperm.xlu0 %2764, %v2356
        %v2766 = vpop.permute.xlu0 %2765
        %v2767 = vlaneseq
        %v2768 = vshrl.u32 %v2767, 7
        %v2769 = vsub.s32 0, %v2768
        %v2770 = vrot.slane %v2766, %v2769
        %2771 = vset.pattern.permute.xlu0 0
        %2772 = vperm.xlu0 %2771, %v2357
        %v2773 = vpop.permute.xlu0 %2772
        %v2774 = vlaneseq
        %v2775 = vshrl.u32 %v2774, 7
        %v2776 = vsub.s32 0, %v2775
        %v2777 = vrot.slane %v2773, %v2776
        %2778 = vset.pattern.permute.xlu0 0
        %2779 = vperm.xlu0 %2778, %v2358
        %v2780 = vpop.permute.xlu0 %2779
        %v2781 = vlaneseq
        %v2782 = vshrl.u32 %v2781, 7
        %v2783 = vsub.s32 0, %v2782
        %v2784 = vrot.slane %v2780, %v2783
        %2785 = vset.pattern.permute.xlu0 0
        %2786 = vperm.xlu0 %2785, %v2359
        %v2787 = vpop.permute.xlu0 %2786
        %v2788 = vlaneseq
        %v2789 = vshrl.u32 %v2788, 7
        %v2790 = vsub.s32 0, %v2789
        %v2791 = vrot.slane %v2787, %v2790
        %2792 = vset.pattern.permute.xlu0 0
        %2793 = vperm.xlu0 %2792, %v2360
        %v2794 = vpop.permute.xlu0 %2793
        %v2795 = vlaneseq
        %v2796 = vshrl.u32 %v2795, 7
        %v2797 = vsub.s32 0, %v2796
        %v2798 = vrot.slane %v2794, %v2797
        %2799 = vset.pattern.permute.xlu0 0
        %2800 = vperm.xlu0 %2799, %v2361
        %v2801 = vpop.permute.xlu0 %2800
        %v2802 = vlaneseq
        %v2803 = vshrl.u32 %v2802, 7
        %v2804 = vsub.s32 0, %v2803
        %v2805 = vrot.slane %v2801, %v2804
        %2806 = vset.pattern.permute.xlu0 0
        %2807 = vperm.xlu0 %2806, %v2362
        %v2808 = vpop.permute.xlu0 %2807
        %v2809 = vlaneseq
        %v2810 = vshrl.u32 %v2809, 7
        %v2811 = vsub.s32 0, %v2810
        %v2812 = vrot.slane %v2808, %v2811
        %2813 = vset.pattern.permute.xlu0 0
        %2814 = vperm.xlu0 %2813, %v2363
        %v2815 = vpop.permute.xlu0 %2814
        %v2816 = vlaneseq
        %v2817 = vshrl.u32 %v2816, 7
        %v2818 = vsub.s32 0, %v2817
        %v2819 = vrot.slane %v2815, %v2818
        %2820 = vset.pattern.permute.xlu0 0
        %2821 = vperm.xlu0 %2820, %v2364
        %v2822 = vpop.permute.xlu0 %2821
        %v2823 = vlaneseq
        %v2824 = vshrl.u32 %v2823, 7
        %v2825 = vsub.s32 0, %v2824
        %v2826 = vrot.slane %v2822, %v2825
        %2827 = vset.pattern.permute.xlu0 0
        %2828 = vperm.xlu0 %2827, %v2365
        %v2829 = vpop.permute.xlu0 %2828
        %v2830 = vlaneseq
        %v2831 = vshrl.u32 %v2830, 7
        %v2832 = vsub.s32 0, %v2831
        %v2833 = vrot.slane %v2829, %v2832
        %2834 = vset.pattern.permute.xlu0 0
        %2835 = vperm.xlu0 %2834, %v2366
        %v2836 = vpop.permute.xlu0 %2835
        %v2837 = vlaneseq
        %v2838 = vshrl.u32 %v2837, 7
        %v2839 = vsub.s32 0, %v2838
        %v2840 = vrot.slane %v2836, %v2839
        %2841 = vset.pattern.permute.xlu0 0
        %2842 = vperm.xlu0 %2841, %v2367
        %v2843 = vpop.permute.xlu0 %2842
        %v2844 = vlaneseq
        %v2845 = vshrl.u32 %v2844, 7
        %v2846 = vsub.s32 0, %v2845
        %v2847 = vrot.slane %v2843, %v2846
        %2848 = vset.pattern.permute.xlu0 0
        %2849 = vperm.xlu0 %2848, %v2368
        %v2850 = vpop.permute.xlu0 %2849
        %v2851 = vlaneseq
        %v2852 = vshrl.u32 %v2851, 7
        %v2853 = vsub.s32 0, %v2852
        %v2854 = vrot.slane %v2850, %v2853
        %2855 = vset.pattern.permute.xlu0 0
        %2856 = vperm.xlu0 %2855, %v2369
        %v2857 = vpop.permute.xlu0 %2856
        %v2858 = vlaneseq
        %v2859 = vshrl.u32 %v2858, 7
        %v2860 = vsub.s32 0, %v2859
        %v2861 = vrot.slane %v2857, %v2860
        %2862 = vset.pattern.permute.xlu0 0
        %2863 = vperm.xlu0 %2862, %v2370
        %v2864 = vpop.permute.xlu0 %2863
        %v2865 = vlaneseq
        %v2866 = vshrl.u32 %v2865, 7
        %v2867 = vsub.s32 0, %v2866
        %v2868 = vrot.slane %v2864, %v2867
        %2869 = vset.pattern.permute.xlu0 0
        %2870 = vperm.xlu0 %2869, %v2371
        %v2871 = vpop.permute.xlu0 %2870
        %v2872 = vlaneseq
        %v2873 = vshrl.u32 %v2872, 7
        %v2874 = vsub.s32 0, %v2873
        %v2875 = vrot.slane %v2871, %v2874
        %vm2876 = vcmp.eq.s32.totalorder %v253, %v2378
        %vm2877 = vcmp.eq.s32.totalorder %v253, %v2385
        %vm2878 = vcmp.eq.s32.totalorder %v253, %v2392
        %vm2879 = vcmp.eq.s32.totalorder %v253, %v2399
        %vm2880 = vcmp.eq.s32.totalorder %v253, %v2406
        %vm2881 = vcmp.eq.s32.totalorder %v253, %v2413
        %vm2882 = vcmp.eq.s32.totalorder %v253, %v2420
        %vm2883 = vcmp.eq.s32.totalorder %v253, %v2427
        %vm2884 = vcmp.eq.s32.totalorder %v253, %v2434
        %vm2885 = vcmp.eq.s32.totalorder %v253, %v2441
        %vm2886 = vcmp.eq.s32.totalorder %v253, %v2448
        %vm2887 = vcmp.eq.s32.totalorder %v253, %v2455
        %vm2888 = vcmp.eq.s32.totalorder %v253, %v2462
        %vm2889 = vcmp.eq.s32.totalorder %v253, %v2469
        %vm2890 = vcmp.eq.s32.totalorder %v253, %v2476
        %vm2891 = vcmp.eq.s32.totalorder %v253, %v2483
        %vm2892 = vcmp.eq.s32.totalorder %v253, %v2490
        %vm2893 = vcmp.eq.s32.totalorder %v253, %v2497
        %vm2894 = vcmp.eq.s32.totalorder %v253, %v2504
        %vm2895 = vcmp.eq.s32.totalorder %v253, %v2511
        %vm2896 = vcmp.eq.s32.totalorder %v253, %v2518
        %vm2897 = vcmp.eq.s32.totalorder %v253, %v2525
        %vm2898 = vcmp.eq.s32.totalorder %v253, %v2532
        %vm2899 = vcmp.eq.s32.totalorder %v253, %v2539
        %vm2900 = vcmp.eq.s32.totalorder %v253, %v2546
        %vm2901 = vcmp.eq.s32.totalorder %v253, %v2553
        %vm2902 = vcmp.eq.s32.totalorder %v253, %v2560
        %vm2903 = vcmp.eq.s32.totalorder %v253, %v2567
        %vm2904 = vcmp.eq.s32.totalorder %v253, %v2574
        %vm2905 = vcmp.eq.s32.totalorder %v253, %v2581
        %vm2906 = vcmp.eq.s32.totalorder %v253, %v2588
        %vm2907 = vcmp.eq.s32.totalorder %v253, %v2595
        %vm2908 = vcmp.eq.s32.totalorder %v253, %v2602
        %vm2909 = vcmp.eq.s32.totalorder %v253, %v2609
        %vm2910 = vcmp.eq.s32.totalorder %v253, %v2616
        %vm2911 = vcmp.eq.s32.totalorder %v253, %v2623
        %vm2912 = vcmp.eq.s32.totalorder %v253, %v2630
        %vm2913 = vcmp.eq.s32.totalorder %v253, %v2637
        %vm2914 = vcmp.eq.s32.totalorder %v253, %v2644
        %vm2915 = vcmp.eq.s32.totalorder %v253, %v2651
        %vm2916 = vcmp.eq.s32.totalorder %v253, %v2658
        %vm2917 = vcmp.eq.s32.totalorder %v253, %v2665
        %vm2918 = vcmp.eq.s32.totalorder %v253, %v2672
        %vm2919 = vcmp.eq.s32.totalorder %v253, %v2679
        %vm2920 = vcmp.eq.s32.totalorder %v253, %v2686
        %vm2921 = vcmp.eq.s32.totalorder %v253, %v2693
        %vm2922 = vcmp.eq.s32.totalorder %v253, %v2700
        %vm2923 = vcmp.eq.s32.totalorder %v253, %v2707
        %vm2924 = vcmp.eq.s32.totalorder %v253, %v2714
        %vm2925 = vcmp.eq.s32.totalorder %v253, %v2721
        %vm2926 = vcmp.eq.s32.totalorder %v253, %v2728
        %vm2927 = vcmp.eq.s32.totalorder %v253, %v2735
        %vm2928 = vcmp.eq.s32.totalorder %v253, %v2742
        %vm2929 = vcmp.eq.s32.totalorder %v253, %v2749
        %vm2930 = vcmp.eq.s32.totalorder %v253, %v2756
        %vm2931 = vcmp.eq.s32.totalorder %v253, %v2763
        %vm2932 = vcmp.eq.s32.totalorder %v253, %v2770
        %vm2933 = vcmp.eq.s32.totalorder %v253, %v2777
        %vm2934 = vcmp.eq.s32.totalorder %v253, %v2784
        %vm2935 = vcmp.eq.s32.totalorder %v253, %v2791
        %vm2936 = vcmp.eq.s32.totalorder %v253, %v2798
        %vm2937 = vcmp.eq.s32.totalorder %v253, %v2805
        %vm2938 = vcmp.eq.s32.totalorder %v253, %v2812
        %vm2939 = vcmp.eq.s32.totalorder %v253, %v2819
        %vm2940 = vcmp.eq.s32.totalorder %v253, %v2826
        %vm2941 = vcmp.eq.s32.totalorder %v253, %v2833
        %vm2942 = vcmp.eq.s32.totalorder %v253, %v2840
        %vm2943 = vcmp.eq.s32.totalorder %v253, %v2847
        %vm2944 = vcmp.eq.s32.totalorder %v253, %v2854
        %vm2945 = vcmp.eq.s32.totalorder %v253, %v2861
        %vm2946 = vcmp.eq.s32.totalorder %v253, %v2868
        %vm2947 = vcmp.eq.s32.totalorder %v253, %v2875
        %vm2948 = vmor %vm2074, %vm2876
        %vm2949 = vmor %vm2075, %vm2877
        %vm2950 = vmor %vm2076, %vm2878
        %vm2951 = vmor %vm2077, %vm2879
        %vm2952 = vmor %vm2078, %vm2880
        %vm2953 = vmor %vm2079, %vm2881
        %vm2954 = vmor %vm2080, %vm2882
        %vm2955 = vmor %vm2081, %vm2883
        %vm2956 = vmor %vm2082, %vm2884
        %vm2957 = vmor %vm2083, %vm2885
        %vm2958 = vmor %vm2084, %vm2886
        %vm2959 = vmor %vm2085, %vm2887
        %vm2960 = vmor %vm2086, %vm2888
        %vm2961 = vmor %vm2087, %vm2889
        %vm2962 = vmor %vm2088, %vm2890
        %vm2963 = vmor %vm2089, %vm2891
        %vm2964 = vmor %vm2090, %vm2892
        %vm2965 = vmor %vm2091, %vm2893
        %vm2966 = vmor %vm2092, %vm2894
        %vm2967 = vmor %vm2093, %vm2895
        %vm2968 = vmor %vm2094, %vm2896
        %vm2969 = vmor %vm2095, %vm2897
        %vm2970 = vmor %vm2096, %vm2898
        %vm2971 = vmor %vm2097, %vm2899
        %vm2972 = vmor %vm2098, %vm2900
        %vm2973 = vmor %vm2099, %vm2901
        %vm2974 = vmor %vm2100, %vm2902
        %vm2975 = vmor %vm2101, %vm2903
        %vm2976 = vmor %vm2102, %vm2904
        %vm2977 = vmor %vm2103, %vm2905
        %vm2978 = vmor %vm2104, %vm2906
        %vm2979 = vmor %vm2105, %vm2907
        %vm2980 = vmor %vm2106, %vm2908
        %vm2981 = vmor %vm2107, %vm2909
        %vm2982 = vmor %vm2108, %vm2910
        %vm2983 = vmor %vm2109, %vm2911
        %vm2984 = vmor %vm2110, %vm2912
        %vm2985 = vmor %vm2111, %vm2913
        %vm2986 = vmor %vm2112, %vm2914
        %vm2987 = vmor %vm2113, %vm2915
        %vm2988 = vmor %vm2114, %vm2916
        %vm2989 = vmor %vm2115, %vm2917
        %vm2990 = vmor %vm2116, %vm2918
        %vm2991 = vmor %vm2117, %vm2919
        %vm2992 = vmor %vm2118, %vm2920
        %vm2993 = vmor %vm2119, %vm2921
        %vm2994 = vmor %vm2120, %vm2922
        %vm2995 = vmor %vm2121, %vm2923
        %vm2996 = vmor %vm2122, %vm2924
        %vm2997 = vmor %vm2123, %vm2925
        %vm2998 = vmor %vm2124, %vm2926
        %vm2999 = vmor %vm2125, %vm2927
        %vm3000 = vmor %vm2126, %vm2928
        %vm3001 = vmor %vm2127, %vm2929
        %vm3002 = vmor %vm2128, %vm2930
        %vm3003 = vmor %vm2129, %vm2931
        %vm3004 = vmor %vm2130, %vm2932
        %vm3005 = vmor %vm2131, %vm2933
        %vm3006 = vmor %vm2132, %vm2934
        %vm3007 = vmor %vm2133, %vm2935
        %vm3008 = vmor %vm2134, %vm2936
        %vm3009 = vmor %vm2135, %vm2937
        %vm3010 = vmor %vm2136, %vm2938
        %vm3011 = vmor %vm2137, %vm2939
        %vm3012 = vmor %vm2138, %vm2940
        %vm3013 = vmor %vm2139, %vm2941
        %vm3014 = vmor %vm2140, %vm2942
        %vm3015 = vmor %vm2141, %vm2943
        %vm3016 = vmor %vm2142, %vm2944
        %vm3017 = vmor %vm2143, %vm2945
        %vm3018 = vmor %vm2144, %vm2946
        %vm3019 = vmor %vm2145, %vm2947
        %v3021 = vunpack.c.l.s4 1966171168
        %v3022 = vunpack.c.0.s8 %v3021
        %v3023 = vlaneseq
        %v3024 = vshrl.u32 %v3023, 7
        %v3025 = vsub.s32 %v3022, %v3024
        %v3026 = vrot.slane %v243, %v3025
        %v3028 = vunpack.c.l.s4 1966171168
        %v3029 = vunpack.c.0.s8 %v3028
        %v3030 = vlaneseq
        %v3031 = vshrl.u32 %v3030, 7
        %v3032 = vsub.s32 %v3029, %v3031
        %v3033 = vrot.slane %v3026, %v3032
        %v3035 = vunpack.c.l.s4 1966171168
        %v3036 = vunpack.c.0.s8 %v3035
        %v3037 = vlaneseq
        %v3038 = vshrl.u32 %v3037, 7
        %v3039 = vsub.s32 %v3036, %v3038
        %v3040 = vrot.slane %v247, %v3039
        %v3042 = vunpack.c.l.s4 1966171168
        %v3043 = vunpack.c.0.s8 %v3042
        %v3044 = vlaneseq
        %v3045 = vshrl.u32 %v3044, 7
        %v3046 = vsub.s32 %v3043, %v3045
        %v3047 = vrot.slane %v3040, %v3046
        %v3049 = vunpack.c.l.s4 1966171168
        %v3050 = vunpack.c.0.s8 %v3049
        %v3051 = vlaneseq
        %v3052 = vshrl.u32 %v3051, 7
        %v3053 = vsub.s32 %v3050, %v3052
        %v3054 = vrot.slane %v251, %v3053
        %v3056 = vunpack.c.l.s4 1966171168
        %v3057 = vunpack.c.0.s8 %v3056
        %v3058 = vlaneseq
        %v3059 = vshrl.u32 %v3058, 7
        %v3060 = vsub.s32 %v3057, %v3059
        %v3061 = vrot.slane %v3054, %v3060
        %v3062 = vadd.s32 %v291, 18
        %v3063 = vadd.s32 %v299, 18
        %v3064 = vadd.s32 %v301, 18
        %v3065 = vadd.s32 %v284, 18
        %v3066 = vadd.s32 %v298, 18
        %v3067 = vadd.s32 %v300, 18
        %v3068 = vadd.s32 %v302, 18
        %v3069 = vadd.s32 %v326, 18
        %v3070 = vadd.s32 %v340, 18
        %v3071 = vadd.s32 %v348, 18
        %v3072 = vadd.s32 %v350, 18
        %v3073 = vadd.s32 %v333, 18
        %v3074 = vadd.s32 %v347, 18
        %v3075 = vadd.s32 %v349, 18
        %v3076 = vadd.s32 %v351, 18
        %v3077 = vadd.s32 %v375, 18
        %v3078 = vadd.s32 %v389, 18
        %v3079 = vadd.s32 %v397, 18
        %v3080 = vadd.s32 %v399, 18
        %v3081 = vadd.s32 %v382, 18
        %v3082 = vadd.s32 %v396, 18
        %v3083 = vadd.s32 %v398, 18
        %v3084 = vadd.s32 %v400, 18
        %v3085 = vadd.s32 %v3033, 18
        %v3086 = vadd.s32 %v438, 18
        %v3087 = vadd.s32 %v446, 18
        %v3088 = vadd.s32 %v448, 18
        %v3089 = vadd.s32 %v431, 18
        %v3090 = vadd.s32 %v445, 18
        %v3091 = vadd.s32 %v447, 18
        %v3092 = vadd.s32 %v449, 18
        %v3093 = vadd.s32 %v473, 18
        %v3094 = vadd.s32 %v487, 18
        %v3095 = vadd.s32 %v495, 18
        %v3096 = vadd.s32 %v497, 18
        %v3097 = vadd.s32 %v480, 18
        %v3098 = vadd.s32 %v494, 18
        %v3099 = vadd.s32 %v496, 18
        %v3100 = vadd.s32 %v498, 18
        %v3101 = vadd.s32 %v522, 18
        %v3102 = vadd.s32 %v536, 18
        %v3103 = vadd.s32 %v544, 18
        %v3104 = vadd.s32 %v546, 18
        %v3105 = vadd.s32 %v529, 18
        %v3106 = vadd.s32 %v543, 18
        %v3107 = vadd.s32 %v545, 18
        %v3108 = vadd.s32 %v547, 18
        %v3109 = vadd.s32 %v3047, 18
        %v3110 = vadd.s32 %v585, 18
        %v3111 = vadd.s32 %v593, 18
        %v3112 = vadd.s32 %v595, 18
        %v3113 = vadd.s32 %v578, 18
        %v3114 = vadd.s32 %v592, 18
        %v3115 = vadd.s32 %v594, 18
        %v3116 = vadd.s32 %v596, 18
        %v3117 = vadd.s32 %v620, 18
        %v3118 = vadd.s32 %v634, 18
        %v3119 = vadd.s32 %v642, 18
        %v3120 = vadd.s32 %v644, 18
        %v3121 = vadd.s32 %v627, 18
        %v3122 = vadd.s32 %v641, 18
        %v3123 = vadd.s32 %v643, 18
        %v3124 = vadd.s32 %v645, 18
        %v3125 = vadd.s32 %v669, 18
        %v3126 = vadd.s32 %v683, 18
        %v3127 = vadd.s32 %v691, 18
        %v3128 = vadd.s32 %v693, 18
        %v3129 = vadd.s32 %v676, 18
        %v3130 = vadd.s32 %v690, 18
        %v3131 = vadd.s32 %v692, 18
        %v3132 = vadd.s32 %v694, 18
        %v3133 = vadd.s32 %v3061, 18
        %3134 = vset.pattern.permute.xlu0 0
        %3135 = vperm.xlu0 %3134, %v3062
        %v3136 = vpop.permute.xlu0 %3135
        %v3137 = vlaneseq
        %v3138 = vshrl.u32 %v3137, 7
        %v3139 = vsub.s32 0, %v3138
        %v3140 = vrot.slane %v3136, %v3139
        %3141 = vset.pattern.permute.xlu0 0
        %3142 = vperm.xlu0 %3141, %v3063
        %v3143 = vpop.permute.xlu0 %3142
        %v3144 = vlaneseq
        %v3145 = vshrl.u32 %v3144, 7
        %v3146 = vsub.s32 0, %v3145
        %v3147 = vrot.slane %v3143, %v3146
        %3148 = vset.pattern.permute.xlu0 0
        %3149 = vperm.xlu0 %3148, %v3064
        %v3150 = vpop.permute.xlu0 %3149
        %v3151 = vlaneseq
        %v3152 = vshrl.u32 %v3151, 7
        %v3153 = vsub.s32 0, %v3152
        %v3154 = vrot.slane %v3150, %v3153
        %3155 = vset.pattern.permute.xlu0 0
        %3156 = vperm.xlu0 %3155, %v3065
        %v3157 = vpop.permute.xlu0 %3156
        %v3158 = vlaneseq
        %v3159 = vshrl.u32 %v3158, 7
        %v3160 = vsub.s32 0, %v3159
        %v3161 = vrot.slane %v3157, %v3160
        %3162 = vset.pattern.permute.xlu0 0
        %3163 = vperm.xlu0 %3162, %v3066
        %v3164 = vpop.permute.xlu0 %3163
        %v3165 = vlaneseq
        %v3166 = vshrl.u32 %v3165, 7
        %v3167 = vsub.s32 0, %v3166
        %v3168 = vrot.slane %v3164, %v3167
        %3169 = vset.pattern.permute.xlu0 0
        %3170 = vperm.xlu0 %3169, %v3067
        %v3171 = vpop.permute.xlu0 %3170
        %v3172 = vlaneseq
        %v3173 = vshrl.u32 %v3172, 7
        %v3174 = vsub.s32 0, %v3173
        %v3175 = vrot.slane %v3171, %v3174
        %3176 = vset.pattern.permute.xlu0 0
        %3177 = vperm.xlu0 %3176, %v3068
        %v3178 = vpop.permute.xlu0 %3177
        %v3179 = vlaneseq
        %v3180 = vshrl.u32 %v3179, 7
        %v3181 = vsub.s32 0, %v3180
        %v3182 = vrot.slane %v3178, %v3181
        %3183 = vset.pattern.permute.xlu0 0
        %3184 = vperm.xlu0 %3183, %v3069
        %v3185 = vpop.permute.xlu0 %3184
        %v3186 = vlaneseq
        %v3187 = vshrl.u32 %v3186, 7
        %v3188 = vsub.s32 0, %v3187
        %v3189 = vrot.slane %v3185, %v3188
        %3190 = vset.pattern.permute.xlu0 0
        %3191 = vperm.xlu0 %3190, %v3070
        %v3192 = vpop.permute.xlu0 %3191
        %v3193 = vlaneseq
        %v3194 = vshrl.u32 %v3193, 7
        %v3195 = vsub.s32 0, %v3194
        %v3196 = vrot.slane %v3192, %v3195
        %3197 = vset.pattern.permute.xlu0 0
        %3198 = vperm.xlu0 %3197, %v3071
        %v3199 = vpop.permute.xlu0 %3198
        %v3200 = vlaneseq
        %v3201 = vshrl.u32 %v3200, 7
        %v3202 = vsub.s32 0, %v3201
        %v3203 = vrot.slane %v3199, %v3202
        %3204 = vset.pattern.permute.xlu0 0
        %3205 = vperm.xlu0 %3204, %v3072
        %v3206 = vpop.permute.xlu0 %3205
        %v3207 = vlaneseq
        %v3208 = vshrl.u32 %v3207, 7
        %v3209 = vsub.s32 0, %v3208
        %v3210 = vrot.slane %v3206, %v3209
        %3211 = vset.pattern.permute.xlu0 0
        %3212 = vperm.xlu0 %3211, %v3073
        %v3213 = vpop.permute.xlu0 %3212
        %v3214 = vlaneseq
        %v3215 = vshrl.u32 %v3214, 7
        %v3216 = vsub.s32 0, %v3215
        %v3217 = vrot.slane %v3213, %v3216
        %3218 = vset.pattern.permute.xlu0 0
        %3219 = vperm.xlu0 %3218, %v3074
        %v3220 = vpop.permute.xlu0 %3219
        %v3221 = vlaneseq
        %v3222 = vshrl.u32 %v3221, 7
        %v3223 = vsub.s32 0, %v3222
        %v3224 = vrot.slane %v3220, %v3223
        %3225 = vset.pattern.permute.xlu0 0
        %3226 = vperm.xlu0 %3225, %v3075
        %v3227 = vpop.permute.xlu0 %3226
        %v3228 = vlaneseq
        %v3229 = vshrl.u32 %v3228, 7
        %v3230 = vsub.s32 0, %v3229
        %v3231 = vrot.slane %v3227, %v3230
        %3232 = vset.pattern.permute.xlu0 0
        %3233 = vperm.xlu0 %3232, %v3076
        %v3234 = vpop.permute.xlu0 %3233
        %v3235 = vlaneseq
        %v3236 = vshrl.u32 %v3235, 7
        %v3237 = vsub.s32 0, %v3236
        %v3238 = vrot.slane %v3234, %v3237
        %3239 = vset.pattern.permute.xlu0 0
        %3240 = vperm.xlu0 %3239, %v3077
        %v3241 = vpop.permute.xlu0 %3240
        %v3242 = vlaneseq
        %v3243 = vshrl.u32 %v3242, 7
        %v3244 = vsub.s32 0, %v3243
        %v3245 = vrot.slane %v3241, %v3244
        %3246 = vset.pattern.permute.xlu0 0
        %3247 = vperm.xlu0 %3246, %v3078
        %v3248 = vpop.permute.xlu0 %3247
        %v3249 = vlaneseq
        %v3250 = vshrl.u32 %v3249, 7
        %v3251 = vsub.s32 0, %v3250
        %v3252 = vrot.slane %v3248, %v3251
        %3253 = vset.pattern.permute.xlu0 0
        %3254 = vperm.xlu0 %3253, %v3079
        %v3255 = vpop.permute.xlu0 %3254
        %v3256 = vlaneseq
        %v3257 = vshrl.u32 %v3256, 7
        %v3258 = vsub.s32 0, %v3257
        %v3259 = vrot.slane %v3255, %v3258
        %3260 = vset.pattern.permute.xlu0 0
        %3261 = vperm.xlu0 %3260, %v3080
        %v3262 = vpop.permute.xlu0 %3261
        %v3263 = vlaneseq
        %v3264 = vshrl.u32 %v3263, 7
        %v3265 = vsub.s32 0, %v3264
        %v3266 = vrot.slane %v3262, %v3265
        %3267 = vset.pattern.permute.xlu0 0
        %3268 = vperm.xlu0 %3267, %v3081
        %v3269 = vpop.permute.xlu0 %3268
        %v3270 = vlaneseq
        %v3271 = vshrl.u32 %v3270, 7
        %v3272 = vsub.s32 0, %v3271
        %v3273 = vrot.slane %v3269, %v3272
        %3274 = vset.pattern.permute.xlu0 0
        %3275 = vperm.xlu0 %3274, %v3082
        %v3276 = vpop.permute.xlu0 %3275
        %v3277 = vlaneseq
        %v3278 = vshrl.u32 %v3277, 7
        %v3279 = vsub.s32 0, %v3278
        %v3280 = vrot.slane %v3276, %v3279
        %3281 = vset.pattern.permute.xlu0 0
        %3282 = vperm.xlu0 %3281, %v3083
        %v3283 = vpop.permute.xlu0 %3282
        %v3284 = vlaneseq
        %v3285 = vshrl.u32 %v3284, 7
        %v3286 = vsub.s32 0, %v3285
        %v3287 = vrot.slane %v3283, %v3286
        %3288 = vset.pattern.permute.xlu0 0
        %3289 = vperm.xlu0 %3288, %v3084
        %v3290 = vpop.permute.xlu0 %3289
        %v3291 = vlaneseq
        %v3292 = vshrl.u32 %v3291, 7
        %v3293 = vsub.s32 0, %v3292
        %v3294 = vrot.slane %v3290, %v3293
        %3295 = vset.pattern.permute.xlu0 0
        %3296 = vperm.xlu0 %3295, %v3085
        %v3297 = vpop.permute.xlu0 %3296
        %v3298 = vlaneseq
        %v3299 = vshrl.u32 %v3298, 7
        %v3300 = vsub.s32 0, %v3299
        %v3301 = vrot.slane %v3297, %v3300
        %3302 = vset.pattern.permute.xlu0 0
        %3303 = vperm.xlu0 %3302, %v3086
        %v3304 = vpop.permute.xlu0 %3303
        %v3305 = vlaneseq
        %v3306 = vshrl.u32 %v3305, 7
        %v3307 = vsub.s32 0, %v3306
        %v3308 = vrot.slane %v3304, %v3307
        %3309 = vset.pattern.permute.xlu0 0
        %3310 = vperm.xlu0 %3309, %v3087
        %v3311 = vpop.permute.xlu0 %3310
        %v3312 = vlaneseq
        %v3313 = vshrl.u32 %v3312, 7
        %v3314 = vsub.s32 0, %v3313
        %v3315 = vrot.slane %v3311, %v3314
        %3316 = vset.pattern.permute.xlu0 0
        %3317 = vperm.xlu0 %3316, %v3088
        %v3318 = vpop.permute.xlu0 %3317
        %v3319 = vlaneseq
        %v3320 = vshrl.u32 %v3319, 7
        %v3321 = vsub.s32 0, %v3320
        %v3322 = vrot.slane %v3318, %v3321
        %3323 = vset.pattern.permute.xlu0 0
        %3324 = vperm.xlu0 %3323, %v3089
        %v3325 = vpop.permute.xlu0 %3324
        %v3326 = vlaneseq
        %v3327 = vshrl.u32 %v3326, 7
        %v3328 = vsub.s32 0, %v3327
        %v3329 = vrot.slane %v3325, %v3328
        %3330 = vset.pattern.permute.xlu0 0
        %3331 = vperm.xlu0 %3330, %v3090
        %v3332 = vpop.permute.xlu0 %3331
        %v3333 = vlaneseq
        %v3334 = vshrl.u32 %v3333, 7
        %v3335 = vsub.s32 0, %v3334
        %v3336 = vrot.slane %v3332, %v3335
        %3337 = vset.pattern.permute.xlu0 0
        %3338 = vperm.xlu0 %3337, %v3091
        %v3339 = vpop.permute.xlu0 %3338
        %v3340 = vlaneseq
        %v3341 = vshrl.u32 %v3340, 7
        %v3342 = vsub.s32 0, %v3341
        %v3343 = vrot.slane %v3339, %v3342
        %3344 = vset.pattern.permute.xlu0 0
        %3345 = vperm.xlu0 %3344, %v3092
        %v3346 = vpop.permute.xlu0 %3345
        %v3347 = vlaneseq
        %v3348 = vshrl.u32 %v3347, 7
        %v3349 = vsub.s32 0, %v3348
        %v3350 = vrot.slane %v3346, %v3349
        %3351 = vset.pattern.permute.xlu0 0
        %3352 = vperm.xlu0 %3351, %v3093
        %v3353 = vpop.permute.xlu0 %3352
        %v3354 = vlaneseq
        %v3355 = vshrl.u32 %v3354, 7
        %v3356 = vsub.s32 0, %v3355
        %v3357 = vrot.slane %v3353, %v3356
        %3358 = vset.pattern.permute.xlu0 0
        %3359 = vperm.xlu0 %3358, %v3094
        %v3360 = vpop.permute.xlu0 %3359
        %v3361 = vlaneseq
        %v3362 = vshrl.u32 %v3361, 7
        %v3363 = vsub.s32 0, %v3362
        %v3364 = vrot.slane %v3360, %v3363
        %3365 = vset.pattern.permute.xlu0 0
        %3366 = vperm.xlu0 %3365, %v3095
        %v3367 = vpop.permute.xlu0 %3366
        %v3368 = vlaneseq
        %v3369 = vshrl.u32 %v3368, 7
        %v3370 = vsub.s32 0, %v3369
        %v3371 = vrot.slane %v3367, %v3370
        %3372 = vset.pattern.permute.xlu0 0
        %3373 = vperm.xlu0 %3372, %v3096
        %v3374 = vpop.permute.xlu0 %3373
        %v3375 = vlaneseq
        %v3376 = vshrl.u32 %v3375, 7
        %v3377 = vsub.s32 0, %v3376
        %v3378 = vrot.slane %v3374, %v3377
        %3379 = vset.pattern.permute.xlu0 0
        %3380 = vperm.xlu0 %3379, %v3097
        %v3381 = vpop.permute.xlu0 %3380
        %v3382 = vlaneseq
        %v3383 = vshrl.u32 %v3382, 7
        %v3384 = vsub.s32 0, %v3383
        %v3385 = vrot.slane %v3381, %v3384
        %3386 = vset.pattern.permute.xlu0 0
        %3387 = vperm.xlu0 %3386, %v3098
        %v3388 = vpop.permute.xlu0 %3387
        %v3389 = vlaneseq
        %v3390 = vshrl.u32 %v3389, 7
        %v3391 = vsub.s32 0, %v3390
        %v3392 = vrot.slane %v3388, %v3391
        %3393 = vset.pattern.permute.xlu0 0
        %3394 = vperm.xlu0 %3393, %v3099
        %v3395 = vpop.permute.xlu0 %3394
        %v3396 = vlaneseq
        %v3397 = vshrl.u32 %v3396, 7
        %v3398 = vsub.s32 0, %v3397
        %v3399 = vrot.slane %v3395, %v3398
        %3400 = vset.pattern.permute.xlu0 0
        %3401 = vperm.xlu0 %3400, %v3100
        %v3402 = vpop.permute.xlu0 %3401
        %v3403 = vlaneseq
        %v3404 = vshrl.u32 %v3403, 7
        %v3405 = vsub.s32 0, %v3404
        %v3406 = vrot.slane %v3402, %v3405
        %3407 = vset.pattern.permute.xlu0 0
        %3408 = vperm.xlu0 %3407, %v3101
        %v3409 = vpop.permute.xlu0 %3408
        %v3410 = vlaneseq
        %v3411 = vshrl.u32 %v3410, 7
        %v3412 = vsub.s32 0, %v3411
        %v3413 = vrot.slane %v3409, %v3412
        %3414 = vset.pattern.permute.xlu0 0
        %3415 = vperm.xlu0 %3414, %v3102
        %v3416 = vpop.permute.xlu0 %3415
        %v3417 = vlaneseq
        %v3418 = vshrl.u32 %v3417, 7
        %v3419 = vsub.s32 0, %v3418
        %v3420 = vrot.slane %v3416, %v3419
        %3421 = vset.pattern.permute.xlu0 0
        %3422 = vperm.xlu0 %3421, %v3103
        %v3423 = vpop.permute.xlu0 %3422
        %v3424 = vlaneseq
        %v3425 = vshrl.u32 %v3424, 7
        %v3426 = vsub.s32 0, %v3425
        %v3427 = vrot.slane %v3423, %v3426
        %3428 = vset.pattern.permute.xlu0 0
        %3429 = vperm.xlu0 %3428, %v3104
        %v3430 = vpop.permute.xlu0 %3429
        %v3431 = vlaneseq
        %v3432 = vshrl.u32 %v3431, 7
        %v3433 = vsub.s32 0, %v3432
        %v3434 = vrot.slane %v3430, %v3433
        %3435 = vset.pattern.permute.xlu0 0
        %3436 = vperm.xlu0 %3435, %v3105
        %v3437 = vpop.permute.xlu0 %3436
        %v3438 = vlaneseq
        %v3439 = vshrl.u32 %v3438, 7
        %v3440 = vsub.s32 0, %v3439
        %v3441 = vrot.slane %v3437, %v3440
        %3442 = vset.pattern.permute.xlu0 0
        %3443 = vperm.xlu0 %3442, %v3106
        %v3444 = vpop.permute.xlu0 %3443
        %v3445 = vlaneseq
        %v3446 = vshrl.u32 %v3445, 7
        %v3447 = vsub.s32 0, %v3446
        %v3448 = vrot.slane %v3444, %v3447
        %3449 = vset.pattern.permute.xlu0 0
        %3450 = vperm.xlu0 %3449, %v3107
        %v3451 = vpop.permute.xlu0 %3450
        %v3452 = vlaneseq
        %v3453 = vshrl.u32 %v3452, 7
        %v3454 = vsub.s32 0, %v3453
        %v3455 = vrot.slane %v3451, %v3454
        %3456 = vset.pattern.permute.xlu0 0
        %3457 = vperm.xlu0 %3456, %v3108
        %v3458 = vpop.permute.xlu0 %3457
        %v3459 = vlaneseq
        %v3460 = vshrl.u32 %v3459, 7
        %v3461 = vsub.s32 0, %v3460
        %v3462 = vrot.slane %v3458, %v3461
        %3463 = vset.pattern.permute.xlu0 0
        %3464 = vperm.xlu0 %3463, %v3109
        %v3465 = vpop.permute.xlu0 %3464
        %v3466 = vlaneseq
        %v3467 = vshrl.u32 %v3466, 7
        %v3468 = vsub.s32 0, %v3467
        %v3469 = vrot.slane %v3465, %v3468
        %3470 = vset.pattern.permute.xlu0 0
        %3471 = vperm.xlu0 %3470, %v3110
        %v3472 = vpop.permute.xlu0 %3471
        %v3473 = vlaneseq
        %v3474 = vshrl.u32 %v3473, 7
        %v3475 = vsub.s32 0, %v3474
        %v3476 = vrot.slane %v3472, %v3475
        %3477 = vset.pattern.permute.xlu0 0
        %3478 = vperm.xlu0 %3477, %v3111
        %v3479 = vpop.permute.xlu0 %3478
        %v3480 = vlaneseq
        %v3481 = vshrl.u32 %v3480, 7
        %v3482 = vsub.s32 0, %v3481
        %v3483 = vrot.slane %v3479, %v3482
        %3484 = vset.pattern.permute.xlu0 0
        %3485 = vperm.xlu0 %3484, %v3112
        %v3486 = vpop.permute.xlu0 %3485
        %v3487 = vlaneseq
        %v3488 = vshrl.u32 %v3487, 7
        %v3489 = vsub.s32 0, %v3488
        %v3490 = vrot.slane %v3486, %v3489
        %3491 = vset.pattern.permute.xlu0 0
        %3492 = vperm.xlu0 %3491, %v3113
        %v3493 = vpop.permute.xlu0 %3492
        %v3494 = vlaneseq
        %v3495 = vshrl.u32 %v3494, 7
        %v3496 = vsub.s32 0, %v3495
        %v3497 = vrot.slane %v3493, %v3496
        %3498 = vset.pattern.permute.xlu0 0
        %3499 = vperm.xlu0 %3498, %v3114
        %v3500 = vpop.permute.xlu0 %3499
        %v3501 = vlaneseq
        %v3502 = vshrl.u32 %v3501, 7
        %v3503 = vsub.s32 0, %v3502
        %v3504 = vrot.slane %v3500, %v3503
        %3505 = vset.pattern.permute.xlu0 0
        %3506 = vperm.xlu0 %3505, %v3115
        %v3507 = vpop.permute.xlu0 %3506
        %v3508 = vlaneseq
        %v3509 = vshrl.u32 %v3508, 7
        %v3510 = vsub.s32 0, %v3509
        %v3511 = vrot.slane %v3507, %v3510
        %3512 = vset.pattern.permute.xlu0 0
        %3513 = vperm.xlu0 %3512, %v3116
        %v3514 = vpop.permute.xlu0 %3513
        %v3515 = vlaneseq
        %v3516 = vshrl.u32 %v3515, 7
        %v3517 = vsub.s32 0, %v3516
        %v3518 = vrot.slane %v3514, %v3517
        %3519 = vset.pattern.permute.xlu0 0
        %3520 = vperm.xlu0 %3519, %v3117
        %v3521 = vpop.permute.xlu0 %3520
        %v3522 = vlaneseq
        %v3523 = vshrl.u32 %v3522, 7
        %v3524 = vsub.s32 0, %v3523
        %v3525 = vrot.slane %v3521, %v3524
        %3526 = vset.pattern.permute.xlu0 0
        %3527 = vperm.xlu0 %3526, %v3118
        %v3528 = vpop.permute.xlu0 %3527
        %v3529 = vlaneseq
        %v3530 = vshrl.u32 %v3529, 7
        %v3531 = vsub.s32 0, %v3530
        %v3532 = vrot.slane %v3528, %v3531
        %3533 = vset.pattern.permute.xlu0 0
        %3534 = vperm.xlu0 %3533, %v3119
        %v3535 = vpop.permute.xlu0 %3534
        %v3536 = vlaneseq
        %v3537 = vshrl.u32 %v3536, 7
        %v3538 = vsub.s32 0, %v3537
        %v3539 = vrot.slane %v3535, %v3538
        %3540 = vset.pattern.permute.xlu0 0
        %3541 = vperm.xlu0 %3540, %v3120
        %v3542 = vpop.permute.xlu0 %3541
        %v3543 = vlaneseq
        %v3544 = vshrl.u32 %v3543, 7
        %v3545 = vsub.s32 0, %v3544
        %v3546 = vrot.slane %v3542, %v3545
        %3547 = vset.pattern.permute.xlu0 0
        %3548 = vperm.xlu0 %3547, %v3121
        %v3549 = vpop.permute.xlu0 %3548
        %v3550 = vlaneseq
        %v3551 = vshrl.u32 %v3550, 7
        %v3552 = vsub.s32 0, %v3551
        %v3553 = vrot.slane %v3549, %v3552
        %3554 = vset.pattern.permute.xlu0 0
        %3555 = vperm.xlu0 %3554, %v3122
        %v3556 = vpop.permute.xlu0 %3555
        %v3557 = vlaneseq
        %v3558 = vshrl.u32 %v3557, 7
        %v3559 = vsub.s32 0, %v3558
        %v3560 = vrot.slane %v3556, %v3559
        %3561 = vset.pattern.permute.xlu0 0
        %3562 = vperm.xlu0 %3561, %v3123
        %v3563 = vpop.permute.xlu0 %3562
        %v3564 = vlaneseq
        %v3565 = vshrl.u32 %v3564, 7
        %v3566 = vsub.s32 0, %v3565
        %v3567 = vrot.slane %v3563, %v3566
        %3568 = vset.pattern.permute.xlu0 0
        %3569 = vperm.xlu0 %3568, %v3124
        %v3570 = vpop.permute.xlu0 %3569
        %v3571 = vlaneseq
        %v3572 = vshrl.u32 %v3571, 7
        %v3573 = vsub.s32 0, %v3572
        %v3574 = vrot.slane %v3570, %v3573
        %3575 = vset.pattern.permute.xlu0 0
        %3576 = vperm.xlu0 %3575, %v3125
        %v3577 = vpop.permute.xlu0 %3576
        %v3578 = vlaneseq
        %v3579 = vshrl.u32 %v3578, 7
        %v3580 = vsub.s32 0, %v3579
        %v3581 = vrot.slane %v3577, %v3580
        %3582 = vset.pattern.permute.xlu0 0
        %3583 = vperm.xlu0 %3582, %v3126
        %v3584 = vpop.permute.xlu0 %3583
        %v3585 = vlaneseq
        %v3586 = vshrl.u32 %v3585, 7
        %v3587 = vsub.s32 0, %v3586
        %v3588 = vrot.slane %v3584, %v3587
        %3589 = vset.pattern.permute.xlu0 0
        %3590 = vperm.xlu0 %3589, %v3127
        %v3591 = vpop.permute.xlu0 %3590
        %v3592 = vlaneseq
        %v3593 = vshrl.u32 %v3592, 7
        %v3594 = vsub.s32 0, %v3593
        %v3595 = vrot.slane %v3591, %v3594
        %3596 = vset.pattern.permute.xlu0 0
        %3597 = vperm.xlu0 %3596, %v3128
        %v3598 = vpop.permute.xlu0 %3597
        %v3599 = vlaneseq
        %v3600 = vshrl.u32 %v3599, 7
        %v3601 = vsub.s32 0, %v3600
        %v3602 = vrot.slane %v3598, %v3601
        %3603 = vset.pattern.permute.xlu0 0
        %3604 = vperm.xlu0 %3603, %v3129
        %v3605 = vpop.permute.xlu0 %3604
        %v3606 = vlaneseq
        %v3607 = vshrl.u32 %v3606, 7
        %v3608 = vsub.s32 0, %v3607
        %v3609 = vrot.slane %v3605, %v3608
        %3610 = vset.pattern.permute.xlu0 0
        %3611 = vperm.xlu0 %3610, %v3130
        %v3612 = vpop.permute.xlu0 %3611
        %v3613 = vlaneseq
        %v3614 = vshrl.u32 %v3613, 7
        %v3615 = vsub.s32 0, %v3614
        %v3616 = vrot.slane %v3612, %v3615
        %3617 = vset.pattern.permute.xlu0 0
        %3618 = vperm.xlu0 %3617, %v3131
        %v3619 = vpop.permute.xlu0 %3618
        %v3620 = vlaneseq
        %v3621 = vshrl.u32 %v3620, 7
        %v3622 = vsub.s32 0, %v3621
        %v3623 = vrot.slane %v3619, %v3622
        %3624 = vset.pattern.permute.xlu0 0
        %3625 = vperm.xlu0 %3624, %v3132
        %v3626 = vpop.permute.xlu0 %3625
        %v3627 = vlaneseq
        %v3628 = vshrl.u32 %v3627, 7
        %v3629 = vsub.s32 0, %v3628
        %v3630 = vrot.slane %v3626, %v3629
        %3631 = vset.pattern.permute.xlu0 0
        %3632 = vperm.xlu0 %3631, %v3133
        %v3633 = vpop.permute.xlu0 %3632
        %v3634 = vlaneseq
        %v3635 = vshrl.u32 %v3634, 7
        %v3636 = vsub.s32 0, %v3635
        %v3637 = vrot.slane %v3633, %v3636
        %vm3638 = vcmp.eq.s32.totalorder %v253, %v3140
        %vm3639 = vcmp.eq.s32.totalorder %v253, %v3147
        %vm3640 = vcmp.eq.s32.totalorder %v253, %v3154
        %vm3641 = vcmp.eq.s32.totalorder %v253, %v3161
        %vm3642 = vcmp.eq.s32.totalorder %v253, %v3168
        %vm3643 = vcmp.eq.s32.totalorder %v253, %v3175
        %vm3644 = vcmp.eq.s32.totalorder %v253, %v3182
        %vm3645 = vcmp.eq.s32.totalorder %v253, %v3189
        %vm3646 = vcmp.eq.s32.totalorder %v253, %v3196
        %vm3647 = vcmp.eq.s32.totalorder %v253, %v3203
        %vm3648 = vcmp.eq.s32.totalorder %v253, %v3210
        %vm3649 = vcmp.eq.s32.totalorder %v253, %v3217
        %vm3650 = vcmp.eq.s32.totalorder %v253, %v3224
        %vm3651 = vcmp.eq.s32.totalorder %v253, %v3231
        %vm3652 = vcmp.eq.s32.totalorder %v253, %v3238
        %vm3653 = vcmp.eq.s32.totalorder %v253, %v3245
        %vm3654 = vcmp.eq.s32.totalorder %v253, %v3252
        %vm3655 = vcmp.eq.s32.totalorder %v253, %v3259
        %vm3656 = vcmp.eq.s32.totalorder %v253, %v3266
        %vm3657 = vcmp.eq.s32.totalorder %v253, %v3273
        %vm3658 = vcmp.eq.s32.totalorder %v253, %v3280
        %vm3659 = vcmp.eq.s32.totalorder %v253, %v3287
        %vm3660 = vcmp.eq.s32.totalorder %v253, %v3294
        %vm3661 = vcmp.eq.s32.totalorder %v253, %v3301
        %vm3662 = vcmp.eq.s32.totalorder %v253, %v3308
        %vm3663 = vcmp.eq.s32.totalorder %v253, %v3315
        %vm3664 = vcmp.eq.s32.totalorder %v253, %v3322
        %vm3665 = vcmp.eq.s32.totalorder %v253, %v3329
        %vm3666 = vcmp.eq.s32.totalorder %v253, %v3336
        %vm3667 = vcmp.eq.s32.totalorder %v253, %v3343
        %vm3668 = vcmp.eq.s32.totalorder %v253, %v3350
        %vm3669 = vcmp.eq.s32.totalorder %v253, %v3357
        %vm3670 = vcmp.eq.s32.totalorder %v253, %v3364
        %vm3671 = vcmp.eq.s32.totalorder %v253, %v3371
        %vm3672 = vcmp.eq.s32.totalorder %v253, %v3378
        %vm3673 = vcmp.eq.s32.totalorder %v253, %v3385
        %vm3674 = vcmp.eq.s32.totalorder %v253, %v3392
        %vm3675 = vcmp.eq.s32.totalorder %v253, %v3399
        %vm3676 = vcmp.eq.s32.totalorder %v253, %v3406
        %vm3677 = vcmp.eq.s32.totalorder %v253, %v3413
        %vm3678 = vcmp.eq.s32.totalorder %v253, %v3420
        %vm3679 = vcmp.eq.s32.totalorder %v253, %v3427
        %vm3680 = vcmp.eq.s32.totalorder %v253, %v3434
        %vm3681 = vcmp.eq.s32.totalorder %v253, %v3441
        %vm3682 = vcmp.eq.s32.totalorder %v253, %v3448
        %vm3683 = vcmp.eq.s32.totalorder %v253, %v3455
        %vm3684 = vcmp.eq.s32.totalorder %v253, %v3462
        %vm3685 = vcmp.eq.s32.totalorder %v253, %v3469
        %vm3686 = vcmp.eq.s32.totalorder %v253, %v3476
        %vm3687 = vcmp.eq.s32.totalorder %v253, %v3483
        %vm3688 = vcmp.eq.s32.totalorder %v253, %v3490
        %vm3689 = vcmp.eq.s32.totalorder %v253, %v3497
        %vm3690 = vcmp.eq.s32.totalorder %v253, %v3504
        %vm3691 = vcmp.eq.s32.totalorder %v253, %v3511
        %vm3692 = vcmp.eq.s32.totalorder %v253, %v3518
        %vm3693 = vcmp.eq.s32.totalorder %v253, %v3525
        %vm3694 = vcmp.eq.s32.totalorder %v253, %v3532
        %vm3695 = vcmp.eq.s32.totalorder %v253, %v3539
        %vm3696 = vcmp.eq.s32.totalorder %v253, %v3546
        %vm3697 = vcmp.eq.s32.totalorder %v253, %v3553
        %vm3698 = vcmp.eq.s32.totalorder %v253, %v3560
        %vm3699 = vcmp.eq.s32.totalorder %v253, %v3567
        %vm3700 = vcmp.eq.s32.totalorder %v253, %v3574
        %vm3701 = vcmp.eq.s32.totalorder %v253, %v3581
        %vm3702 = vcmp.eq.s32.totalorder %v253, %v3588
        %vm3703 = vcmp.eq.s32.totalorder %v253, %v3595
        %vm3704 = vcmp.eq.s32.totalorder %v253, %v3602
        %vm3705 = vcmp.eq.s32.totalorder %v253, %v3609
        %vm3706 = vcmp.eq.s32.totalorder %v253, %v3616
        %vm3707 = vcmp.eq.s32.totalorder %v253, %v3623
        %vm3708 = vcmp.eq.s32.totalorder %v253, %v3630
        %vm3709 = vcmp.eq.s32.totalorder %v253, %v3637
        %vm3710 = vmor %vm2948, %vm3638
        %vm3711 = vmor %vm2949, %vm3639
        %vm3712 = vmor %vm2950, %vm3640
        %vm3713 = vmor %vm2951, %vm3641
        %vm3714 = vmor %vm2952, %vm3642
        %vm3715 = vmor %vm2953, %vm3643
        %vm3716 = vmor %vm2954, %vm3644
        %vm3717 = vmor %vm2955, %vm3645
        %vm3718 = vmor %vm2956, %vm3646
        %vm3719 = vmor %vm2957, %vm3647
        %vm3720 = vmor %vm2958, %vm3648
        %vm3721 = vmor %vm2959, %vm3649
        %vm3722 = vmor %vm2960, %vm3650
        %vm3723 = vmor %vm2961, %vm3651
        %vm3724 = vmor %vm2962, %vm3652
        %vm3725 = vmor %vm2963, %vm3653
        %vm3726 = vmor %vm2964, %vm3654
        %vm3727 = vmor %vm2965, %vm3655
        %vm3728 = vmor %vm2966, %vm3656
        %vm3729 = vmor %vm2967, %vm3657
        %vm3730 = vmor %vm2968, %vm3658
        %vm3731 = vmor %vm2969, %vm3659
        %vm3732 = vmor %vm2970, %vm3660
        %vm3733 = vmor %vm2971, %vm3661
        %vm3734 = vmor %vm2972, %vm3662
        %vm3735 = vmor %vm2973, %vm3663
        %vm3736 = vmor %vm2974, %vm3664
        %vm3737 = vmor %vm2975, %vm3665
        %vm3738 = vmor %vm2976, %vm3666
        %vm3739 = vmor %vm2977, %vm3667
        %vm3740 = vmor %vm2978, %vm3668
        %vm3741 = vmor %vm2979, %vm3669
        %vm3742 = vmor %vm2980, %vm3670
        %vm3743 = vmor %vm2981, %vm3671
        %vm3744 = vmor %vm2982, %vm3672
        %vm3745 = vmor %vm2983, %vm3673
        %vm3746 = vmor %vm2984, %vm3674
        %vm3747 = vmor %vm2985, %vm3675
        %vm3748 = vmor %vm2986, %vm3676
        %vm3749 = vmor %vm2987, %vm3677
        %vm3750 = vmor %vm2988, %vm3678
        %vm3751 = vmor %vm2989, %vm3679
        %vm3752 = vmor %vm2990, %vm3680
        %vm3753 = vmor %vm2991, %vm3681
        %vm3754 = vmor %vm2992, %vm3682
        %vm3755 = vmor %vm2993, %vm3683
        %vm3756 = vmor %vm2994, %vm3684
        %vm3757 = vmor %vm2995, %vm3685
        %vm3758 = vmor %vm2996, %vm3686
        %vm3759 = vmor %vm2997, %vm3687
        %vm3760 = vmor %vm2998, %vm3688
        %vm3761 = vmor %vm2999, %vm3689
        %vm3762 = vmor %vm3000, %vm3690
        %vm3763 = vmor %vm3001, %vm3691
        %vm3764 = vmor %vm3002, %vm3692
        %vm3765 = vmor %vm3003, %vm3693
        %vm3766 = vmor %vm3004, %vm3694
        %vm3767 = vmor %vm3005, %vm3695
        %vm3768 = vmor %vm3006, %vm3696
        %vm3769 = vmor %vm3007, %vm3697
        %vm3770 = vmor %vm3008, %vm3698
        %vm3771 = vmor %vm3009, %vm3699
        %vm3772 = vmor %vm3010, %vm3700
        %vm3773 = vmor %vm3011, %vm3701
        %vm3774 = vmor %vm3012, %vm3702
        %vm3775 = vmor %vm3013, %vm3703
        %vm3776 = vmor %vm3014, %vm3704
        %vm3777 = vmor %vm3015, %vm3705
        %vm3778 = vmor %vm3016, %vm3706
        %vm3779 = vmor %vm3017, %vm3707
        %vm3780 = vmor %vm3018, %vm3708
        %vm3781 = vmor %vm3019, %vm3709
        %v3783 = vunpack.c.l.s4 1966171168
        %v3784 = vunpack.c.0.s8 %v3783
        %v3785 = vlaneseq
        %v3786 = vshrl.u32 %v3785, 7
        %v3787 = vsub.s32 %v3784, %v3786
        %v3788 = vrot.slane %v1277, %v3787
        %v3790 = vunpack.c.l.s4 1966171168
        %v3791 = vunpack.c.0.s8 %v3790
        %v3792 = vlaneseq
        %v3793 = vshrl.u32 %v3792, 7
        %v3794 = vsub.s32 %v3791, %v3793
        %v3795 = vrot.slane %v3788, %v3794
        %v3796 = vadd.s32 %v438, 24
        %v3797 = vadd.s32 %v446, 24
        %v3798 = vadd.s32 %v448, 24
        %v3799 = vadd.s32 %v431, 24
        %v3800 = vadd.s32 %v445, 24
        %v3801 = vadd.s32 %v447, 24
        %v3802 = vadd.s32 %v449, 24
        %v3803 = vadd.s32 %v473, 24
        %v3804 = vadd.s32 %v487, 24
        %v3805 = vadd.s32 %v495, 24
        %v3806 = vadd.s32 %v497, 24
        %v3807 = vadd.s32 %v480, 24
        %v3808 = vadd.s32 %v494, 24
        %v3809 = vadd.s32 %v496, 24
        %v3810 = vadd.s32 %v498, 24
        %v3811 = vadd.s32 %v522, 24
        %v3812 = vadd.s32 %v536, 24
        %v3813 = vadd.s32 %v544, 24
        %v3814 = vadd.s32 %v546, 24
        %v3815 = vadd.s32 %v529, 24
        %v3816 = vadd.s32 %v543, 24
        %v3817 = vadd.s32 %v545, 24
        %v3818 = vadd.s32 %v547, 24
        %v3819 = vadd.s32 %v3047, 24
        %v3820 = vadd.s32 %v585, 24
        %v3821 = vadd.s32 %v593, 24
        %v3822 = vadd.s32 %v595, 24
        %v3823 = vadd.s32 %v578, 24
        %v3824 = vadd.s32 %v592, 24
        %v3825 = vadd.s32 %v594, 24
        %v3826 = vadd.s32 %v596, 24
        %v3827 = vadd.s32 %v620, 24
        %v3828 = vadd.s32 %v634, 24
        %v3829 = vadd.s32 %v642, 24
        %v3830 = vadd.s32 %v644, 24
        %v3831 = vadd.s32 %v627, 24
        %v3832 = vadd.s32 %v641, 24
        %v3833 = vadd.s32 %v643, 24
        %v3834 = vadd.s32 %v645, 24
        %v3835 = vadd.s32 %v669, 24
        %v3836 = vadd.s32 %v683, 24
        %v3837 = vadd.s32 %v691, 24
        %v3838 = vadd.s32 %v693, 24
        %v3839 = vadd.s32 %v676, 24
        %v3840 = vadd.s32 %v690, 24
        %v3841 = vadd.s32 %v692, 24
        %v3842 = vadd.s32 %v694, 24
        %v3843 = vadd.s32 %v3061, 24
        %v3844 = vadd.s32 %v1316, 24
        %v3845 = vadd.s32 %v1324, 24
        %v3846 = vadd.s32 %v1326, 24
        %v3847 = vadd.s32 %v1309, 24
        %v3848 = vadd.s32 %v1323, 24
        %v3849 = vadd.s32 %v1325, 24
        %v3850 = vadd.s32 %v1327, 24
        %v3851 = vadd.s32 %v1351, 24
        %v3852 = vadd.s32 %v1365, 24
        %v3853 = vadd.s32 %v1373, 24
        %v3854 = vadd.s32 %v1375, 24
        %v3855 = vadd.s32 %v1358, 24
        %v3856 = vadd.s32 %v1372, 24
        %v3857 = vadd.s32 %v1374, 24
        %v3858 = vadd.s32 %v1376, 24
        %v3859 = vadd.s32 %v1400, 24
        %v3860 = vadd.s32 %v1414, 24
        %v3861 = vadd.s32 %v1422, 24
        %v3862 = vadd.s32 %v1424, 24
        %v3863 = vadd.s32 %v1407, 24
        %v3864 = vadd.s32 %v1421, 24
        %v3865 = vadd.s32 %v1423, 24
        %v3866 = vadd.s32 %v1425, 24
        %v3867 = vadd.s32 %v3795, 24
        %3868 = vset.pattern.permute.xlu0 0
        %3869 = vperm.xlu0 %3868, %v3796
        %v3870 = vpop.permute.xlu0 %3869
        %v3871 = vlaneseq
        %v3872 = vshrl.u32 %v3871, 7
        %v3873 = vsub.s32 0, %v3872
        %v3874 = vrot.slane %v3870, %v3873
        %3875 = vset.pattern.permute.xlu0 0
        %3876 = vperm.xlu0 %3875, %v3797
        %v3877 = vpop.permute.xlu0 %3876
        %v3878 = vlaneseq
        %v3879 = vshrl.u32 %v3878, 7
        %v3880 = vsub.s32 0, %v3879
        %v3881 = vrot.slane %v3877, %v3880
        %3882 = vset.pattern.permute.xlu0 0
        %3883 = vperm.xlu0 %3882, %v3798
        %v3884 = vpop.permute.xlu0 %3883
        %v3885 = vlaneseq
        %v3886 = vshrl.u32 %v3885, 7
        %v3887 = vsub.s32 0, %v3886
        %v3888 = vrot.slane %v3884, %v3887
        %3889 = vset.pattern.permute.xlu0 0
        %3890 = vperm.xlu0 %3889, %v3799
        %v3891 = vpop.permute.xlu0 %3890
        %v3892 = vlaneseq
        %v3893 = vshrl.u32 %v3892, 7
        %v3894 = vsub.s32 0, %v3893
        %v3895 = vrot.slane %v3891, %v3894
        %3896 = vset.pattern.permute.xlu0 0
        %3897 = vperm.xlu0 %3896, %v3800
        %v3898 = vpop.permute.xlu0 %3897
        %v3899 = vlaneseq
        %v3900 = vshrl.u32 %v3899, 7
        %v3901 = vsub.s32 0, %v3900
        %v3902 = vrot.slane %v3898, %v3901
        %3903 = vset.pattern.permute.xlu0 0
        %3904 = vperm.xlu0 %3903, %v3801
        %v3905 = vpop.permute.xlu0 %3904
        %v3906 = vlaneseq
        %v3907 = vshrl.u32 %v3906, 7
        %v3908 = vsub.s32 0, %v3907
        %v3909 = vrot.slane %v3905, %v3908
        %3910 = vset.pattern.permute.xlu0 0
        %3911 = vperm.xlu0 %3910, %v3802
        %v3912 = vpop.permute.xlu0 %3911
        %v3913 = vlaneseq
        %v3914 = vshrl.u32 %v3913, 7
        %v3915 = vsub.s32 0, %v3914
        %v3916 = vrot.slane %v3912, %v3915
        %3917 = vset.pattern.permute.xlu0 0
        %3918 = vperm.xlu0 %3917, %v3803
        %v3919 = vpop.permute.xlu0 %3918
        %v3920 = vlaneseq
        %v3921 = vshrl.u32 %v3920, 7
        %v3922 = vsub.s32 0, %v3921
        %v3923 = vrot.slane %v3919, %v3922
        %3924 = vset.pattern.permute.xlu0 0
        %3925 = vperm.xlu0 %3924, %v3804
        %v3926 = vpop.permute.xlu0 %3925
        %v3927 = vlaneseq
        %v3928 = vshrl.u32 %v3927, 7
        %v3929 = vsub.s32 0, %v3928
        %v3930 = vrot.slane %v3926, %v3929
        %3931 = vset.pattern.permute.xlu0 0
        %3932 = vperm.xlu0 %3931, %v3805
        %v3933 = vpop.permute.xlu0 %3932
        %v3934 = vlaneseq
        %v3935 = vshrl.u32 %v3934, 7
        %v3936 = vsub.s32 0, %v3935
        %v3937 = vrot.slane %v3933, %v3936
        %3938 = vset.pattern.permute.xlu0 0
        %3939 = vperm.xlu0 %3938, %v3806
        %v3940 = vpop.permute.xlu0 %3939
        %v3941 = vlaneseq
        %v3942 = vshrl.u32 %v3941, 7
        %v3943 = vsub.s32 0, %v3942
        %v3944 = vrot.slane %v3940, %v3943
        %3945 = vset.pattern.permute.xlu0 0
        %3946 = vperm.xlu0 %3945, %v3807
        %v3947 = vpop.permute.xlu0 %3946
        %v3948 = vlaneseq
        %v3949 = vshrl.u32 %v3948, 7
        %v3950 = vsub.s32 0, %v3949
        %v3951 = vrot.slane %v3947, %v3950
        %3952 = vset.pattern.permute.xlu0 0
        %3953 = vperm.xlu0 %3952, %v3808
        %v3954 = vpop.permute.xlu0 %3953
        %v3955 = vlaneseq
        %v3956 = vshrl.u32 %v3955, 7
        %v3957 = vsub.s32 0, %v3956
        %v3958 = vrot.slane %v3954, %v3957
        %3959 = vset.pattern.permute.xlu0 0
        %3960 = vperm.xlu0 %3959, %v3809
        %v3961 = vpop.permute.xlu0 %3960
        %v3962 = vlaneseq
        %v3963 = vshrl.u32 %v3962, 7
        %v3964 = vsub.s32 0, %v3963
        %v3965 = vrot.slane %v3961, %v3964
        %3966 = vset.pattern.permute.xlu0 0
        %3967 = vperm.xlu0 %3966, %v3810
        %v3968 = vpop.permute.xlu0 %3967
        %v3969 = vlaneseq
        %v3970 = vshrl.u32 %v3969, 7
        %v3971 = vsub.s32 0, %v3970
        %v3972 = vrot.slane %v3968, %v3971
        %3973 = vset.pattern.permute.xlu0 0
        %3974 = vperm.xlu0 %3973, %v3811
        %v3975 = vpop.permute.xlu0 %3974
        %v3976 = vlaneseq
        %v3977 = vshrl.u32 %v3976, 7
        %v3978 = vsub.s32 0, %v3977
        %v3979 = vrot.slane %v3975, %v3978
        %3980 = vset.pattern.permute.xlu0 0
        %3981 = vperm.xlu0 %3980, %v3812
        %v3982 = vpop.permute.xlu0 %3981
        %v3983 = vlaneseq
        %v3984 = vshrl.u32 %v3983, 7
        %v3985 = vsub.s32 0, %v3984
        %v3986 = vrot.slane %v3982, %v3985
        %3987 = vset.pattern.permute.xlu0 0
        %3988 = vperm.xlu0 %3987, %v3813
        %v3989 = vpop.permute.xlu0 %3988
        %v3990 = vlaneseq
        %v3991 = vshrl.u32 %v3990, 7
        %v3992 = vsub.s32 0, %v3991
        %v3993 = vrot.slane %v3989, %v3992
        %3994 = vset.pattern.permute.xlu0 0
        %3995 = vperm.xlu0 %3994, %v3814
        %v3996 = vpop.permute.xlu0 %3995
        %v3997 = vlaneseq
        %v3998 = vshrl.u32 %v3997, 7
        %v3999 = vsub.s32 0, %v3998
        %v4000 = vrot.slane %v3996, %v3999
        %4001 = vset.pattern.permute.xlu0 0
        %4002 = vperm.xlu0 %4001, %v3815
        %v4003 = vpop.permute.xlu0 %4002
        %v4004 = vlaneseq
        %v4005 = vshrl.u32 %v4004, 7
        %v4006 = vsub.s32 0, %v4005
        %v4007 = vrot.slane %v4003, %v4006
        %4008 = vset.pattern.permute.xlu0 0
        %4009 = vperm.xlu0 %4008, %v3816
        %v4010 = vpop.permute.xlu0 %4009
        %v4011 = vlaneseq
        %v4012 = vshrl.u32 %v4011, 7
        %v4013 = vsub.s32 0, %v4012
        %v4014 = vrot.slane %v4010, %v4013
        %4015 = vset.pattern.permute.xlu0 0
        %4016 = vperm.xlu0 %4015, %v3817
        %v4017 = vpop.permute.xlu0 %4016
        %v4018 = vlaneseq
        %v4019 = vshrl.u32 %v4018, 7
        %v4020 = vsub.s32 0, %v4019
        %v4021 = vrot.slane %v4017, %v4020
        %4022 = vset.pattern.permute.xlu0 0
        %4023 = vperm.xlu0 %4022, %v3818
        %v4024 = vpop.permute.xlu0 %4023
        %v4025 = vlaneseq
        %v4026 = vshrl.u32 %v4025, 7
        %v4027 = vsub.s32 0, %v4026
        %v4028 = vrot.slane %v4024, %v4027
        %4029 = vset.pattern.permute.xlu0 0
        %4030 = vperm.xlu0 %4029, %v3819
        %v4031 = vpop.permute.xlu0 %4030
        %v4032 = vlaneseq
        %v4033 = vshrl.u32 %v4032, 7
        %v4034 = vsub.s32 0, %v4033
        %v4035 = vrot.slane %v4031, %v4034
        %4036 = vset.pattern.permute.xlu0 0
        %4037 = vperm.xlu0 %4036, %v3820
        %v4038 = vpop.permute.xlu0 %4037
        %v4039 = vlaneseq
        %v4040 = vshrl.u32 %v4039, 7
        %v4041 = vsub.s32 0, %v4040
        %v4042 = vrot.slane %v4038, %v4041
        %4043 = vset.pattern.permute.xlu0 0
        %4044 = vperm.xlu0 %4043, %v3821
        %v4045 = vpop.permute.xlu0 %4044
        %v4046 = vlaneseq
        %v4047 = vshrl.u32 %v4046, 7
        %v4048 = vsub.s32 0, %v4047
        %v4049 = vrot.slane %v4045, %v4048
        %4050 = vset.pattern.permute.xlu0 0
        %4051 = vperm.xlu0 %4050, %v3822
        %v4052 = vpop.permute.xlu0 %4051
        %v4053 = vlaneseq
        %v4054 = vshrl.u32 %v4053, 7
        %v4055 = vsub.s32 0, %v4054
        %v4056 = vrot.slane %v4052, %v4055
        %4057 = vset.pattern.permute.xlu0 0
        %4058 = vperm.xlu0 %4057, %v3823
        %v4059 = vpop.permute.xlu0 %4058
        %v4060 = vlaneseq
        %v4061 = vshrl.u32 %v4060, 7
        %v4062 = vsub.s32 0, %v4061
        %v4063 = vrot.slane %v4059, %v4062
        %4064 = vset.pattern.permute.xlu0 0
        %4065 = vperm.xlu0 %4064, %v3824
        %v4066 = vpop.permute.xlu0 %4065
        %v4067 = vlaneseq
        %v4068 = vshrl.u32 %v4067, 7
        %v4069 = vsub.s32 0, %v4068
        %v4070 = vrot.slane %v4066, %v4069
        %4071 = vset.pattern.permute.xlu0 0
        %4072 = vperm.xlu0 %4071, %v3825
        %v4073 = vpop.permute.xlu0 %4072
        %v4074 = vlaneseq
        %v4075 = vshrl.u32 %v4074, 7
        %v4076 = vsub.s32 0, %v4075
        %v4077 = vrot.slane %v4073, %v4076
        %4078 = vset.pattern.permute.xlu0 0
        %4079 = vperm.xlu0 %4078, %v3826
        %v4080 = vpop.permute.xlu0 %4079
        %v4081 = vlaneseq
        %v4082 = vshrl.u32 %v4081, 7
        %v4083 = vsub.s32 0, %v4082
        %v4084 = vrot.slane %v4080, %v4083
        %4085 = vset.pattern.permute.xlu0 0
        %4086 = vperm.xlu0 %4085, %v3827
        %v4087 = vpop.permute.xlu0 %4086
        %v4088 = vlaneseq
        %v4089 = vshrl.u32 %v4088, 7
        %v4090 = vsub.s32 0, %v4089
        %v4091 = vrot.slane %v4087, %v4090
        %4092 = vset.pattern.permute.xlu0 0
        %4093 = vperm.xlu0 %4092, %v3828
        %v4094 = vpop.permute.xlu0 %4093
        %v4095 = vlaneseq
        %v4096 = vshrl.u32 %v4095, 7
        %v4097 = vsub.s32 0, %v4096
        %v4098 = vrot.slane %v4094, %v4097
        %4099 = vset.pattern.permute.xlu0 0
        %4100 = vperm.xlu0 %4099, %v3829
        %v4101 = vpop.permute.xlu0 %4100
        %v4102 = vlaneseq
        %v4103 = vshrl.u32 %v4102, 7
        %v4104 = vsub.s32 0, %v4103
        %v4105 = vrot.slane %v4101, %v4104
        %4106 = vset.pattern.permute.xlu0 0
        %4107 = vperm.xlu0 %4106, %v3830
        %v4108 = vpop.permute.xlu0 %4107
        %v4109 = vlaneseq
        %v4110 = vshrl.u32 %v4109, 7
        %v4111 = vsub.s32 0, %v4110
        %v4112 = vrot.slane %v4108, %v4111
        %4113 = vset.pattern.permute.xlu0 0
        %4114 = vperm.xlu0 %4113, %v3831
        %v4115 = vpop.permute.xlu0 %4114
        %v4116 = vlaneseq
        %v4117 = vshrl.u32 %v4116, 7
        %v4118 = vsub.s32 0, %v4117
        %v4119 = vrot.slane %v4115, %v4118
        %4120 = vset.pattern.permute.xlu0 0
        %4121 = vperm.xlu0 %4120, %v3832
        %v4122 = vpop.permute.xlu0 %4121
        %v4123 = vlaneseq
        %v4124 = vshrl.u32 %v4123, 7
        %v4125 = vsub.s32 0, %v4124
        %v4126 = vrot.slane %v4122, %v4125
        %4127 = vset.pattern.permute.xlu0 0
        %4128 = vperm.xlu0 %4127, %v3833
        %v4129 = vpop.permute.xlu0 %4128
        %v4130 = vlaneseq
        %v4131 = vshrl.u32 %v4130, 7
        %v4132 = vsub.s32 0, %v4131
        %v4133 = vrot.slane %v4129, %v4132
        %4134 = vset.pattern.permute.xlu0 0
        %4135 = vperm.xlu0 %4134, %v3834
        %v4136 = vpop.permute.xlu0 %4135
        %v4137 = vlaneseq
        %v4138 = vshrl.u32 %v4137, 7
        %v4139 = vsub.s32 0, %v4138
        %v4140 = vrot.slane %v4136, %v4139
        %4141 = vset.pattern.permute.xlu0 0
        %4142 = vperm.xlu0 %4141, %v3835
        %v4143 = vpop.permute.xlu0 %4142
        %v4144 = vlaneseq
        %v4145 = vshrl.u32 %v4144, 7
        %v4146 = vsub.s32 0, %v4145
        %v4147 = vrot.slane %v4143, %v4146
        %4148 = vset.pattern.permute.xlu0 0
        %4149 = vperm.xlu0 %4148, %v3836
        %v4150 = vpop.permute.xlu0 %4149
        %v4151 = vlaneseq
        %v4152 = vshrl.u32 %v4151, 7
        %v4153 = vsub.s32 0, %v4152
        %v4154 = vrot.slane %v4150, %v4153
        %4155 = vset.pattern.permute.xlu0 0
        %4156 = vperm.xlu0 %4155, %v3837
        %v4157 = vpop.permute.xlu0 %4156
        %v4158 = vlaneseq
        %v4159 = vshrl.u32 %v4158, 7
        %v4160 = vsub.s32 0, %v4159
        %v4161 = vrot.slane %v4157, %v4160
        %4162 = vset.pattern.permute.xlu0 0
        %4163 = vperm.xlu0 %4162, %v3838
        %v4164 = vpop.permute.xlu0 %4163
        %v4165 = vlaneseq
        %v4166 = vshrl.u32 %v4165, 7
        %v4167 = vsub.s32 0, %v4166
        %v4168 = vrot.slane %v4164, %v4167
        %4169 = vset.pattern.permute.xlu0 0
        %4170 = vperm.xlu0 %4169, %v3839
        %v4171 = vpop.permute.xlu0 %4170
        %v4172 = vlaneseq
        %v4173 = vshrl.u32 %v4172, 7
        %v4174 = vsub.s32 0, %v4173
        %v4175 = vrot.slane %v4171, %v4174
        %4176 = vset.pattern.permute.xlu0 0
        %4177 = vperm.xlu0 %4176, %v3840
        %v4178 = vpop.permute.xlu0 %4177
        %v4179 = vlaneseq
        %v4180 = vshrl.u32 %v4179, 7
        %v4181 = vsub.s32 0, %v4180
        %v4182 = vrot.slane %v4178, %v4181
        %4183 = vset.pattern.permute.xlu0 0
        %4184 = vperm.xlu0 %4183, %v3841
        %v4185 = vpop.permute.xlu0 %4184
        %v4186 = vlaneseq
        %v4187 = vshrl.u32 %v4186, 7
        %v4188 = vsub.s32 0, %v4187
        %v4189 = vrot.slane %v4185, %v4188
        %4190 = vset.pattern.permute.xlu0 0
        %4191 = vperm.xlu0 %4190, %v3842
        %v4192 = vpop.permute.xlu0 %4191
        %v4193 = vlaneseq
        %v4194 = vshrl.u32 %v4193, 7
        %v4195 = vsub.s32 0, %v4194
        %v4196 = vrot.slane %v4192, %v4195
        %4197 = vset.pattern.permute.xlu0 0
        %4198 = vperm.xlu0 %4197, %v3843
        %v4199 = vpop.permute.xlu0 %4198
        %v4200 = vlaneseq
        %v4201 = vshrl.u32 %v4200, 7
        %v4202 = vsub.s32 0, %v4201
        %v4203 = vrot.slane %v4199, %v4202
        %4204 = vset.pattern.permute.xlu0 0
        %4205 = vperm.xlu0 %4204, %v3844
        %v4206 = vpop.permute.xlu0 %4205
        %v4207 = vlaneseq
        %v4208 = vshrl.u32 %v4207, 7
        %v4209 = vsub.s32 0, %v4208
        %v4210 = vrot.slane %v4206, %v4209
        %4211 = vset.pattern.permute.xlu0 0
        %4212 = vperm.xlu0 %4211, %v3845
        %v4213 = vpop.permute.xlu0 %4212
        %v4214 = vlaneseq
        %v4215 = vshrl.u32 %v4214, 7
        %v4216 = vsub.s32 0, %v4215
        %v4217 = vrot.slane %v4213, %v4216
        %4218 = vset.pattern.permute.xlu0 0
        %4219 = vperm.xlu0 %4218, %v3846
        %v4220 = vpop.permute.xlu0 %4219
        %v4221 = vlaneseq
        %v4222 = vshrl.u32 %v4221, 7
        %v4223 = vsub.s32 0, %v4222
        %v4224 = vrot.slane %v4220, %v4223
        %4225 = vset.pattern.permute.xlu0 0
        %4226 = vperm.xlu0 %4225, %v3847
        %v4227 = vpop.permute.xlu0 %4226
        %v4228 = vlaneseq
        %v4229 = vshrl.u32 %v4228, 7
        %v4230 = vsub.s32 0, %v4229
        %v4231 = vrot.slane %v4227, %v4230
        %4232 = vset.pattern.permute.xlu0 0
        %4233 = vperm.xlu0 %4232, %v3848
        %v4234 = vpop.permute.xlu0 %4233
        %v4235 = vlaneseq
        %v4236 = vshrl.u32 %v4235, 7
        %v4237 = vsub.s32 0, %v4236
        %v4238 = vrot.slane %v4234, %v4237
        %4239 = vset.pattern.permute.xlu0 0
        %4240 = vperm.xlu0 %4239, %v3849
        %v4241 = vpop.permute.xlu0 %4240
        %v4242 = vlaneseq
        %v4243 = vshrl.u32 %v4242, 7
        %v4244 = vsub.s32 0, %v4243
        %v4245 = vrot.slane %v4241, %v4244
        %4246 = vset.pattern.permute.xlu0 0
        %4247 = vperm.xlu0 %4246, %v3850
        %v4248 = vpop.permute.xlu0 %4247
        %v4249 = vlaneseq
        %v4250 = vshrl.u32 %v4249, 7
        %v4251 = vsub.s32 0, %v4250
        %v4252 = vrot.slane %v4248, %v4251
        %4253 = vset.pattern.permute.xlu0 0
        %4254 = vperm.xlu0 %4253, %v3851
        %v4255 = vpop.permute.xlu0 %4254
        %v4256 = vlaneseq
        %v4257 = vshrl.u32 %v4256, 7
        %v4258 = vsub.s32 0, %v4257
        %v4259 = vrot.slane %v4255, %v4258
        %4260 = vset.pattern.permute.xlu0 0
        %4261 = vperm.xlu0 %4260, %v3852
        %v4262 = vpop.permute.xlu0 %4261
        %v4263 = vlaneseq
        %v4264 = vshrl.u32 %v4263, 7
        %v4265 = vsub.s32 0, %v4264
        %v4266 = vrot.slane %v4262, %v4265
        %4267 = vset.pattern.permute.xlu0 0
        %4268 = vperm.xlu0 %4267, %v3853
        %v4269 = vpop.permute.xlu0 %4268
        %v4270 = vlaneseq
        %v4271 = vshrl.u32 %v4270, 7
        %v4272 = vsub.s32 0, %v4271
        %v4273 = vrot.slane %v4269, %v4272
        %4274 = vset.pattern.permute.xlu0 0
        %4275 = vperm.xlu0 %4274, %v3854
        %v4276 = vpop.permute.xlu0 %4275
        %v4277 = vlaneseq
        %v4278 = vshrl.u32 %v4277, 7
        %v4279 = vsub.s32 0, %v4278
        %v4280 = vrot.slane %v4276, %v4279
        %4281 = vset.pattern.permute.xlu0 0
        %4282 = vperm.xlu0 %4281, %v3855
        %v4283 = vpop.permute.xlu0 %4282
        %v4284 = vlaneseq
        %v4285 = vshrl.u32 %v4284, 7
        %v4286 = vsub.s32 0, %v4285
        %v4287 = vrot.slane %v4283, %v4286
        %4288 = vset.pattern.permute.xlu0 0
        %4289 = vperm.xlu0 %4288, %v3856
        %v4290 = vpop.permute.xlu0 %4289
        %v4291 = vlaneseq
        %v4292 = vshrl.u32 %v4291, 7
        %v4293 = vsub.s32 0, %v4292
        %v4294 = vrot.slane %v4290, %v4293
        %4295 = vset.pattern.permute.xlu0 0
        %4296 = vperm.xlu0 %4295, %v3857
        %v4297 = vpop.permute.xlu0 %4296
        %v4298 = vlaneseq
        %v4299 = vshrl.u32 %v4298, 7
        %v4300 = vsub.s32 0, %v4299
        %v4301 = vrot.slane %v4297, %v4300
        %4302 = vset.pattern.permute.xlu0 0
        %4303 = vperm.xlu0 %4302, %v3858
        %v4304 = vpop.permute.xlu0 %4303
        %v4305 = vlaneseq
        %v4306 = vshrl.u32 %v4305, 7
        %v4307 = vsub.s32 0, %v4306
        %v4308 = vrot.slane %v4304, %v4307
        %4309 = vset.pattern.permute.xlu0 0
        %4310 = vperm.xlu0 %4309, %v3859
        %v4311 = vpop.permute.xlu0 %4310
        %v4312 = vlaneseq
        %v4313 = vshrl.u32 %v4312, 7
        %v4314 = vsub.s32 0, %v4313
        %v4315 = vrot.slane %v4311, %v4314
        %4316 = vset.pattern.permute.xlu0 0
        %4317 = vperm.xlu0 %4316, %v3860
        %v4318 = vpop.permute.xlu0 %4317
        %v4319 = vlaneseq
        %v4320 = vshrl.u32 %v4319, 7
        %v4321 = vsub.s32 0, %v4320
        %v4322 = vrot.slane %v4318, %v4321
        %4323 = vset.pattern.permute.xlu0 0
        %4324 = vperm.xlu0 %4323, %v3861
        %v4325 = vpop.permute.xlu0 %4324
        %v4326 = vlaneseq
        %v4327 = vshrl.u32 %v4326, 7
        %v4328 = vsub.s32 0, %v4327
        %v4329 = vrot.slane %v4325, %v4328
        %4330 = vset.pattern.permute.xlu0 0
        %4331 = vperm.xlu0 %4330, %v3862
        %v4332 = vpop.permute.xlu0 %4331
        %v4333 = vlaneseq
        %v4334 = vshrl.u32 %v4333, 7
        %v4335 = vsub.s32 0, %v4334
        %v4336 = vrot.slane %v4332, %v4335
        %4337 = vset.pattern.permute.xlu0 0
        %4338 = vperm.xlu0 %4337, %v3863
        %v4339 = vpop.permute.xlu0 %4338
        %v4340 = vlaneseq
        %v4341 = vshrl.u32 %v4340, 7
        %v4342 = vsub.s32 0, %v4341
        %v4343 = vrot.slane %v4339, %v4342
        %4344 = vset.pattern.permute.xlu0 0
        %4345 = vperm.xlu0 %4344, %v3864
        %v4346 = vpop.permute.xlu0 %4345
        %v4347 = vlaneseq
        %v4348 = vshrl.u32 %v4347, 7
        %v4349 = vsub.s32 0, %v4348
        %v4350 = vrot.slane %v4346, %v4349
        %4351 = vset.pattern.permute.xlu0 0
        %4352 = vperm.xlu0 %4351, %v3865
        %v4353 = vpop.permute.xlu0 %4352
        %v4354 = vlaneseq
        %v4355 = vshrl.u32 %v4354, 7
        %v4356 = vsub.s32 0, %v4355
        %v4357 = vrot.slane %v4353, %v4356
        %4358 = vset.pattern.permute.xlu0 0
        %4359 = vperm.xlu0 %4358, %v3866
        %v4360 = vpop.permute.xlu0 %4359
        %v4361 = vlaneseq
        %v4362 = vshrl.u32 %v4361, 7
        %v4363 = vsub.s32 0, %v4362
        %v4364 = vrot.slane %v4360, %v4363
        %4365 = vset.pattern.permute.xlu0 0
        %4366 = vperm.xlu0 %4365, %v3867
        %v4367 = vpop.permute.xlu0 %4366
        %v4368 = vlaneseq
        %v4369 = vshrl.u32 %v4368, 7
        %v4370 = vsub.s32 0, %v4369
        %v4371 = vrot.slane %v4367, %v4370
        %vm4372 = vcmp.eq.s32.totalorder %v253, %v3874
        %vm4373 = vcmp.eq.s32.totalorder %v253, %v3881
        %vm4374 = vcmp.eq.s32.totalorder %v253, %v3888
        %vm4375 = vcmp.eq.s32.totalorder %v253, %v3895
        %vm4376 = vcmp.eq.s32.totalorder %v253, %v3902
        %vm4377 = vcmp.eq.s32.totalorder %v253, %v3909
        %vm4378 = vcmp.eq.s32.totalorder %v253, %v3916
        %vm4379 = vcmp.eq.s32.totalorder %v253, %v3923
        %vm4380 = vcmp.eq.s32.totalorder %v253, %v3930
        %vm4381 = vcmp.eq.s32.totalorder %v253, %v3937
        %vm4382 = vcmp.eq.s32.totalorder %v253, %v3944
        %vm4383 = vcmp.eq.s32.totalorder %v253, %v3951
        %vm4384 = vcmp.eq.s32.totalorder %v253, %v3958
        %vm4385 = vcmp.eq.s32.totalorder %v253, %v3965
        %vm4386 = vcmp.eq.s32.totalorder %v253, %v3972
        %vm4387 = vcmp.eq.s32.totalorder %v253, %v3979
        %vm4388 = vcmp.eq.s32.totalorder %v253, %v3986
        %vm4389 = vcmp.eq.s32.totalorder %v253, %v3993
        %vm4390 = vcmp.eq.s32.totalorder %v253, %v4000
        %vm4391 = vcmp.eq.s32.totalorder %v253, %v4007
        %vm4392 = vcmp.eq.s32.totalorder %v253, %v4014
        %vm4393 = vcmp.eq.s32.totalorder %v253, %v4021
        %vm4394 = vcmp.eq.s32.totalorder %v253, %v4028
        %vm4395 = vcmp.eq.s32.totalorder %v253, %v4035
        %vm4396 = vcmp.eq.s32.totalorder %v253, %v4042
        %vm4397 = vcmp.eq.s32.totalorder %v253, %v4049
        %vm4398 = vcmp.eq.s32.totalorder %v253, %v4056
        %vm4399 = vcmp.eq.s32.totalorder %v253, %v4063
        %vm4400 = vcmp.eq.s32.totalorder %v253, %v4070
        %vm4401 = vcmp.eq.s32.totalorder %v253, %v4077
        %vm4402 = vcmp.eq.s32.totalorder %v253, %v4084
        %vm4403 = vcmp.eq.s32.totalorder %v253, %v4091
        %vm4404 = vcmp.eq.s32.totalorder %v253, %v4098
        %vm4405 = vcmp.eq.s32.totalorder %v253, %v4105
        %vm4406 = vcmp.eq.s32.totalorder %v253, %v4112
        %vm4407 = vcmp.eq.s32.totalorder %v253, %v4119
        %vm4408 = vcmp.eq.s32.totalorder %v253, %v4126
        %vm4409 = vcmp.eq.s32.totalorder %v253, %v4133
        %vm4410 = vcmp.eq.s32.totalorder %v253, %v4140
        %vm4411 = vcmp.eq.s32.totalorder %v253, %v4147
        %vm4412 = vcmp.eq.s32.totalorder %v253, %v4154
        %vm4413 = vcmp.eq.s32.totalorder %v253, %v4161
        %vm4414 = vcmp.eq.s32.totalorder %v253, %v4168
        %vm4415 = vcmp.eq.s32.totalorder %v253, %v4175
        %vm4416 = vcmp.eq.s32.totalorder %v253, %v4182
        %vm4417 = vcmp.eq.s32.totalorder %v253, %v4189
        %vm4418 = vcmp.eq.s32.totalorder %v253, %v4196
        %vm4419 = vcmp.eq.s32.totalorder %v253, %v4203
        %vm4420 = vcmp.eq.s32.totalorder %v253, %v4210
        %vm4421 = vcmp.eq.s32.totalorder %v253, %v4217
        %vm4422 = vcmp.eq.s32.totalorder %v253, %v4224
        %vm4423 = vcmp.eq.s32.totalorder %v253, %v4231
        %vm4424 = vcmp.eq.s32.totalorder %v253, %v4238
        %vm4425 = vcmp.eq.s32.totalorder %v253, %v4245
        %vm4426 = vcmp.eq.s32.totalorder %v253, %v4252
        %vm4427 = vcmp.eq.s32.totalorder %v253, %v4259
        %vm4428 = vcmp.eq.s32.totalorder %v253, %v4266
        %vm4429 = vcmp.eq.s32.totalorder %v253, %v4273
        %vm4430 = vcmp.eq.s32.totalorder %v253, %v4280
        %vm4431 = vcmp.eq.s32.totalorder %v253, %v4287
        %vm4432 = vcmp.eq.s32.totalorder %v253, %v4294
        %vm4433 = vcmp.eq.s32.totalorder %v253, %v4301
        %vm4434 = vcmp.eq.s32.totalorder %v253, %v4308
        %vm4435 = vcmp.eq.s32.totalorder %v253, %v4315
        %vm4436 = vcmp.eq.s32.totalorder %v253, %v4322
        %vm4437 = vcmp.eq.s32.totalorder %v253, %v4329
        %vm4438 = vcmp.eq.s32.totalorder %v253, %v4336
        %vm4439 = vcmp.eq.s32.totalorder %v253, %v4343
        %vm4440 = vcmp.eq.s32.totalorder %v253, %v4350
        %vm4441 = vcmp.eq.s32.totalorder %v253, %v4357
        %vm4442 = vcmp.eq.s32.totalorder %v253, %v4364
        %vm4443 = vcmp.eq.s32.totalorder %v253, %v4371
        %vm4444 = vmor %vm3710, %vm4372
        %vm4445 = vmor %vm3711, %vm4373
        %vm4446 = vmor %vm3712, %vm4374
        %vm4447 = vmor %vm3713, %vm4375
        %vm4448 = vmor %vm3714, %vm4376
        %vm4449 = vmor %vm3715, %vm4377
        %vm4450 = vmor %vm3716, %vm4378
        %vm4451 = vmor %vm3717, %vm4379
        %vm4452 = vmor %vm3718, %vm4380
        %vm4453 = vmor %vm3719, %vm4381
        %vm4454 = vmor %vm3720, %vm4382
        %vm4455 = vmor %vm3721, %vm4383
        %vm4456 = vmor %vm3722, %vm4384
        %vm4457 = vmor %vm3723, %vm4385
        %vm4458 = vmor %vm3724, %vm4386
        %vm4459 = vmor %vm3725, %vm4387
        %vm4460 = vmor %vm3726, %vm4388
        %vm4461 = vmor %vm3727, %vm4389
        %vm4462 = vmor %vm3728, %vm4390
        %vm4463 = vmor %vm3729, %vm4391
        %vm4464 = vmor %vm3730, %vm4392
        %vm4465 = vmor %vm3731, %vm4393
        %vm4466 = vmor %vm3732, %vm4394
        %vm4467 = vmor %vm3733, %vm4395
        %vm4468 = vmor %vm3734, %vm4396
        %vm4469 = vmor %vm3735, %vm4397
        %vm4470 = vmor %vm3736, %vm4398
        %vm4471 = vmor %vm3737, %vm4399
        %vm4472 = vmor %vm3738, %vm4400
        %vm4473 = vmor %vm3739, %vm4401
        %vm4474 = vmor %vm3740, %vm4402
        %vm4475 = vmor %vm3741, %vm4403
        %vm4476 = vmor %vm3742, %vm4404
        %vm4477 = vmor %vm3743, %vm4405
        %vm4478 = vmor %vm3744, %vm4406
        %vm4479 = vmor %vm3745, %vm4407
        %vm4480 = vmor %vm3746, %vm4408
        %vm4481 = vmor %vm3747, %vm4409
        %vm4482 = vmor %vm3748, %vm4410
        %vm4483 = vmor %vm3749, %vm4411
        %vm4484 = vmor %vm3750, %vm4412
        %vm4485 = vmor %vm3751, %vm4413
        %vm4486 = vmor %vm3752, %vm4414
        %vm4487 = vmor %vm3753, %vm4415
        %vm4488 = vmor %vm3754, %vm4416
        %vm4489 = vmor %vm3755, %vm4417
        %vm4490 = vmor %vm3756, %vm4418
        %vm4491 = vmor %vm3757, %vm4419
        %vm4492 = vmor %vm3758, %vm4420
        %vm4493 = vmor %vm3759, %vm4421
        %vm4494 = vmor %vm3760, %vm4422
        %vm4495 = vmor %vm3761, %vm4423
        %vm4496 = vmor %vm3762, %vm4424
        %vm4497 = vmor %vm3763, %vm4425
        %vm4498 = vmor %vm3764, %vm4426
        %vm4499 = vmor %vm3765, %vm4427
        %vm4500 = vmor %vm3766, %vm4428
        %vm4501 = vmor %vm3767, %vm4429
        %vm4502 = vmor %vm3768, %vm4430
        %vm4503 = vmor %vm3769, %vm4431
        %vm4504 = vmor %vm3770, %vm4432
        %vm4505 = vmor %vm3771, %vm4433
        %vm4506 = vmor %vm3772, %vm4434
        %vm4507 = vmor %vm3773, %vm4435
        %vm4508 = vmor %vm3774, %vm4436
        %vm4509 = vmor %vm3775, %vm4437
        %vm4510 = vmor %vm3776, %vm4438
        %vm4511 = vmor %vm3777, %vm4439
        %vm4512 = vmor %vm3778, %vm4440
        %vm4513 = vmor %vm3779, %vm4441
        %vm4514 = vmor %vm3780, %vm4442
        %vm4515 = vmor %vm3781, %vm4443
        %v4516 = vsel %vm4444, 1, 0
        %v4517 = vsel %vm4445, 1, 0
        %v4518 = vsel %vm4446, 1, 0
        %v4519 = vsel %vm4447, 1, 0
        %v4520 = vsel %vm4448, 1, 0
        %v4521 = vsel %vm4449, 1, 0
        %v4522 = vsel %vm4450, 1, 0
        %v4523 = vsel %vm4451, 1, 0
        %v4524 = vsel %vm4452, 1, 0
        %v4525 = vsel %vm4453, 1, 0
        %v4526 = vsel %vm4454, 1, 0
        %v4527 = vsel %vm4455, 1, 0
        %v4528 = vsel %vm4456, 1, 0
        %v4529 = vsel %vm4457, 1, 0
        %v4530 = vsel %vm4458, 1, 0
        %v4531 = vsel %vm4459, 1, 0
        %v4532 = vsel %vm4460, 1, 0
        %v4533 = vsel %vm4461, 1, 0
        %v4534 = vsel %vm4462, 1, 0
        %v4535 = vsel %vm4463, 1, 0
        %v4536 = vsel %vm4464, 1, 0
        %v4537 = vsel %vm4465, 1, 0
        %v4538 = vsel %vm4466, 1, 0
        %v4539 = vsel %vm4467, 1, 0
        %v4540 = vsel %vm4468, 1, 0
        %v4541 = vsel %vm4469, 1, 0
        %v4542 = vsel %vm4470, 1, 0
        %v4543 = vsel %vm4471, 1, 0
        %v4544 = vsel %vm4472, 1, 0
        %v4545 = vsel %vm4473, 1, 0
        %v4546 = vsel %vm4474, 1, 0
        %v4547 = vsel %vm4475, 1, 0
        %v4548 = vsel %vm4476, 1, 0
        %v4549 = vsel %vm4477, 1, 0
        %v4550 = vsel %vm4478, 1, 0
        %v4551 = vsel %vm4479, 1, 0
        %v4552 = vsel %vm4480, 1, 0
        %v4553 = vsel %vm4481, 1, 0
        %v4554 = vsel %vm4482, 1, 0
        %v4555 = vsel %vm4483, 1, 0
        %v4556 = vsel %vm4484, 1, 0
        %v4557 = vsel %vm4485, 1, 0
        %v4558 = vsel %vm4486, 1, 0
        %v4559 = vsel %vm4487, 1, 0
        %v4560 = vsel %vm4488, 1, 0
        %v4561 = vsel %vm4489, 1, 0
        %v4562 = vsel %vm4490, 1, 0
        %v4563 = vsel %vm4491, 1, 0
        %v4564 = vsel %vm4492, 1, 0
        %v4565 = vsel %vm4493, 1, 0
        %v4566 = vsel %vm4494, 1, 0
        %v4567 = vsel %vm4495, 1, 0
        %v4568 = vsel %vm4496, 1, 0
        %v4569 = vsel %vm4497, 1, 0
        %v4570 = vsel %vm4498, 1, 0
        %v4571 = vsel %vm4499, 1, 0
        %v4572 = vsel %vm4500, 1, 0
        %v4573 = vsel %vm4501, 1, 0
        %v4574 = vsel %vm4502, 1, 0
        %v4575 = vsel %vm4503, 1, 0
        %v4576 = vsel %vm4504, 1, 0
        %v4577 = vsel %vm4505, 1, 0
        %v4578 = vsel %vm4506, 1, 0
        %v4579 = vsel %vm4507, 1, 0
        %v4580 = vsel %vm4508, 1, 0
        %v4581 = vsel %vm4509, 1, 0
        %v4582 = vsel %vm4510, 1, 0
        %v4583 = vsel %vm4511, 1, 0
        %v4584 = vsel %vm4512, 1, 0
        %v4585 = vsel %vm4513, 1, 0
        %v4586 = vsel %vm4514, 1, 0
        %v4587 = vsel %vm4515, 1, 0
        %v4588 = vcvt.s32.f32 %v4516
        %v4589 = vcvt.s32.f32 %v4517
        %v4590 = vcvt.s32.f32 %v4518
        %v4591 = vcvt.s32.f32 %v4519
        %v4592 = vcvt.s32.f32 %v4520
        %v4593 = vcvt.s32.f32 %v4521
        %v4594 = vcvt.s32.f32 %v4522
        %v4595 = vcvt.s32.f32 %v4523
        %v4596 = vcvt.s32.f32 %v4524
        %v4597 = vcvt.s32.f32 %v4525
        %v4598 = vcvt.s32.f32 %v4526
        %v4599 = vcvt.s32.f32 %v4527
        %v4600 = vcvt.s32.f32 %v4528
        %v4601 = vcvt.s32.f32 %v4529
        %v4602 = vcvt.s32.f32 %v4530
        %v4603 = vcvt.s32.f32 %v4531
        %v4604 = vcvt.s32.f32 %v4532
        %v4605 = vcvt.s32.f32 %v4533
        %v4606 = vcvt.s32.f32 %v4534
        %v4607 = vcvt.s32.f32 %v4535
        %v4608 = vcvt.s32.f32 %v4536
        %v4609 = vcvt.s32.f32 %v4537
        %v4610 = vcvt.s32.f32 %v4538
        %v4611 = vcvt.s32.f32 %v4539
        %v4612 = vcvt.s32.f32 %v4540
        %v4613 = vcvt.s32.f32 %v4541
        %v4614 = vcvt.s32.f32 %v4542
        %v4615 = vcvt.s32.f32 %v4543
        %v4616 = vcvt.s32.f32 %v4544
        %v4617 = vcvt.s32.f32 %v4545
        %v4618 = vcvt.s32.f32 %v4546
        %v4619 = vcvt.s32.f32 %v4547
        %v4620 = vcvt.s32.f32 %v4548
        %v4621 = vcvt.s32.f32 %v4549
        %v4622 = vcvt.s32.f32 %v4550
        %v4623 = vcvt.s32.f32 %v4551
        %v4624 = vcvt.s32.f32 %v4552
        %v4625 = vcvt.s32.f32 %v4553
        %v4626 = vcvt.s32.f32 %v4554
        %v4627 = vcvt.s32.f32 %v4555
        %v4628 = vcvt.s32.f32 %v4556
        %v4629 = vcvt.s32.f32 %v4557
        %v4630 = vcvt.s32.f32 %v4558
        %v4631 = vcvt.s32.f32 %v4559
        %v4632 = vcvt.s32.f32 %v4560
        %v4633 = vcvt.s32.f32 %v4561
        %v4634 = vcvt.s32.f32 %v4562
        %v4635 = vcvt.s32.f32 %v4563
        %v4636 = vcvt.s32.f32 %v4564
        %v4637 = vcvt.s32.f32 %v4565
        %v4638 = vcvt.s32.f32 %v4566
        %v4639 = vcvt.s32.f32 %v4567
        %v4640 = vcvt.s32.f32 %v4568
        %v4641 = vcvt.s32.f32 %v4569
        %v4642 = vcvt.s32.f32 %v4570
        %v4643 = vcvt.s32.f32 %v4571
        %v4644 = vcvt.s32.f32 %v4572
        %v4645 = vcvt.s32.f32 %v4573
        %v4646 = vcvt.s32.f32 %v4574
        %v4647 = vcvt.s32.f32 %v4575
        %v4648 = vcvt.s32.f32 %v4576
        %v4649 = vcvt.s32.f32 %v4577
        %v4650 = vcvt.s32.f32 %v4578
        %v4651 = vcvt.s32.f32 %v4579
        %v4652 = vcvt.s32.f32 %v4580
        %v4653 = vcvt.s32.f32 %v4581
        %v4654 = vcvt.s32.f32 %v4582
        %v4655 = vcvt.s32.f32 %v4583
        %v4656 = vcvt.s32.f32 %v4584
        %v4657 = vcvt.s32.f32 %v4585
        %v4658 = vcvt.s32.f32 %v4586
        %v4659 = vcvt.s32.f32 %v4587
        %v4660 = vpack.c.bf16 %v4588, %v4588
        %v4661 = vpack.c.bf16 %v4589, %v4589
        %v4662 = vpack.c.bf16 %v4590, %v4590
        %v4663 = vpack.c.bf16 %v4591, %v4591
        %v4664 = vpack.c.bf16 %v4592, %v4592
        %v4665 = vpack.c.bf16 %v4593, %v4593
        %v4666 = vpack.c.bf16 %v4594, %v4594
        %v4667 = vpack.c.bf16 %v4595, %v4595
        %v4668 = vpack.c.bf16 %v4596, %v4596
        %v4669 = vpack.c.bf16 %v4597, %v4597
        %v4670 = vpack.c.bf16 %v4598, %v4598
        %v4671 = vpack.c.bf16 %v4599, %v4599
        %v4672 = vpack.c.bf16 %v4600, %v4600
        %v4673 = vpack.c.bf16 %v4601, %v4601
        %v4674 = vpack.c.bf16 %v4602, %v4602
        %v4675 = vpack.c.bf16 %v4603, %v4603
        %v4676 = vpack.c.bf16 %v4604, %v4604
        %v4677 = vpack.c.bf16 %v4605, %v4605
        %v4678 = vpack.c.bf16 %v4606, %v4606
        %v4679 = vpack.c.bf16 %v4607, %v4607
        %v4680 = vpack.c.bf16 %v4608, %v4608
        %v4681 = vpack.c.bf16 %v4609, %v4609
        %v4682 = vpack.c.bf16 %v4610, %v4610
        %v4683 = vpack.c.bf16 %v4611, %v4611
        %v4684 = vpack.c.bf16 %v4612, %v4612
        %v4685 = vpack.c.bf16 %v4613, %v4613
        %v4686 = vpack.c.bf16 %v4614, %v4614
        %v4687 = vpack.c.bf16 %v4615, %v4615
        %v4688 = vpack.c.bf16 %v4616, %v4616
        %v4689 = vpack.c.bf16 %v4617, %v4617
        %v4690 = vpack.c.bf16 %v4618, %v4618
        %v4691 = vpack.c.bf16 %v4619, %v4619
        %v4692 = vpack.c.bf16 %v4620, %v4620
        %v4693 = vpack.c.bf16 %v4621, %v4621
        %v4694 = vpack.c.bf16 %v4622, %v4622
        %v4695 = vpack.c.bf16 %v4623, %v4623
        %v4696 = vpack.c.bf16 %v4624, %v4624
        %v4697 = vpack.c.bf16 %v4625, %v4625
        %v4698 = vpack.c.bf16 %v4626, %v4626
        %v4699 = vpack.c.bf16 %v4627, %v4627
        %v4700 = vpack.c.bf16 %v4628, %v4628
        %v4701 = vpack.c.bf16 %v4629, %v4629
        %v4702 = vpack.c.bf16 %v4630, %v4630
        %v4703 = vpack.c.bf16 %v4631, %v4631
        %v4704 = vpack.c.bf16 %v4632, %v4632
        %v4705 = vpack.c.bf16 %v4633, %v4633
        %v4706 = vpack.c.bf16 %v4634, %v4634
        %v4707 = vpack.c.bf16 %v4635, %v4635
        %v4708 = vpack.c.bf16 %v4636, %v4636
        %v4709 = vpack.c.bf16 %v4637, %v4637
        %v4710 = vpack.c.bf16 %v4638, %v4638
        %v4711 = vpack.c.bf16 %v4639, %v4639
        %v4712 = vpack.c.bf16 %v4640, %v4640
        %v4713 = vpack.c.bf16 %v4641, %v4641
        %v4714 = vpack.c.bf16 %v4642, %v4642
        %v4715 = vpack.c.bf16 %v4643, %v4643
        %v4716 = vpack.c.bf16 %v4644, %v4644
        %v4717 = vpack.c.bf16 %v4645, %v4645
        %v4718 = vpack.c.bf16 %v4646, %v4646
        %v4719 = vpack.c.bf16 %v4647, %v4647
        %v4720 = vpack.c.bf16 %v4648, %v4648
        %v4721 = vpack.c.bf16 %v4649, %v4649
        %v4722 = vpack.c.bf16 %v4650, %v4650
        %v4723 = vpack.c.bf16 %v4651, %v4651
        %v4724 = vpack.c.bf16 %v4652, %v4652
        %v4725 = vpack.c.bf16 %v4653, %v4653
        %v4726 = vpack.c.bf16 %v4654, %v4654
        %v4727 = vpack.c.bf16 %v4655, %v4655
        %v4728 = vpack.c.bf16 %v4656, %v4656
        %v4729 = vpack.c.bf16 %v4657, %v4657
        %v4730 = vpack.c.bf16 %v4658, %v4658
        %v4731 = vpack.c.bf16 %v4659, %v4659
        %v4732 = vld [vmem:[%s1] sm:$0xf]
        %v4733 = vld [vmem:[%s1 + $0x4] sm:$0xf]
        %v4734 = vld [vmem:[%s1 + $0x8] sm:$0xf]
        %v4735 = vld [vmem:[%s1 + $0xc] sm:$0xf]
        %v4736 = vld [vmem:[%s1 + $0x10] sm:$0xf]
        %v4737 = vld [vmem:[%s1 + $0x14] sm:$0xf]
        %v4738 = vld [vmem:[%s1 + $0x18] sm:$0xf]
        %v4739 = vld [vmem:[%s1 + $0x1c] sm:$0xf]
        %v4740 = vld [vmem:[%s1 + $0x20] sm:$0xf]
        %v4741 = vld [vmem:[%s1 + $0x24] sm:$0xf]
        %v4742 = vld [vmem:[%s1 + $0x28] sm:$0xf]
        %v4743 = vld [vmem:[%s1 + $0x2c] sm:$0xf]
        %v4744 = vld [vmem:[%s1 + $0x30] sm:$0xf]
        %v4745 = vld [vmem:[%s1 + $0x34] sm:$0xf]
        %v4746 = vld [vmem:[%s1 + $0x38] sm:$0xf]
        %v4747 = vld [vmem:[%s1 + $0x3c] sm:$0xf]
        %v4748 = vld [vmem:[%s2] sm:$0x1]
        %v4750 = vlaneseq
        %v4751 = vshrl.u32 %v4750, 7
        %v4752 = vsub.s32 0, %v4751
        %v4753 = vrot.slane %v4748, %v4752
        %v4827 = vunpack.c.l.b16 %v4660
        %v4828 = vunpack.c.l.b16 %v4661
        %v4829 = vunpack.c.l.b16 %v4662
        %v4830 = vunpack.c.l.b16 %v4663
        %v4831 = vunpack.c.l.b16 %v4664
        %v4832 = vunpack.c.l.b16 %v4665
        %v4833 = vunpack.c.l.b16 %v4666
        %v4834 = vunpack.c.l.b16 %v4667
        %v4835 = vunpack.c.l.b16 %v4668
        %v4836 = vunpack.c.l.b16 %v4669
        %v4837 = vunpack.c.l.b16 %v4670
        %v4838 = vunpack.c.l.b16 %v4671
        %v4839 = vunpack.c.l.b16 %v4672
        %v4840 = vunpack.c.l.b16 %v4673
        %v4841 = vunpack.c.l.b16 %v4674
        %v4842 = vunpack.c.l.b16 %v4675
        %v4843 = vunpack.c.l.b16 %v4676
        %v4844 = vunpack.c.l.b16 %v4677
        %v4845 = vunpack.c.l.b16 %v4678
        %v4846 = vunpack.c.l.b16 %v4679
        %v4847 = vunpack.c.l.b16 %v4680
        %v4848 = vunpack.c.l.b16 %v4681
        %v4849 = vunpack.c.l.b16 %v4682
        %v4850 = vunpack.c.l.b16 %v4683
        %v4851 = vunpack.c.l.b16 %v4684
        %v4852 = vunpack.c.l.b16 %v4685
        %v4853 = vunpack.c.l.b16 %v4686
        %v4854 = vunpack.c.l.b16 %v4687
        %v4855 = vunpack.c.l.b16 %v4688
        %v4856 = vunpack.c.l.b16 %v4689
        %v4857 = vunpack.c.l.b16 %v4690
        %v4858 = vunpack.c.l.b16 %v4691
        %v4859 = vunpack.c.l.b16 %v4692
        %v4860 = vunpack.c.l.b16 %v4693
        %v4861 = vunpack.c.l.b16 %v4694
        %v4862 = vunpack.c.l.b16 %v4695
        %v4863 = vunpack.c.l.b16 %v4696
        %v4864 = vunpack.c.l.b16 %v4697
        %v4865 = vunpack.c.l.b16 %v4698
        %v4866 = vunpack.c.l.b16 %v4699
        %v4867 = vunpack.c.l.b16 %v4700
        %v4868 = vunpack.c.l.b16 %v4701
        %v4869 = vunpack.c.l.b16 %v4702
        %v4870 = vunpack.c.l.b16 %v4703
        %v4871 = vunpack.c.l.b16 %v4704
        %v4872 = vunpack.c.l.b16 %v4705
        %v4873 = vunpack.c.l.b16 %v4706
        %v4874 = vunpack.c.l.b16 %v4707
        %v4875 = vunpack.c.l.b16 %v4708
        %v4876 = vunpack.c.l.b16 %v4709
        %v4877 = vunpack.c.l.b16 %v4710
        %v4878 = vunpack.c.l.b16 %v4711
        %v4879 = vunpack.c.l.b16 %v4712
        %v4880 = vunpack.c.l.b16 %v4713
        %v4881 = vunpack.c.l.b16 %v4714
        %v4882 = vunpack.c.l.b16 %v4715
        %v4883 = vunpack.c.l.b16 %v4716
        %v4884 = vunpack.c.l.b16 %v4717
        %v4885 = vunpack.c.l.b16 %v4718
        %v4886 = vunpack.c.l.b16 %v4719
        %v4887 = vunpack.c.l.b16 %v4720
        %v4888 = vunpack.c.l.b16 %v4721
        %v4889 = vunpack.c.l.b16 %v4722
        %v4890 = vunpack.c.l.b16 %v4723
        %v4891 = vunpack.c.l.b16 %v4724
        %v4892 = vunpack.c.l.b16 %v4725
        %v4893 = vunpack.c.l.b16 %v4726
        %v4894 = vunpack.c.l.b16 %v4727
        %v4895 = vunpack.c.l.b16 %v4728
        %v4896 = vunpack.c.l.b16 %v4729
        %v4897 = vunpack.c.l.b16 %v4730
        %v4898 = vunpack.c.l.b16 %v4731
        %vm4899 = vcmask 1041409
        %v4900 = vsel %vm4899, %v4828, %v4827
        %vm4901 = vcmask 1042434
        %v4902 = vsel %vm4901, %v4829, %v4900
        %vm4903 = vcmask 1043459
        %v4904 = vsel %vm4903, %v4830, %v4902
        %vm4905 = vcmask 1044484
        %v4906 = vsel %vm4905, %v4831, %v4904
        %vm4907 = vcmask 1045509
        %v4908 = vsel %vm4907, %v4832, %v4906
        %vm4909 = vcmask 1046534
        %v4910 = vsel %vm4909, %v4833, %v4908
        %vm4911 = vcmask 1047559
        %v4912 = vsel %vm4911, %v4834, %v4910
        %v4913 = vsel %vm4899, %v4836, %v4835
        %v4914 = vsel %vm4901, %v4837, %v4913
        %v4915 = vsel %vm4903, %v4838, %v4914
        %v4916 = vsel %vm4905, %v4839, %v4915
        %v4917 = vsel %vm4907, %v4840, %v4916
        %v4918 = vsel %vm4909, %v4841, %v4917
        %v4919 = vsel %vm4911, %v4842, %v4918
        %v4920 = vsel %vm4899, %v4844, %v4843
        %v4921 = vsel %vm4901, %v4845, %v4920
        %v4922 = vsel %vm4903, %v4846, %v4921
        %v4923 = vsel %vm4905, %v4847, %v4922
        %v4924 = vsel %vm4907, %v4848, %v4923
        %v4925 = vsel %vm4909, %v4849, %v4924
        %v4926 = vsel %vm4911, %v4850, %v4925
        %v4927 = vsel %vm4899, %v4852, %v4851
        %v4928 = vsel %vm4901, %v4853, %v4927
        %v4929 = vsel %vm4903, %v4854, %v4928
        %v4930 = vsel %vm4905, %v4855, %v4929
        %v4931 = vsel %vm4907, %v4856, %v4930
        %v4932 = vsel %vm4909, %v4857, %v4931
        %v4933 = vsel %vm4911, %v4858, %v4932
        %v4934 = vsel %vm4899, %v4860, %v4859
        %v4935 = vsel %vm4901, %v4861, %v4934
        %v4936 = vsel %vm4903, %v4862, %v4935
        %v4937 = vsel %vm4905, %v4863, %v4936
        %v4938 = vsel %vm4907, %v4864, %v4937
        %v4939 = vsel %vm4909, %v4865, %v4938
        %v4940 = vsel %vm4911, %v4866, %v4939
        %v4941 = vsel %vm4899, %v4868, %v4867
        %v4942 = vsel %vm4901, %v4869, %v4941
        %v4943 = vsel %vm4903, %v4870, %v4942
        %v4944 = vsel %vm4905, %v4871, %v4943
        %v4945 = vsel %vm4907, %v4872, %v4944
        %v4946 = vsel %vm4909, %v4873, %v4945
        %v4947 = vsel %vm4911, %v4874, %v4946
        %v4948 = vsel %vm4899, %v4876, %v4875
        %v4949 = vsel %vm4901, %v4877, %v4948
        %v4950 = vsel %vm4903, %v4878, %v4949
        %v4951 = vsel %vm4905, %v4879, %v4950
        %v4952 = vsel %vm4907, %v4880, %v4951
        %v4953 = vsel %vm4909, %v4881, %v4952
        %v4954 = vsel %vm4911, %v4882, %v4953
        %v4955 = vsel %vm4899, %v4884, %v4883
        %v4956 = vsel %vm4901, %v4885, %v4955
        %v4957 = vsel %vm4903, %v4886, %v4956
        %v4958 = vsel %vm4905, %v4887, %v4957
        %v4959 = vsel %vm4907, %v4888, %v4958
        %v4960 = vsel %vm4909, %v4889, %v4959
        %v4961 = vsel %vm4911, %v4890, %v4960
        %v4962 = vsel %vm4899, %v4892, %v4891
        %v4963 = vsel %vm4901, %v4893, %v4962
        %v4964 = vsel %vm4903, %v4894, %v4963
        %v4965 = vsel %vm4905, %v4895, %v4964
        %v4966 = vsel %vm4907, %v4896, %v4965
        %v4967 = vsel %vm4909, %v4897, %v4966
        %v4968 = vsel %vm4911, %v4898, %v4967
        %v4969 = vpack.c.b16 %v4919, %v4912
        %v4970 = vpack.c.b16 %v4933, %v4926
        %v4971 = vpack.c.b16 %v4947, %v4940
        %v4972 = vpack.c.b16 %v4961, %v4954
        %v4973 = vpack.c.b16 %v4968, %v4968
        %v4995 = vunpack.c.l.b16 %v4732
        %v4996 = vunpack.c.l.b16 %v4733
        %v4997 = vunpack.c.l.b16 %v4734
        %v4998 = vunpack.c.l.b16 %v4735
        %v4999 = vunpack.c.l.b16 %v4736
        %v5000 = vunpack.c.l.b16 %v4737
        %v5001 = vunpack.c.l.b16 %v4738
        %v5002 = vunpack.c.l.b16 %v4739
        %v5003 = vunpack.c.l.b16 %v4740
        %v5004 = vunpack.c.l.b16 %v4741
        %v5005 = vunpack.c.l.b16 %v4742
        %v5006 = vunpack.c.l.b16 %v4743
        %v5007 = vunpack.c.l.b16 %v4744
        %v5008 = vunpack.c.l.b16 %v4745
        %v5009 = vunpack.c.l.b16 %v4746
        %v5010 = vunpack.c.l.b16 %v4747
        %v5011 = vpack.c.b16 %v4996, %v4995
        %v5012 = vpack.c.b16 %v4998, %v4997
        %v5013 = vpack.c.b16 %v5000, %v4999
        %v5014 = vpack.c.b16 %v5002, %v5001
        %v5015 = vpack.c.b16 %v5004, %v5003
        %v5016 = vpack.c.b16 %v5006, %v5005
        %v5017 = vpack.c.b16 %v5008, %v5007
        %v5018 = vpack.c.b16 %v5010, %v5009
        %5027 = vmatprep.subr.bf16.mxu0 0
        %5028 = vmatpush1.bf16.msra.mxu0 %v5011
        %5029 = vmatprep.subr.bf16.mxu0 0
        %5030 = vmatpush1.bf16.msra.mxu0 %v5012
        %5031 = vmatprep.subr.bf16.mxu0 0
        %5032 = vmatpush1.bf16.msra.mxu0 %v5013
        %5033 = vmatprep.subr.bf16.mxu0 0
        %5034 = vmatpush1.bf16.msra.mxu0 %v5014
        %5035 = vmatprep.subr.bf16.mxu0 0
        %5036 = vmatpush1.bf16.msra.mxu0 %v5015
        %5037 = vmatprep.subr.bf16.mxu0 0
        %5038 = vmatpush1.bf16.msra.mxu0 %v5016
        %5039 = vmatprep.subr.bf16.mxu0 0
        %5040 = vmatpush1.bf16.msra.mxu0 %v5017
        %5041 = vmatprep.subr.bf16.mxu0 0
        %5042 = vmatpush1.bf16.msra.mxu0 %v5018
        %5043 = vmatprep.subr.bf16.mxu0 0
        %5044 = vmatpush1.bf16.msra.mxu0 0
        %5045 = vmatprep.subr.bf16.mxu0 0
        %5046 = vmatpush1.bf16.msra.mxu0 0
        %5047 = vmatprep.subr.bf16.mxu0 0
        %5048 = vmatpush1.bf16.msra.mxu0 0
        %5049 = vmatprep.subr.bf16.mxu0 0
        %5050 = vmatpush1.bf16.msra.mxu0 0
        %5051 = vmatprep.subr.bf16.mxu0 0
        %5052 = vmatpush1.bf16.msra.mxu0 0
        %5053 = vmatprep.subr.bf16.mxu0 0
        %5054 = vmatpush1.bf16.msra.mxu0 0
        %5055 = vmatprep.subr.bf16.mxu0 0
        %5056 = vmatpush1.bf16.msra.mxu0 0
        %5057 = vmatprep.subr.bf16.mxu0 0
        %5058 = vmatpush1.bf16.msra.mxu0 0
        %5059 = vmatprep.mubr.bf16.mxu0 0
        %5060 = vmatmul.mubr.bf16.gmra.mrb[0].mxu0 %v4969
        %v5061 = vpop.f32.mrb[0].mxu0
        %v5062 = vadd.f32 %v4753, %v5061
        %v5063 = vpop.f32.mrb[0].mxu0
        %v5064 = vpop.f32.mrb[0].mxu0
        %v5065 = vadd.f32 %v4753, %v5064
        %v5066 = vpop.f32.mrb[0].mxu0
        %5067 = vmatprep.mubr.bf16.mxu0 0
        %5068 = vmatmul.mubr.bf16.gmra.mrb[0].mxu0 %v4970
        %v5069 = vpop.f32.mrb[0].mxu0
        %v5070 = vadd.f32 %v4753, %v5069
        %v5071 = vpop.f32.mrb[0].mxu0
        %v5072 = vpop.f32.mrb[0].mxu0
        %v5073 = vadd.f32 %v4753, %v5072
        %v5074 = vpop.f32.mrb[0].mxu0
        %5075 = vmatprep.mubr.bf16.mxu0 0
        %5076 = vmatmul.mubr.bf16.gmra.mrb[0].mxu0 %v4971
        %v5077 = vpop.f32.mrb[0].mxu0
        %v5078 = vadd.f32 %v4753, %v5077
        %v5079 = vpop.f32.mrb[0].mxu0
        %v5080 = vpop.f32.mrb[0].mxu0
        %v5081 = vadd.f32 %v4753, %v5080
        %v5082 = vpop.f32.mrb[0].mxu0
        %5083 = vmatprep.mubr.bf16.mxu0 0
        %5084 = vmatmul.mubr.bf16.gmra.mrb[0].mxu0 %v4972
        %v5085 = vpop.f32.mrb[0].mxu0
        %v5086 = vadd.f32 %v4753, %v5085
        %v5087 = vpop.f32.mrb[0].mxu0
        %v5088 = vpop.f32.mrb[0].mxu0
        %v5089 = vadd.f32 %v4753, %v5088
        %v5090 = vpop.f32.mrb[0].mxu0
        %5091 = vmatprep.mubr.bf16.mxu0 0
        %5092 = vmatmul.mubr.bf16.gmra.mrb[0].mxu0 %v4973
        %v5093 = vpop.f32.mrb[0].mxu0
        %v5094 = vadd.f32 %v4753, %v5093
        %v5095 = vpop.f32.mrb[0].mxu0
        %v5096 = vpop.f32.mrb[0].mxu0
        %v5097 = vpop.f32.mrb[0].mxu0
        %5098 = vdwg.mxu0
        %v5099 = vxor.u32 %v5062, 2147483648
        %v5100 = vxor.u32 %v5065, 2147483648
        %v5101 = vxor.u32 %v5070, 2147483648
        %v5102 = vxor.u32 %v5073, 2147483648
        %v5103 = vxor.u32 %v5078, 2147483648
        %v5104 = vxor.u32 %v5081, 2147483648
        %v5105 = vxor.u32 %v5086, 2147483648
        %v5106 = vxor.u32 %v5089, 2147483648
        %v5107 = vxor.u32 %v5094, 2147483648
        %v5108 = vmul.f32 %v5099, 1.442695
        %v5109 = vpow.pop %v5108
        %v5110 = vmul.f32 %v5100, 1.442695
        %v5111 = vpow.pop %v5110
        %v5112 = vmul.f32 %v5101, 1.442695
        %v5113 = vpow.pop %v5112
        %v5114 = vmul.f32 %v5102, 1.442695
        %v5115 = vpow.pop %v5114
        %v5116 = vmul.f32 %v5103, 1.442695
        %v5117 = vpow.pop %v5116
        %v5118 = vmul.f32 %v5104, 1.442695
        %v5119 = vpow.pop %v5118
        %v5120 = vmul.f32 %v5105, 1.442695
        %v5121 = vpow.pop %v5120
        %v5122 = vmul.f32 %v5106, 1.442695
        %v5123 = vpow.pop %v5122
        %v5124 = vmul.f32 %v5107, 1.442695
        %v5125 = vpow.pop %v5124
        %v5126 = vadd.f32 %v5109, 1.0
        %v5127 = vadd.f32 %v5111, 1.0
        %v5128 = vadd.f32 %v5113, 1.0
        %v5129 = vadd.f32 %v5115, 1.0
        %v5130 = vadd.f32 %v5117, 1.0
        %v5131 = vadd.f32 %v5119, 1.0
        %v5132 = vadd.f32 %v5121, 1.0
        %v5133 = vadd.f32 %v5123, 1.0
        %v5134 = vadd.f32 %v5125, 1.0
        %v5135 = vrcp.pop %v5126
        %v5136 = vmul.f32 1.0, %v5135
        %v5137 = vrcp.pop %v5127
        %v5138 = vmul.f32 1.0, %v5137
        %v5139 = vrcp.pop %v5128
        %v5140 = vmul.f32 1.0, %v5139
        %v5141 = vrcp.pop %v5129
        %v5142 = vmul.f32 1.0, %v5141
        %v5143 = vrcp.pop %v5130
        %v5144 = vmul.f32 1.0, %v5143
        %v5145 = vrcp.pop %v5131
        %v5146 = vmul.f32 1.0, %v5145
        %v5147 = vrcp.pop %v5132
        %v5148 = vmul.f32 1.0, %v5147
        %v5149 = vrcp.pop %v5133
        %v5150 = vmul.f32 1.0, %v5149
        %v5151 = vrcp.pop %v5134
        %v5152 = vmul.f32 1.0, %v5151
        %v5153 = vmul.f32 %v5062, %v5136
        %v5154 = vmul.f32 %v5065, %v5138
        %v5155 = vmul.f32 %v5070, %v5140
        %v5156 = vmul.f32 %v5073, %v5142
        %v5157 = vmul.f32 %v5078, %v5144
        %v5158 = vmul.f32 %v5081, %v5146
        %v5159 = vmul.f32 %v5086, %v5148
        %v5160 = vmul.f32 %v5089, %v5150
        %v5161 = vmul.f32 %v5094, %v5152
        %v5162 = vpack.c.bf16 %v5154, %v5153
        %v5163 = vpack.c.bf16 %v5156, %v5155
        %v5164 = vpack.c.bf16 %v5158, %v5157
        %v5165 = vpack.c.bf16 %v5160, %v5159
        %v5166 = vpack.c.bf16 %v5161, %v5161
        %v5172 = vunpack.c.l.b16 %v5162
        %v5173 = vunpack.c.h.b16 %v5162
        %v5174 = vunpack.c.l.b16 %v5163
        %v5175 = vunpack.c.h.b16 %v5163
        %v5176 = vunpack.c.l.b16 %v5164
        %v5177 = vunpack.c.h.b16 %v5164
        %v5178 = vunpack.c.l.b16 %v5165
        %v5179 = vunpack.c.h.b16 %v5165
        %v5180 = vunpack.c.l.b16 %v5166
        %v5181 = vld [vmem:[#allocation2] sm:$0xf]
        %v5182 = vld [vmem:[#allocation2 + $0x4] sm:$0xf]
        %v5183 = vld [vmem:[#allocation2 + $0x8] sm:$0xf]
        %v5184 = vld [vmem:[#allocation2 + $0xc] sm:$0xf]
        %v5185 = vld [vmem:[#allocation2 + $0x10] sm:$0xf]
        %v5186 = vld [vmem:[#allocation2 + $0x14] sm:$0xf]
        %v5187 = vld [vmem:[#allocation2 + $0x18] sm:$0xf]
        %v5188 = vld [vmem:[#allocation2 + $0x1c] sm:$0xf]
        %v5189 = vld [vmem:[#allocation2 + $0x20] sm:$0xf]
        %v5190 = vld [vmem:[#allocation2 + $0x24] sm:$0xf]
        %v5191 = vld [vmem:[#allocation2 + $0x28] sm:$0xf]
        %v5192 = vld [vmem:[#allocation2 + $0x2c] sm:$0xf]
        %v5193 = vld [vmem:[#allocation2 + $0x30] sm:$0xf]
        %v5194 = vld [vmem:[#allocation2 + $0x34] sm:$0xf]
        %v5195 = vld [vmem:[#allocation2 + $0x38] sm:$0xf]
        %v5196 = vld [vmem:[#allocation2 + $0x3c] sm:$0xf]
        %s5197 = scalar_lea.vmem [#allocation2], 64
        %v5198 = vld [vmem:[%s5197] sm:$0xf]
        %v5199 = vld [vmem:[%s5197 + $0x4] sm:$0xf]
        %v5200 = vld [vmem:[%s5197 + $0x8] sm:$0xf]
        %v5201 = vld [vmem:[%s5197 + $0xc] sm:$0xf]
        %v5202 = vld [vmem:[%s5197 + $0x10] sm:$0xf]
        %v5203 = vld [vmem:[%s5197 + $0x14] sm:$0xf]
        %v5204 = vld [vmem:[%s5197 + $0x18] sm:$0xf]
        %v5205 = vld [vmem:[%s5197 + $0x1c] sm:$0xf]
        %v5206 = vld [vmem:[%s5197 + $0x20] sm:$0xf]
        %v5207 = vld [vmem:[%s5197 + $0x24] sm:$0xf]
        %v5208 = vld [vmem:[%s5197 + $0x28] sm:$0xf]
        %v5209 = vld [vmem:[%s5197 + $0x2c] sm:$0xf]
        %v5210 = vld [vmem:[%s5197 + $0x30] sm:$0xf]
        %v5211 = vld [vmem:[%s5197 + $0x34] sm:$0xf]
        %v5212 = vld [vmem:[%s5197 + $0x38] sm:$0xf]
        %v5213 = vld [vmem:[%s5197 + $0x3c] sm:$0xf]
        %v5214 = vpack.c.b16 %v5176, %v5175
        %v5232 = vunpack.c.l.b16 %v5198
        %v5233 = vunpack.c.l.b16 %v5199
        %v5234 = vunpack.c.l.b16 %v5200
        %v5235 = vunpack.c.l.b16 %v5201
        %v5236 = vunpack.c.l.b16 %v5202
        %v5237 = vunpack.c.l.b16 %v5203
        %v5238 = vunpack.c.l.b16 %v5204
        %v5239 = vunpack.c.l.b16 %v5205
        %v5240 = vunpack.c.l.b16 %v5206
        %v5241 = vunpack.c.l.b16 %v5207
        %v5242 = vunpack.c.l.b16 %v5208
        %v5243 = vunpack.c.l.b16 %v5209
        %v5244 = vunpack.c.l.b16 %v5210
        %v5245 = vunpack.c.l.b16 %v5211
        %v5246 = vunpack.c.l.b16 %v5212
        %v5247 = vunpack.c.l.b16 %v5213
        %v5248 = vpack.c.b16 %v5233, %v5232
        %v5249 = vpack.c.b16 %v5235, %v5234
        %v5250 = vpack.c.b16 %v5237, %v5236
        %v5251 = vpack.c.b16 %v5239, %v5238
        %v5252 = vpack.c.b16 %v5241, %v5240
        %v5253 = vpack.c.b16 %v5243, %v5242
        %v5254 = vpack.c.b16 %v5245, %v5244
        %v5255 = vpack.c.b16 %v5247, %v5246
        %5264 = vmatprep.subr.bf16.mxu0 0
        %5265 = vmatpush1.bf16.msra.mxu0 %v5248
        %5266 = vmatprep.subr.bf16.mxu0 0
        %5267 = vmatpush1.bf16.msra.mxu0 %v5249
        %5268 = vmatprep.subr.bf16.mxu0 0
        %5269 = vmatpush1.bf16.msra.mxu0 %v5250
        %5270 = vmatprep.subr.bf16.mxu0 0
        %5271 = vmatpush1.bf16.msra.mxu0 %v5251
        %5272 = vmatprep.subr.bf16.mxu0 0
        %5273 = vmatpush1.bf16.msra.mxu0 %v5252
        %5274 = vmatprep.subr.bf16.mxu0 0
        %5275 = vmatpush1.bf16.msra.mxu0 %v5253
        %5276 = vmatprep.subr.bf16.mxu0 0
        %5277 = vmatpush1.bf16.msra.mxu0 %v5254
        %5278 = vmatprep.subr.bf16.mxu0 0
        %5279 = vmatpush1.bf16.msra.mxu0 %v5255
        %5280 = vmatprep.subr.bf16.mxu0 0
        %5281 = vmatpush1.bf16.msra.mxu0 0
        %5282 = vmatprep.subr.bf16.mxu0 0
        %5283 = vmatpush1.bf16.msra.mxu0 0
        %5284 = vmatprep.subr.bf16.mxu0 0
        %5285 = vmatpush1.bf16.msra.mxu0 0
        %5286 = vmatprep.subr.bf16.mxu0 0
        %5287 = vmatpush1.bf16.msra.mxu0 0
        %5288 = vmatprep.subr.bf16.mxu0 0
        %5289 = vmatpush1.bf16.msra.mxu0 0
        %5290 = vmatprep.subr.bf16.mxu0 0
        %5291 = vmatpush1.bf16.msra.mxu0 0
        %5292 = vmatprep.subr.bf16.mxu0 0
        %5293 = vmatpush1.bf16.msra.mxu0 0
        %5294 = vmatprep.subr.bf16.mxu0 0
        %5295 = vmatpush1.bf16.msra.mxu0 0
        %5296 = vmatprep.mubr.bf16.mxu0 0
        %5297 = vmatmul.mubr.bf16.gmra.mrb[0].mxu0 %v5214
        %v5298 = vpop.f32.mrb[0].mxu0
        %v5299 = vadd.f32 0.0, %v5298
        %v5300 = vpop.f32.mrb[0].mxu0
        %v5301 = vpop.f32.mrb[0].mxu0
        %v5302 = vadd.f32 0.0, %v5301
        %v5303 = vpop.f32.mrb[0].mxu0
        %5304 = vdwg.mxu0
        %v5305 = vpack.c.b16 %v5173, %v5172
        %v5323 = vunpack.c.l.b16 %v5181
        %v5324 = vunpack.c.l.b16 %v5182
        %v5325 = vunpack.c.l.b16 %v5183
        %v5326 = vunpack.c.l.b16 %v5184
        %v5327 = vunpack.c.l.b16 %v5185
        %v5328 = vunpack.c.l.b16 %v5186
        %v5329 = vunpack.c.l.b16 %v5187
        %v5330 = vunpack.c.l.b16 %v5188
        %v5331 = vunpack.c.l.b16 %v5189
        %v5332 = vunpack.c.l.b16 %v5190
        %v5333 = vunpack.c.l.b16 %v5191
        %v5334 = vunpack.c.l.b16 %v5192
        %v5335 = vunpack.c.l.b16 %v5193
        %v5336 = vunpack.c.l.b16 %v5194
        %v5337 = vunpack.c.l.b16 %v5195
        %v5338 = vunpack.c.l.b16 %v5196
        %v5339 = vpack.c.b16 %v5324, %v5323
        %v5340 = vpack.c.b16 %v5326, %v5325
        %v5341 = vpack.c.b16 %v5328, %v5327
        %v5342 = vpack.c.b16 %v5330, %v5329
        %v5343 = vpack.c.b16 %v5332, %v5331
        %v5344 = vpack.c.b16 %v5334, %v5333
        %v5345 = vpack.c.b16 %v5336, %v5335
        %v5346 = vpack.c.b16 %v5338, %v5337
        %5355 = vmatprep.subr.bf16.mxu0 0
        %5356 = vmatpush1.bf16.msra.mxu0 %v5339
        %5357 = vmatprep.subr.bf16.mxu0 0
        %5358 = vmatpush1.bf16.msra.mxu0 %v5340
        %5359 = vmatprep.subr.bf16.mxu0 0
        %5360 = vmatpush1.bf16.msra.mxu0 %v5341
        %5361 = vmatprep.subr.bf16.mxu0 0
        %5362 = vmatpush1.bf16.msra.mxu0 %v5342
        %5363 = vmatprep.subr.bf16.mxu0 0
        %5364 = vmatpush1.bf16.msra.mxu0 %v5343
        %5365 = vmatprep.subr.bf16.mxu0 0
        %5366 = vmatpush1.bf16.msra.mxu0 %v5344
        %5367 = vmatprep.subr.bf16.mxu0 0
        %5368 = vmatpush1.bf16.msra.mxu0 %v5345
        %5369 = vmatprep.subr.bf16.mxu0 0
        %5370 = vmatpush1.bf16.msra.mxu0 %v5346
        %5371 = vmatprep.subr.bf16.mxu0 0
        %5372 = vmatpush1.bf16.msra.mxu0 0
        %5373 = vmatprep.subr.bf16.mxu0 0
        %5374 = vmatpush1.bf16.msra.mxu0 0
        %5375 = vmatprep.subr.bf16.mxu0 0
        %5376 = vmatpush1.bf16.msra.mxu0 0
        %5377 = vmatprep.subr.bf16.mxu0 0
        %5378 = vmatpush1.bf16.msra.mxu0 0
        %5379 = vmatprep.subr.bf16.mxu0 0
        %5380 = vmatpush1.bf16.msra.mxu0 0
        %5381 = vmatprep.subr.bf16.mxu0 0
        %5382 = vmatpush1.bf16.msra.mxu0 0
        %5383 = vmatprep.subr.bf16.mxu0 0
        %5384 = vmatpush1.bf16.msra.mxu0 0
        %5385 = vmatprep.subr.bf16.mxu0 0
        %5386 = vmatpush1.bf16.msra.mxu0 0
        %5387 = vmatprep.mubr.bf16.mxu0 0
        %5388 = vmatmul.mubr.bf16.gmra.mrb[0].mxu0 %v5305
        %v5389 = vpop.f32.mrb[0].mxu0
        %v5390 = vadd.f32 %v5299, %v5389
        %v5391 = vpop.f32.mrb[0].mxu0
        %v5392 = vpop.f32.mrb[0].mxu0
        %v5393 = vadd.f32 %v5302, %v5392
        %v5394 = vpop.f32.mrb[0].mxu0
        %5395 = vdwg.mxu0
        %s5396 = scalar_lea.vmem [#allocation2], 128
        %v5397 = vld [vmem:[%s5396] sm:$0xf]
        %v5398 = vld [vmem:[%s5396 + $0x4] sm:$0xf]
        %v5399 = vld [vmem:[%s5396 + $0x8] sm:$0xf]
        %v5400 = vld [vmem:[%s5396 + $0xc] sm:$0xf]
        %v5401 = vld [vmem:[%s5396 + $0x10] sm:$0xf]
        %v5402 = vld [vmem:[%s5396 + $0x14] sm:$0xf]
        %v5403 = vld [vmem:[%s5396 + $0x18] sm:$0xf]
        %v5404 = vld [vmem:[%s5396 + $0x1c] sm:$0xf]
        %v5405 = vld [vmem:[%s5396 + $0x20] sm:$0xf]
        %v5406 = vld [vmem:[%s5396 + $0x24] sm:$0xf]
        %v5407 = vld [vmem:[%s5396 + $0x28] sm:$0xf]
        %v5408 = vld [vmem:[%s5396 + $0x2c] sm:$0xf]
        %v5409 = vld [vmem:[%s5396 + $0x30] sm:$0xf]
        %v5410 = vld [vmem:[%s5396 + $0x34] sm:$0xf]
        %v5411 = vld [vmem:[%s5396 + $0x38] sm:$0xf]
        %v5412 = vld [vmem:[%s5396 + $0x3c] sm:$0xf]
        %v5413 = vpack.c.b16 %v5179, %v5178
        %v5431 = vunpack.c.l.b16 %v5397
        %v5432 = vunpack.c.l.b16 %v5398
        %v5433 = vunpack.c.l.b16 %v5399
        %v5434 = vunpack.c.l.b16 %v5400
        %v5435 = vunpack.c.l.b16 %v5401
        %v5436 = vunpack.c.l.b16 %v5402
        %v5437 = vunpack.c.l.b16 %v5403
        %v5438 = vunpack.c.l.b16 %v5404
        %v5439 = vunpack.c.l.b16 %v5405
        %v5440 = vunpack.c.l.b16 %v5406
        %v5441 = vunpack.c.l.b16 %v5407
        %v5442 = vunpack.c.l.b16 %v5408
        %v5443 = vunpack.c.l.b16 %v5409
        %v5444 = vunpack.c.l.b16 %v5410
        %v5445 = vunpack.c.l.b16 %v5411
        %v5446 = vunpack.c.l.b16 %v5412
        %v5447 = vpack.c.b16 %v5432, %v5431
        %v5448 = vpack.c.b16 %v5434, %v5433
        %v5449 = vpack.c.b16 %v5436, %v5435
        %v5450 = vpack.c.b16 %v5438, %v5437
        %v5451 = vpack.c.b16 %v5440, %v5439
        %v5452 = vpack.c.b16 %v5442, %v5441
        %v5453 = vpack.c.b16 %v5444, %v5443
        %v5454 = vpack.c.b16 %v5446, %v5445
        %5463 = vmatprep.subr.bf16.mxu0 0
        %5464 = vmatpush1.bf16.msra.mxu0 %v5447
        %5465 = vmatprep.subr.bf16.mxu0 0
        %5466 = vmatpush1.bf16.msra.mxu0 %v5448
        %5467 = vmatprep.subr.bf16.mxu0 0
        %5468 = vmatpush1.bf16.msra.mxu0 %v5449
        %5469 = vmatprep.subr.bf16.mxu0 0
        %5470 = vmatpush1.bf16.msra.mxu0 %v5450
        %5471 = vmatprep.subr.bf16.mxu0 0
        %5472 = vmatpush1.bf16.msra.mxu0 %v5451
        %5473 = vmatprep.subr.bf16.mxu0 0
        %5474 = vmatpush1.bf16.msra.mxu0 %v5452
        %5475 = vmatprep.subr.bf16.mxu0 0
        %5476 = vmatpush1.bf16.msra.mxu0 %v5453
        %5477 = vmatprep.subr.bf16.mxu0 0
        %5478 = vmatpush1.bf16.msra.mxu0 %v5454
        %5479 = vmatprep.subr.bf16.mxu0 0
        %5480 = vmatpush1.bf16.msra.mxu0 0
        %5481 = vmatprep.subr.bf16.mxu0 0
        %5482 = vmatpush1.bf16.msra.mxu0 0
        %5483 = vmatprep.subr.bf16.mxu0 0
        %5484 = vmatpush1.bf16.msra.mxu0 0
        %5485 = vmatprep.subr.bf16.mxu0 0
        %5486 = vmatpush1.bf16.msra.mxu0 0
        %5487 = vmatprep.subr.bf16.mxu0 0
        %5488 = vmatpush1.bf16.msra.mxu0 0
        %5489 = vmatprep.subr.bf16.mxu0 0
        %5490 = vmatpush1.bf16.msra.mxu0 0
        %5491 = vmatprep.subr.bf16.mxu0 0
        %5492 = vmatpush1.bf16.msra.mxu0 0
        %5493 = vmatprep.subr.bf16.mxu0 0
        %5494 = vmatpush1.bf16.msra.mxu0 0
        %5495 = vmatprep.mubr.bf16.mxu0 0
        %5496 = vmatmul.mubr.bf16.gmra.mrb[0].mxu0 %v5413
        %v5497 = vpop.f32.mrb[0].mxu0
        %v5498 = vadd.f32 0.0, %v5497
        %v5499 = vpop.f32.mrb[0].mxu0
        %v5500 = vpop.f32.mrb[0].mxu0
        %v5501 = vadd.f32 0.0, %v5500
        %v5502 = vpop.f32.mrb[0].mxu0
        %5503 = vdwg.mxu0
        %v5504 = vadd.f32 %v5390, %v5498
        %v5505 = vadd.f32 %v5393, %v5501
        %s5506 = scalar_lea.vmem [#allocation2], 192
        %v5507 = vld [vmem:[%s5506] sm:$0xf]
        %v5508 = vld [vmem:[%s5506 + $0x4] sm:$0xf]
        %v5509 = vld [vmem:[%s5506 + $0x8] sm:$0xf]
        %v5510 = vld [vmem:[%s5506 + $0xc] sm:$0xf]
        %v5511 = vld [vmem:[%s5506 + $0x10] sm:$0xf]
        %v5512 = vld [vmem:[%s5506 + $0x14] sm:$0xf]
        %v5513 = vld [vmem:[%s5506 + $0x18] sm:$0xf]
        %v5514 = vld [vmem:[%s5506 + $0x1c] sm:$0xf]
        %v5515 = vld [vmem:[%s5506 + $0x20] sm:$0xf]
        %v5516 = vld [vmem:[%s5506 + $0x24] sm:$0xf]
        %v5517 = vld [vmem:[%s5506 + $0x28] sm:$0xf]
        %v5518 = vld [vmem:[%s5506 + $0x2c] sm:$0xf]
        %v5519 = vld [vmem:[%s5506 + $0x30] sm:$0xf]
        %v5520 = vld [vmem:[%s5506 + $0x34] sm:$0xf]
        %v5521 = vld [vmem:[%s5506 + $0x38] sm:$0xf]
        %v5522 = vld [vmem:[%s5506 + $0x3c] sm:$0xf]
        %v5523 = vpack.c.b16 %v5174, %v5174
        %vm5524 = vsmask.f32 7424
        %v5526 = vshrl.u32 %v5305, 16
        %v5528 = vshll.u32 %v5305, 16
        %v5530 = vrot.slane %v5528, 1
        %v5531 = vor.u32 %v5526, %v5530
        %v5533 = vshll.u32 %v5523, 16
        %v5535 = vrot.slane %v5533, 1
        %v5536 = vsel %vm5524, %v5531, %v5535
        %v5554 = vunpack.c.l.b16 %v5507
        %v5555 = vunpack.c.l.b16 %v5508
        %v5556 = vunpack.c.l.b16 %v5509
        %v5557 = vunpack.c.l.b16 %v5510
        %v5558 = vunpack.c.l.b16 %v5511
        %v5559 = vunpack.c.l.b16 %v5512
        %v5560 = vunpack.c.l.b16 %v5513
        %v5561 = vunpack.c.l.b16 %v5514
        %v5562 = vunpack.c.l.b16 %v5515
        %v5563 = vunpack.c.l.b16 %v5516
        %v5564 = vunpack.c.l.b16 %v5517
        %v5565 = vunpack.c.l.b16 %v5518
        %v5566 = vunpack.c.l.b16 %v5519
        %v5567 = vunpack.c.l.b16 %v5520
        %v5568 = vunpack.c.l.b16 %v5521
        %v5569 = vunpack.c.l.b16 %v5522
        %v5570 = vpack.c.b16 %v5555, %v5554
        %v5571 = vpack.c.b16 %v5557, %v5556
        %v5572 = vpack.c.b16 %v5559, %v5558
        %v5573 = vpack.c.b16 %v5561, %v5560
        %v5574 = vpack.c.b16 %v5563, %v5562
        %v5575 = vpack.c.b16 %v5565, %v5564
        %v5576 = vpack.c.b16 %v5567, %v5566
        %v5577 = vpack.c.b16 %v5569, %v5568
        %5586 = vmatprep.subr.bf16.mxu0 0
        %5587 = vmatpush1.bf16.msra.mxu0 %v5570
        %5588 = vmatprep.subr.bf16.mxu0 0
        %5589 = vmatpush1.bf16.msra.mxu0 %v5571
        %5590 = vmatprep.subr.bf16.mxu0 0
        %5591 = vmatpush1.bf16.msra.mxu0 %v5572
        %5592 = vmatprep.subr.bf16.mxu0 0
        %5593 = vmatpush1.bf16.msra.mxu0 %v5573
        %5594 = vmatprep.subr.bf16.mxu0 0
        %5595 = vmatpush1.bf16.msra.mxu0 %v5574
        %5596 = vmatprep.subr.bf16.mxu0 0
        %5597 = vmatpush1.bf16.msra.mxu0 %v5575
        %5598 = vmatprep.subr.bf16.mxu0 0
        %5599 = vmatpush1.bf16.msra.mxu0 %v5576
        %5600 = vmatprep.subr.bf16.mxu0 0
        %5601 = vmatpush1.bf16.msra.mxu0 %v5577
        %5602 = vmatprep.subr.bf16.mxu0 0
        %5603 = vmatpush1.bf16.msra.mxu0 0
        %5604 = vmatprep.subr.bf16.mxu0 0
        %5605 = vmatpush1.bf16.msra.mxu0 0
        %5606 = vmatprep.subr.bf16.mxu0 0
        %5607 = vmatpush1.bf16.msra.mxu0 0
        %5608 = vmatprep.subr.bf16.mxu0 0
        %5609 = vmatpush1.bf16.msra.mxu0 0
        %5610 = vmatprep.subr.bf16.mxu0 0
        %5611 = vmatpush1.bf16.msra.mxu0 0
        %5612 = vmatprep.subr.bf16.mxu0 0
        %5613 = vmatpush1.bf16.msra.mxu0 0
        %5614 = vmatprep.subr.bf16.mxu0 0
        %5615 = vmatpush1.bf16.msra.mxu0 0
        %5616 = vmatprep.subr.bf16.mxu0 0
        %5617 = vmatpush1.bf16.msra.mxu0 0
        %5618 = vmatprep.mubr.bf16.mxu0 0
        %5619 = vmatmul.mubr.bf16.gmra.mrb[0].mxu0 %v5536
        %v5620 = vpop.f32.mrb[0].mxu0
        %v5621 = vadd.f32 0.0, %v5620
        %v5622 = vpop.f32.mrb[0].mxu0
        %v5623 = vpop.f32.mrb[0].mxu0
        %v5624 = vadd.f32 0.0, %v5623
        %v5625 = vpop.f32.mrb[0].mxu0
        %5626 = vdwg.mxu0
        %v5627 = vadd.f32 %v5504, %v5621
        %v5628 = vadd.f32 %v5505, %v5624
        %s5629 = scalar_lea.vmem [#allocation2], 256
        %v5630 = vld [vmem:[%s5629] sm:$0xf]
        %v5631 = vld [vmem:[%s5629 + $0x4] sm:$0xf]
        %v5632 = vld [vmem:[%s5629 + $0x8] sm:$0xf]
        %v5633 = vld [vmem:[%s5629 + $0xc] sm:$0xf]
        %v5634 = vld [vmem:[%s5629 + $0x10] sm:$0xf]
        %v5635 = vld [vmem:[%s5629 + $0x14] sm:$0xf]
        %v5636 = vld [vmem:[%s5629 + $0x18] sm:$0xf]
        %v5637 = vld [vmem:[%s5629 + $0x1c] sm:$0xf]
        %v5638 = vld [vmem:[%s5629 + $0x20] sm:$0xf]
        %v5639 = vld [vmem:[%s5629 + $0x24] sm:$0xf]
        %v5640 = vld [vmem:[%s5629 + $0x28] sm:$0xf]
        %v5641 = vld [vmem:[%s5629 + $0x2c] sm:$0xf]
        %v5642 = vld [vmem:[%s5629 + $0x30] sm:$0xf]
        %v5643 = vld [vmem:[%s5629 + $0x34] sm:$0xf]
        %v5644 = vld [vmem:[%s5629 + $0x38] sm:$0xf]
        %v5645 = vld [vmem:[%s5629 + $0x3c] sm:$0xf]
        %v5646 = vpack.c.b16 %v5177, %v5177
        %v5648 = vshrl.u32 %v5214, 16
        %v5650 = vshll.u32 %v5214, 16
        %v5652 = vrot.slane %v5650, 1
        %v5653 = vor.u32 %v5648, %v5652
        %v5655 = vshll.u32 %v5646, 16
        %v5657 = vrot.slane %v5655, 1
        %v5658 = vsel %vm5524, %v5653, %v5657
        %v5676 = vunpack.c.l.b16 %v5630
        %v5677 = vunpack.c.l.b16 %v5631
        %v5678 = vunpack.c.l.b16 %v5632
        %v5679 = vunpack.c.l.b16 %v5633
        %v5680 = vunpack.c.l.b16 %v5634
        %v5681 = vunpack.c.l.b16 %v5635
        %v5682 = vunpack.c.l.b16 %v5636
        %v5683 = vunpack.c.l.b16 %v5637
        %v5684 = vunpack.c.l.b16 %v5638
        %v5685 = vunpack.c.l.b16 %v5639
        %v5686 = vunpack.c.l.b16 %v5640
        %v5687 = vunpack.c.l.b16 %v5641
        %v5688 = vunpack.c.l.b16 %v5642
        %v5689 = vunpack.c.l.b16 %v5643
        %v5690 = vunpack.c.l.b16 %v5644
        %v5691 = vunpack.c.l.b16 %v5645
        %v5692 = vpack.c.b16 %v5677, %v5676
        %v5693 = vpack.c.b16 %v5679, %v5678
        %v5694 = vpack.c.b16 %v5681, %v5680
        %v5695 = vpack.c.b16 %v5683, %v5682
        %v5696 = vpack.c.b16 %v5685, %v5684
        %v5697 = vpack.c.b16 %v5687, %v5686
        %v5698 = vpack.c.b16 %v5689, %v5688
        %v5699 = vpack.c.b16 %v5691, %v5690
        %5708 = vmatprep.subr.bf16.mxu0 0
        %5709 = vmatpush1.bf16.msra.mxu0 %v5692
        %5710 = vmatprep.subr.bf16.mxu0 0
        %5711 = vmatpush1.bf16.msra.mxu0 %v5693
        %5712 = vmatprep.subr.bf16.mxu0 0
        %5713 = vmatpush1.bf16.msra.mxu0 %v5694
        %5714 = vmatprep.subr.bf16.mxu0 0
        %5715 = vmatpush1.bf16.msra.mxu0 %v5695
        %5716 = vmatprep.subr.bf16.mxu0 0
        %5717 = vmatpush1.bf16.msra.mxu0 %v5696
        %5718 = vmatprep.subr.bf16.mxu0 0
        %5719 = vmatpush1.bf16.msra.mxu0 %v5697
        %5720 = vmatprep.subr.bf16.mxu0 0
        %5721 = vmatpush1.bf16.msra.mxu0 %v5698
        %5722 = vmatprep.subr.bf16.mxu0 0
        %5723 = vmatpush1.bf16.msra.mxu0 %v5699
        %5724 = vmatprep.subr.bf16.mxu0 0
        %5725 = vmatpush1.bf16.msra.mxu0 0
        %5726 = vmatprep.subr.bf16.mxu0 0
        %5727 = vmatpush1.bf16.msra.mxu0 0
        %5728 = vmatprep.subr.bf16.mxu0 0
        %5729 = vmatpush1.bf16.msra.mxu0 0
        %5730 = vmatprep.subr.bf16.mxu0 0
        %5731 = vmatpush1.bf16.msra.mxu0 0
        %5732 = vmatprep.subr.bf16.mxu0 0
        %5733 = vmatpush1.bf16.msra.mxu0 0
        %5734 = vmatprep.subr.bf16.mxu0 0
        %5735 = vmatpush1.bf16.msra.mxu0 0
        %5736 = vmatprep.subr.bf16.mxu0 0
        %5737 = vmatpush1.bf16.msra.mxu0 0
        %5738 = vmatprep.subr.bf16.mxu0 0
        %5739 = vmatpush1.bf16.msra.mxu0 0
        %5740 = vmatprep.mubr.bf16.mxu0 0
        %5741 = vmatmul.mubr.bf16.gmra.mrb[0].mxu0 %v5658
        %v5742 = vpop.f32.mrb[0].mxu0
        %v5743 = vadd.f32 0.0, %v5742
        %v5744 = vpop.f32.mrb[0].mxu0
        %v5745 = vpop.f32.mrb[0].mxu0
        %v5746 = vadd.f32 0.0, %v5745
        %v5747 = vpop.f32.mrb[0].mxu0
        %5748 = vdwg.mxu0
        %v5749 = vadd.f32 %v5627, %v5743
        %v5750 = vadd.f32 %v5628, %v5746
        %s5751 = scalar_lea.vmem [#allocation2], 320
        %v5752 = vld [vmem:[%s5751] sm:$0xf]
        %v5753 = vld [vmem:[%s5751 + $0x4] sm:$0xf]
        %v5754 = vld [vmem:[%s5751 + $0x8] sm:$0xf]
        %v5755 = vld [vmem:[%s5751 + $0xc] sm:$0xf]
        %v5756 = vld [vmem:[%s5751 + $0x10] sm:$0xf]
        %v5757 = vld [vmem:[%s5751 + $0x14] sm:$0xf]
        %v5758 = vld [vmem:[%s5751 + $0x18] sm:$0xf]
        %v5759 = vld [vmem:[%s5751 + $0x1c] sm:$0xf]
        %v5760 = vld [vmem:[%s5751 + $0x20] sm:$0xf]
        %v5761 = vld [vmem:[%s5751 + $0x24] sm:$0xf]
        %v5762 = vld [vmem:[%s5751 + $0x28] sm:$0xf]
        %v5763 = vld [vmem:[%s5751 + $0x2c] sm:$0xf]
        %v5764 = vld [vmem:[%s5751 + $0x30] sm:$0xf]
        %v5765 = vld [vmem:[%s5751 + $0x34] sm:$0xf]
        %v5766 = vld [vmem:[%s5751 + $0x38] sm:$0xf]
        %v5767 = vld [vmem:[%s5751 + $0x3c] sm:$0xf]
        %v5768 = vpack.c.b16 %v5180, %v5180
        %v5770 = vshrl.u32 %v5413, 16
        %v5772 = vshll.u32 %v5413, 16
        %v5774 = vrot.slane %v5772, 1
        %v5775 = vor.u32 %v5770, %v5774
        %v5777 = vshll.u32 %v5768, 16
        %v5779 = vrot.slane %v5777, 1
        %v5780 = vsel %vm5524, %v5775, %v5779
        %v5798 = vunpack.c.l.b16 %v5752
        %v5799 = vunpack.c.l.b16 %v5753
        %v5800 = vunpack.c.l.b16 %v5754
        %v5801 = vunpack.c.l.b16 %v5755
        %v5802 = vunpack.c.l.b16 %v5756
        %v5803 = vunpack.c.l.b16 %v5757
        %v5804 = vunpack.c.l.b16 %v5758
        %v5805 = vunpack.c.l.b16 %v5759
        %v5806 = vunpack.c.l.b16 %v5760
        %v5807 = vunpack.c.l.b16 %v5761
        %v5808 = vunpack.c.l.b16 %v5762
        %v5809 = vunpack.c.l.b16 %v5763
        %v5810 = vunpack.c.l.b16 %v5764
        %v5811 = vunpack.c.l.b16 %v5765
        %v5812 = vunpack.c.l.b16 %v5766
        %v5813 = vunpack.c.l.b16 %v5767
        %v5814 = vpack.c.b16 %v5799, %v5798
        %v5815 = vpack.c.b16 %v5801, %v5800
        %v5816 = vpack.c.b16 %v5803, %v5802
        %v5817 = vpack.c.b16 %v5805, %v5804
        %v5818 = vpack.c.b16 %v5807, %v5806
        %v5819 = vpack.c.b16 %v5809, %v5808
        %v5820 = vpack.c.b16 %v5811, %v5810
        %v5821 = vpack.c.b16 %v5813, %v5812
        %5830 = vmatprep.subr.bf16.mxu0 0
        %5831 = vmatpush1.bf16.msra.mxu0 %v5814
        %5832 = vmatprep.subr.bf16.mxu0 0
        %5833 = vmatpush1.bf16.msra.mxu0 %v5815
        %5834 = vmatprep.subr.bf16.mxu0 0
        %5835 = vmatpush1.bf16.msra.mxu0 %v5816
        %5836 = vmatprep.subr.bf16.mxu0 0
        %5837 = vmatpush1.bf16.msra.mxu0 %v5817
        %5838 = vmatprep.subr.bf16.mxu0 0
        %5839 = vmatpush1.bf16.msra.mxu0 %v5818
        %5840 = vmatprep.subr.bf16.mxu0 0
        %5841 = vmatpush1.bf16.msra.mxu0 %v5819
        %5842 = vmatprep.subr.bf16.mxu0 0
        %5843 = vmatpush1.bf16.msra.mxu0 %v5820
        %5844 = vmatprep.subr.bf16.mxu0 0
        %5845 = vmatpush1.bf16.msra.mxu0 %v5821
        %5846 = vmatprep.subr.bf16.mxu0 0
        %5847 = vmatpush1.bf16.msra.mxu0 0
        %5848 = vmatprep.subr.bf16.mxu0 0
        %5849 = vmatpush1.bf16.msra.mxu0 0
        %5850 = vmatprep.subr.bf16.mxu0 0
        %5851 = vmatpush1.bf16.msra.mxu0 0
        %5852 = vmatprep.subr.bf16.mxu0 0
        %5853 = vmatpush1.bf16.msra.mxu0 0
        %5854 = vmatprep.subr.bf16.mxu0 0
        %5855 = vmatpush1.bf16.msra.mxu0 0
        %5856 = vmatprep.subr.bf16.mxu0 0
        %5857 = vmatpush1.bf16.msra.mxu0 0
        %5858 = vmatprep.subr.bf16.mxu0 0
        %5859 = vmatpush1.bf16.msra.mxu0 0
        %5860 = vmatprep.subr.bf16.mxu0 0
        %5861 = vmatpush1.bf16.msra.mxu0 0
        %5862 = vmatprep.mubr.bf16.mxu0 0
        %5863 = vmatmul.mubr.bf16.gmra.mrb[0].mxu0 %v5780
        %v5864 = vpop.f32.mrb[0].mxu0
        %v5865 = vadd.f32 0.0, %v5864
        %v5866 = vpop.f32.mrb[0].mxu0
        %v5867 = vpop.f32.mrb[0].mxu0
        %v5868 = vadd.f32 0.0, %v5867
        %v5869 = vpop.f32.mrb[0].mxu0
        %5870 = vdwg.mxu0
        %v5871 = vadd.f32 %v5749, %v5865
        %v5872 = vadd.f32 %v5750, %v5868
        %s5873 = scalar_lea.vmem [#allocation2], 384
        %v5874 = vld [vmem:[%s5873] sm:$0xf]
        %v5875 = vld [vmem:[%s5873 + $0x4] sm:$0xf]
        %v5876 = vld [vmem:[%s5873 + $0x8] sm:$0xf]
        %v5877 = vld [vmem:[%s5873 + $0xc] sm:$0xf]
        %v5878 = vld [vmem:[%s5873 + $0x10] sm:$0xf]
        %v5879 = vld [vmem:[%s5873 + $0x14] sm:$0xf]
        %v5880 = vld [vmem:[%s5873 + $0x18] sm:$0xf]
        %v5881 = vld [vmem:[%s5873 + $0x1c] sm:$0xf]
        %v5882 = vld [vmem:[%s5873 + $0x20] sm:$0xf]
        %v5883 = vld [vmem:[%s5873 + $0x24] sm:$0xf]
        %v5884 = vld [vmem:[%s5873 + $0x28] sm:$0xf]
        %v5885 = vld [vmem:[%s5873 + $0x2c] sm:$0xf]
        %v5886 = vld [vmem:[%s5873 + $0x30] sm:$0xf]
        %v5887 = vld [vmem:[%s5873 + $0x34] sm:$0xf]
        %v5888 = vld [vmem:[%s5873 + $0x38] sm:$0xf]
        %v5889 = vld [vmem:[%s5873 + $0x3c] sm:$0xf]
        %vm5890 = vcmask 1046528
        %v5891 = vrot.slane %v5305, 1
        %v5892 = vrot.slane %v5523, 1
        %v5893 = vsel %vm5890, %v5891, %v5892
        %v5911 = vunpack.c.l.b16 %v5874
        %v5912 = vunpack.c.l.b16 %v5875
        %v5913 = vunpack.c.l.b16 %v5876
        %v5914 = vunpack.c.l.b16 %v5877
        %v5915 = vunpack.c.l.b16 %v5878
        %v5916 = vunpack.c.l.b16 %v5879
        %v5917 = vunpack.c.l.b16 %v5880
        %v5918 = vunpack.c.l.b16 %v5881
        %v5919 = vunpack.c.l.b16 %v5882
        %v5920 = vunpack.c.l.b16 %v5883
        %v5921 = vunpack.c.l.b16 %v5884
        %v5922 = vunpack.c.l.b16 %v5885
        %v5923 = vunpack.c.l.b16 %v5886
        %v5924 = vunpack.c.l.b16 %v5887
        %v5925 = vunpack.c.l.b16 %v5888
        %v5926 = vunpack.c.l.b16 %v5889
        %v5927 = vpack.c.b16 %v5912, %v5911
        %v5928 = vpack.c.b16 %v5914, %v5913
        %v5929 = vpack.c.b16 %v5916, %v5915
        %v5930 = vpack.c.b16 %v5918, %v5917
        %v5931 = vpack.c.b16 %v5920, %v5919
        %v5932 = vpack.c.b16 %v5922, %v5921
        %v5933 = vpack.c.b16 %v5924, %v5923
        %v5934 = vpack.c.b16 %v5926, %v5925
        %5943 = vmatprep.subr.bf16.mxu0 0
        %5944 = vmatpush1.bf16.msra.mxu0 %v5927
        %5945 = vmatprep.subr.bf16.mxu0 0
        %5946 = vmatpush1.bf16.msra.mxu0 %v5928
        %5947 = vmatprep.subr.bf16.mxu0 0
        %5948 = vmatpush1.bf16.msra.mxu0 %v5929
        %5949 = vmatprep.subr.bf16.mxu0 0
        %5950 = vmatpush1.bf16.msra.mxu0 %v5930
        %5951 = vmatprep.subr.bf16.mxu0 0
        %5952 = vmatpush1.bf16.msra.mxu0 %v5931
        %5953 = vmatprep.subr.bf16.mxu0 0
        %5954 = vmatpush1.bf16.msra.mxu0 %v5932
        %5955 = vmatprep.subr.bf16.mxu0 0
        %5956 = vmatpush1.bf16.msra.mxu0 %v5933
        %5957 = vmatprep.subr.bf16.mxu0 0
        %5958 = vmatpush1.bf16.msra.mxu0 %v5934
        %5959 = vmatprep.subr.bf16.mxu0 0
        %5960 = vmatpush1.bf16.msra.mxu0 0
        %5961 = vmatprep.subr.bf16.mxu0 0
        %5962 = vmatpush1.bf16.msra.mxu0 0
        %5963 = vmatprep.subr.bf16.mxu0 0
        %5964 = vmatpush1.bf16.msra.mxu0 0
        %5965 = vmatprep.subr.bf16.mxu0 0
        %5966 = vmatpush1.bf16.msra.mxu0 0
        %5967 = vmatprep.subr.bf16.mxu0 0
        %5968 = vmatpush1.bf16.msra.mxu0 0
        %5969 = vmatprep.subr.bf16.mxu0 0
        %5970 = vmatpush1.bf16.msra.mxu0 0
        %5971 = vmatprep.subr.bf16.mxu0 0
        %5972 = vmatpush1.bf16.msra.mxu0 0
        %5973 = vmatprep.subr.bf16.mxu0 0
        %5974 = vmatpush1.bf16.msra.mxu0 0
        %5975 = vmatprep.mubr.bf16.mxu0 0
        %5976 = vmatmul.mubr.bf16.gmra.mrb[0].mxu0 %v5893
        %v5977 = vpop.f32.mrb[0].mxu0
        %v5978 = vadd.f32 0.0, %v5977
        %v5979 = vpop.f32.mrb[0].mxu0
        %v5980 = vpop.f32.mrb[0].mxu0
        %v5981 = vadd.f32 0.0, %v5980
        %v5982 = vpop.f32.mrb[0].mxu0
        %5983 = vdwg.mxu0
        %v5984 = vadd.f32 %v5871, %v5978
        %v5985 = vadd.f32 %v5872, %v5981
        %s5986 = scalar_lea.vmem [#allocation2], 448
        %v5987 = vld [vmem:[%s5986] sm:$0xf]
        %v5988 = vld [vmem:[%s5986 + $0x4] sm:$0xf]
        %v5989 = vld [vmem:[%s5986 + $0x8] sm:$0xf]
        %v5990 = vld [vmem:[%s5986 + $0xc] sm:$0xf]
        %v5991 = vld [vmem:[%s5986 + $0x10] sm:$0xf]
        %v5992 = vld [vmem:[%s5986 + $0x14] sm:$0xf]
        %v5993 = vld [vmem:[%s5986 + $0x18] sm:$0xf]
        %v5994 = vld [vmem:[%s5986 + $0x1c] sm:$0xf]
        %v5995 = vld [vmem:[%s5986 + $0x20] sm:$0xf]
        %v5996 = vld [vmem:[%s5986 + $0x24] sm:$0xf]
        %v5997 = vld [vmem:[%s5986 + $0x28] sm:$0xf]
        %v5998 = vld [vmem:[%s5986 + $0x2c] sm:$0xf]
        %v5999 = vld [vmem:[%s5986 + $0x30] sm:$0xf]
        %v6000 = vld [vmem:[%s5986 + $0x34] sm:$0xf]
        %v6001 = vld [vmem:[%s5986 + $0x38] sm:$0xf]
        %v6002 = vld [vmem:[%s5986 + $0x3c] sm:$0xf]
        %v6003 = vrot.slane %v5214, 1
        %v6004 = vrot.slane %v5646, 1
        %v6005 = vsel %vm5890, %v6003, %v6004
        %v6023 = vunpack.c.l.b16 %v5987
        %v6024 = vunpack.c.l.b16 %v5988
        %v6025 = vunpack.c.l.b16 %v5989
        %v6026 = vunpack.c.l.b16 %v5990
        %v6027 = vunpack.c.l.b16 %v5991
        %v6028 = vunpack.c.l.b16 %v5992
        %v6029 = vunpack.c.l.b16 %v5993
        %v6030 = vunpack.c.l.b16 %v5994
        %v6031 = vunpack.c.l.b16 %v5995
        %v6032 = vunpack.c.l.b16 %v5996
        %v6033 = vunpack.c.l.b16 %v5997
        %v6034 = vunpack.c.l.b16 %v5998
        %v6035 = vunpack.c.l.b16 %v5999
        %v6036 = vunpack.c.l.b16 %v6000
        %v6037 = vunpack.c.l.b16 %v6001
        %v6038 = vunpack.c.l.b16 %v6002
        %v6039 = vpack.c.b16 %v6024, %v6023
        %v6040 = vpack.c.b16 %v6026, %v6025
        %v6041 = vpack.c.b16 %v6028, %v6027
        %v6042 = vpack.c.b16 %v6030, %v6029
        %v6043 = vpack.c.b16 %v6032, %v6031
        %v6044 = vpack.c.b16 %v6034, %v6033
        %v6045 = vpack.c.b16 %v6036, %v6035
        %v6046 = vpack.c.b16 %v6038, %v6037
        %6055 = vmatprep.subr.bf16.mxu0 0
        %6056 = vmatpush1.bf16.msra.mxu0 %v6039
        %6057 = vmatprep.subr.bf16.mxu0 0
        %6058 = vmatpush1.bf16.msra.mxu0 %v6040
        %6059 = vmatprep.subr.bf16.mxu0 0
        %6060 = vmatpush1.bf16.msra.mxu0 %v6041
        %6061 = vmatprep.subr.bf16.mxu0 0
        %6062 = vmatpush1.bf16.msra.mxu0 %v6042
        %6063 = vmatprep.subr.bf16.mxu0 0
        %6064 = vmatpush1.bf16.msra.mxu0 %v6043
        %6065 = vmatprep.subr.bf16.mxu0 0
        %6066 = vmatpush1.bf16.msra.mxu0 %v6044
        %6067 = vmatprep.subr.bf16.mxu0 0
        %6068 = vmatpush1.bf16.msra.mxu0 %v6045
        %6069 = vmatprep.subr.bf16.mxu0 0
        %6070 = vmatpush1.bf16.msra.mxu0 %v6046
        %6071 = vmatprep.subr.bf16.mxu0 0
        %6072 = vmatpush1.bf16.msra.mxu0 0
        %6073 = vmatprep.subr.bf16.mxu0 0
        %6074 = vmatpush1.bf16.msra.mxu0 0
        %6075 = vmatprep.subr.bf16.mxu0 0
        %6076 = vmatpush1.bf16.msra.mxu0 0
        %6077 = vmatprep.subr.bf16.mxu0 0
        %6078 = vmatpush1.bf16.msra.mxu0 0
        %6079 = vmatprep.subr.bf16.mxu0 0
        %6080 = vmatpush1.bf16.msra.mxu0 0
        %6081 = vmatprep.subr.bf16.mxu0 0
        %6082 = vmatpush1.bf16.msra.mxu0 0
        %6083 = vmatprep.subr.bf16.mxu0 0
        %6084 = vmatpush1.bf16.msra.mxu0 0
        %6085 = vmatprep.subr.bf16.mxu0 0
        %6086 = vmatpush1.bf16.msra.mxu0 0
        %6087 = vmatprep.mubr.bf16.mxu0 0
        %6088 = vmatmul.mubr.bf16.gmra.mrb[0].mxu0 %v6005
        %v6089 = vpop.f32.mrb[0].mxu0
        %v6090 = vadd.f32 0.0, %v6089
        %v6091 = vpop.f32.mrb[0].mxu0
        %v6092 = vpop.f32.mrb[0].mxu0
        %v6093 = vadd.f32 0.0, %v6092
        %v6094 = vpop.f32.mrb[0].mxu0
        %6095 = vdwg.mxu0
        %v6096 = vadd.f32 %v5984, %v6090
        %v6097 = vadd.f32 %v5985, %v6093
        %s6098 = scalar_lea.vmem [#allocation2], 512
        %v6099 = vld [vmem:[%s6098] sm:$0xf]
        %v6100 = vld [vmem:[%s6098 + $0x4] sm:$0xf]
        %v6101 = vld [vmem:[%s6098 + $0x8] sm:$0xf]
        %v6102 = vld [vmem:[%s6098 + $0xc] sm:$0xf]
        %v6103 = vld [vmem:[%s6098 + $0x10] sm:$0xf]
        %v6104 = vld [vmem:[%s6098 + $0x14] sm:$0xf]
        %v6105 = vld [vmem:[%s6098 + $0x18] sm:$0xf]
        %v6106 = vld [vmem:[%s6098 + $0x1c] sm:$0xf]
        %v6107 = vld [vmem:[%s6098 + $0x20] sm:$0xf]
        %v6108 = vld [vmem:[%s6098 + $0x24] sm:$0xf]
        %v6109 = vld [vmem:[%s6098 + $0x28] sm:$0xf]
        %v6110 = vld [vmem:[%s6098 + $0x2c] sm:$0xf]
        %v6111 = vld [vmem:[%s6098 + $0x30] sm:$0xf]
        %v6112 = vld [vmem:[%s6098 + $0x34] sm:$0xf]
        %v6113 = vld [vmem:[%s6098 + $0x38] sm:$0xf]
        %v6114 = vld [vmem:[%s6098 + $0x3c] sm:$0xf]
        %v6115 = vrot.slane %v5413, 1
        %v6116 = vrot.slane %v5768, 1
        %v6117 = vsel %vm5890, %v6115, %v6116
        %v6135 = vunpack.c.l.b16 %v6099
        %v6136 = vunpack.c.l.b16 %v6100
        %v6137 = vunpack.c.l.b16 %v6101
        %v6138 = vunpack.c.l.b16 %v6102
        %v6139 = vunpack.c.l.b16 %v6103
        %v6140 = vunpack.c.l.b16 %v6104
        %v6141 = vunpack.c.l.b16 %v6105
        %v6142 = vunpack.c.l.b16 %v6106
        %v6143 = vunpack.c.l.b16 %v6107
        %v6144 = vunpack.c.l.b16 %v6108
        %v6145 = vunpack.c.l.b16 %v6109
        %v6146 = vunpack.c.l.b16 %v6110
        %v6147 = vunpack.c.l.b16 %v6111
        %v6148 = vunpack.c.l.b16 %v6112
        %v6149 = vunpack.c.l.b16 %v6113
        %v6150 = vunpack.c.l.b16 %v6114
        %v6151 = vpack.c.b16 %v6136, %v6135
        %v6152 = vpack.c.b16 %v6138, %v6137
        %v6153 = vpack.c.b16 %v6140, %v6139
        %v6154 = vpack.c.b16 %v6142, %v6141
        %v6155 = vpack.c.b16 %v6144, %v6143
        %v6156 = vpack.c.b16 %v6146, %v6145
        %v6157 = vpack.c.b16 %v6148, %v6147
        %v6158 = vpack.c.b16 %v6150, %v6149
        %6167 = vmatprep.subr.bf16.mxu0 0
        %6168 = vmatpush1.bf16.msra.mxu0 %v6151
        %6169 = vmatprep.subr.bf16.mxu0 0
        %6170 = vmatpush1.bf16.msra.mxu0 %v6152
        %6171 = vmatprep.subr.bf16.mxu0 0
        %6172 = vmatpush1.bf16.msra.mxu0 %v6153
        %6173 = vmatprep.subr.bf16.mxu0 0
        %6174 = vmatpush1.bf16.msra.mxu0 %v6154
        %6175 = vmatprep.subr.bf16.mxu0 0
        %6176 = vmatpush1.bf16.msra.mxu0 %v6155
        %6177 = vmatprep.subr.bf16.mxu0 0
        %6178 = vmatpush1.bf16.msra.mxu0 %v6156
        %6179 = vmatprep.subr.bf16.mxu0 0
        %6180 = vmatpush1.bf16.msra.mxu0 %v6157
        %6181 = vmatprep.subr.bf16.mxu0 0
        %6182 = vmatpush1.bf16.msra.mxu0 %v6158
        %6183 = vmatprep.subr.bf16.mxu0 0
        %6184 = vmatpush1.bf16.msra.mxu0 0
        %6185 = vmatprep.subr.bf16.mxu0 0
        %6186 = vmatpush1.bf16.msra.mxu0 0
        %6187 = vmatprep.subr.bf16.mxu0 0
        %6188 = vmatpush1.bf16.msra.mxu0 0
        %6189 = vmatprep.subr.bf16.mxu0 0
        %6190 = vmatpush1.bf16.msra.mxu0 0
        %6191 = vmatprep.subr.bf16.mxu0 0
        %6192 = vmatpush1.bf16.msra.mxu0 0
        %6193 = vmatprep.subr.bf16.mxu0 0
        %6194 = vmatpush1.bf16.msra.mxu0 0
        %6195 = vmatprep.subr.bf16.mxu0 0
        %6196 = vmatpush1.bf16.msra.mxu0 0
        %6197 = vmatprep.subr.bf16.mxu0 0
        %6198 = vmatpush1.bf16.msra.mxu0 0
        %6199 = vmatprep.mubr.bf16.mxu0 0
        %6200 = vmatmul.mubr.bf16.gmra.mrb[0].mxu0 %v6117
        %v6201 = vpop.f32.mrb[0].mxu0
        %v6202 = vadd.f32 0.0, %v6201
        %v6203 = vpop.f32.mrb[0].mxu0
        %v6204 = vpop.f32.mrb[0].mxu0
        %v6205 = vadd.f32 0.0, %v6204
        %v6206 = vpop.f32.mrb[0].mxu0
        %6207 = vdwg.mxu0
        %v6208 = vadd.f32 %v6096, %v6202
        %v6209 = vadd.f32 %v6097, %v6205
        %s6210 = scalar_lea.vmem [#allocation2], 576
        %v6211 = vld [vmem:[%s6210] sm:$0xf]
        %v6212 = vld [vmem:[%s6210 + $0x4] sm:$0xf]
        %v6213 = vld [vmem:[%s6210 + $0x8] sm:$0xf]
        %v6214 = vld [vmem:[%s6210 + $0xc] sm:$0xf]
        %v6215 = vld [vmem:[%s6210 + $0x10] sm:$0xf]
        %v6216 = vld [vmem:[%s6210 + $0x14] sm:$0xf]
        %v6217 = vld [vmem:[%s6210 + $0x18] sm:$0xf]
        %v6218 = vld [vmem:[%s6210 + $0x1c] sm:$0xf]
        %v6219 = vld [vmem:[%s6210 + $0x20] sm:$0xf]
        %v6220 = vld [vmem:[%s6210 + $0x24] sm:$0xf]
        %v6221 = vld [vmem:[%s6210 + $0x28] sm:$0xf]
        %v6222 = vld [vmem:[%s6210 + $0x2c] sm:$0xf]
        %v6223 = vld [vmem:[%s6210 + $0x30] sm:$0xf]
        %v6224 = vld [vmem:[%s6210 + $0x34] sm:$0xf]
        %v6225 = vld [vmem:[%s6210 + $0x38] sm:$0xf]
        %v6226 = vld [vmem:[%s6210 + $0x3c] sm:$0xf]
        %vm6227 = vsmask.f32 6400
        %v6228 = vrot.slane %v5526, 1
        %v6229 = vrot.slane %v5528, 2
        %v6230 = vor.u32 %v6228, %v6229
        %v6231 = vshrl.u32 %v5523, 16
        %v6233 = vrot.slane %v6231, 1
        %v6234 = vrot.slane %v5533, 2
        %v6235 = vor.u32 %v6233, %v6234
        %v6236 = vsel %vm6227, %v6230, %v6235
        %v6254 = vunpack.c.l.b16 %v6211
        %v6255 = vunpack.c.l.b16 %v6212
        %v6256 = vunpack.c.l.b16 %v6213
        %v6257 = vunpack.c.l.b16 %v6214
        %v6258 = vunpack.c.l.b16 %v6215
        %v6259 = vunpack.c.l.b16 %v6216
        %v6260 = vunpack.c.l.b16 %v6217
        %v6261 = vunpack.c.l.b16 %v6218
        %v6262 = vunpack.c.l.b16 %v6219
        %v6263 = vunpack.c.l.b16 %v6220
        %v6264 = vunpack.c.l.b16 %v6221
        %v6265 = vunpack.c.l.b16 %v6222
        %v6266 = vunpack.c.l.b16 %v6223
        %v6267 = vunpack.c.l.b16 %v6224
        %v6268 = vunpack.c.l.b16 %v6225
        %v6269 = vunpack.c.l.b16 %v6226
        %v6270 = vpack.c.b16 %v6255, %v6254
        %v6271 = vpack.c.b16 %v6257, %v6256
        %v6272 = vpack.c.b16 %v6259, %v6258
        %v6273 = vpack.c.b16 %v6261, %v6260
        %v6274 = vpack.c.b16 %v6263, %v6262
        %v6275 = vpack.c.b16 %v6265, %v6264
        %v6276 = vpack.c.b16 %v6267, %v6266
        %v6277 = vpack.c.b16 %v6269, %v6268
        %6286 = vmatprep.subr.bf16.mxu0 0
        %6287 = vmatpush1.bf16.msra.mxu0 %v6270
        %6288 = vmatprep.subr.bf16.mxu0 0
        %6289 = vmatpush1.bf16.msra.mxu0 %v6271
        %6290 = vmatprep.subr.bf16.mxu0 0
        %6291 = vmatpush1.bf16.msra.mxu0 %v6272
        %6292 = vmatprep.subr.bf16.mxu0 0
        %6293 = vmatpush1.bf16.msra.mxu0 %v6273
        %6294 = vmatprep.subr.bf16.mxu0 0
        %6295 = vmatpush1.bf16.msra.mxu0 %v6274
        %6296 = vmatprep.subr.bf16.mxu0 0
        %6297 = vmatpush1.bf16.msra.mxu0 %v6275
        %6298 = vmatprep.subr.bf16.mxu0 0
        %6299 = vmatpush1.bf16.msra.mxu0 %v6276
        %6300 = vmatprep.subr.bf16.mxu0 0
        %6301 = vmatpush1.bf16.msra.mxu0 %v6277
        %6302 = vmatprep.subr.bf16.mxu0 0
        %6303 = vmatpush1.bf16.msra.mxu0 0
        %6304 = vmatprep.subr.bf16.mxu0 0
        %6305 = vmatpush1.bf16.msra.mxu0 0
        %6306 = vmatprep.subr.bf16.mxu0 0
        %6307 = vmatpush1.bf16.msra.mxu0 0
        %6308 = vmatprep.subr.bf16.mxu0 0
        %6309 = vmatpush1.bf16.msra.mxu0 0
        %6310 = vmatprep.subr.bf16.mxu0 0
        %6311 = vmatpush1.bf16.msra.mxu0 0
        %6312 = vmatprep.subr.bf16.mxu0 0
        %6313 = vmatpush1.bf16.msra.mxu0 0
        %6314 = vmatprep.subr.bf16.mxu0 0
        %6315 = vmatpush1.bf16.msra.mxu0 0
        %6316 = vmatprep.subr.bf16.mxu0 0
        %6317 = vmatpush1.bf16.msra.mxu0 0
        %6318 = vmatprep.mubr.bf16.mxu0 0
        %6319 = vmatmul.mubr.bf16.gmra.mrb[0].mxu0 %v6236
        %v6320 = vpop.f32.mrb[0].mxu0
        %v6321 = vadd.f32 0.0, %v6320
        %v6322 = vpop.f32.mrb[0].mxu0
        %v6323 = vpop.f32.mrb[0].mxu0
        %v6324 = vadd.f32 0.0, %v6323
        %v6325 = vpop.f32.mrb[0].mxu0
        %6326 = vdwg.mxu0
        %v6327 = vadd.f32 %v6208, %v6321
        %v6328 = vadd.f32 %v6209, %v6324
        %s6329 = scalar_lea.vmem [#allocation2], 640
        %v6330 = vld [vmem:[%s6329] sm:$0xf]
        %v6331 = vld [vmem:[%s6329 + $0x4] sm:$0xf]
        %v6332 = vld [vmem:[%s6329 + $0x8] sm:$0xf]
        %v6333 = vld [vmem:[%s6329 + $0xc] sm:$0xf]
        %v6334 = vld [vmem:[%s6329 + $0x10] sm:$0xf]
        %v6335 = vld [vmem:[%s6329 + $0x14] sm:$0xf]
        %v6336 = vld [vmem:[%s6329 + $0x18] sm:$0xf]
        %v6337 = vld [vmem:[%s6329 + $0x1c] sm:$0xf]
        %v6338 = vld [vmem:[%s6329 + $0x20] sm:$0xf]
        %v6339 = vld [vmem:[%s6329 + $0x24] sm:$0xf]
        %v6340 = vld [vmem:[%s6329 + $0x28] sm:$0xf]
        %v6341 = vld [vmem:[%s6329 + $0x2c] sm:$0xf]
        %v6342 = vld [vmem:[%s6329 + $0x30] sm:$0xf]
        %v6343 = vld [vmem:[%s6329 + $0x34] sm:$0xf]
        %v6344 = vld [vmem:[%s6329 + $0x38] sm:$0xf]
        %v6345 = vld [vmem:[%s6329 + $0x3c] sm:$0xf]
        %v6346 = vrot.slane %v5648, 1
        %v6347 = vrot.slane %v5650, 2
        %v6348 = vor.u32 %v6346, %v6347
        %v6349 = vshrl.u32 %v5646, 16
        %v6351 = vrot.slane %v6349, 1
        %v6352 = vrot.slane %v5655, 2
        %v6353 = vor.u32 %v6351, %v6352
        %v6354 = vsel %vm6227, %v6348, %v6353
        %v6372 = vunpack.c.l.b16 %v6330
        %v6373 = vunpack.c.l.b16 %v6331
        %v6374 = vunpack.c.l.b16 %v6332
        %v6375 = vunpack.c.l.b16 %v6333
        %v6376 = vunpack.c.l.b16 %v6334
        %v6377 = vunpack.c.l.b16 %v6335
        %v6378 = vunpack.c.l.b16 %v6336
        %v6379 = vunpack.c.l.b16 %v6337
        %v6380 = vunpack.c.l.b16 %v6338
        %v6381 = vunpack.c.l.b16 %v6339
        %v6382 = vunpack.c.l.b16 %v6340
        %v6383 = vunpack.c.l.b16 %v6341
        %v6384 = vunpack.c.l.b16 %v6342
        %v6385 = vunpack.c.l.b16 %v6343
        %v6386 = vunpack.c.l.b16 %v6344
        %v6387 = vunpack.c.l.b16 %v6345
        %v6388 = vpack.c.b16 %v6373, %v6372
        %v6389 = vpack.c.b16 %v6375, %v6374
        %v6390 = vpack.c.b16 %v6377, %v6376
        %v6391 = vpack.c.b16 %v6379, %v6378
        %v6392 = vpack.c.b16 %v6381, %v6380
        %v6393 = vpack.c.b16 %v6383, %v6382
        %v6394 = vpack.c.b16 %v6385, %v6384
        %v6395 = vpack.c.b16 %v6387, %v6386
        %6404 = vmatprep.subr.bf16.mxu0 0
        %6405 = vmatpush1.bf16.msra.mxu0 %v6388
        %6406 = vmatprep.subr.bf16.mxu0 0
        %6407 = vmatpush1.bf16.msra.mxu0 %v6389
        %6408 = vmatprep.subr.bf16.mxu0 0
        %6409 = vmatpush1.bf16.msra.mxu0 %v6390
        %6410 = vmatprep.subr.bf16.mxu0 0
        %6411 = vmatpush1.bf16.msra.mxu0 %v6391
        %6412 = vmatprep.subr.bf16.mxu0 0
        %6413 = vmatpush1.bf16.msra.mxu0 %v6392
        %6414 = vmatprep.subr.bf16.mxu0 0
        %6415 = vmatpush1.bf16.msra.mxu0 %v6393
        %6416 = vmatprep.subr.bf16.mxu0 0
        %6417 = vmatpush1.bf16.msra.mxu0 %v6394
        %6418 = vmatprep.subr.bf16.mxu0 0
        %6419 = vmatpush1.bf16.msra.mxu0 %v6395
        %6420 = vmatprep.subr.bf16.mxu0 0
        %6421 = vmatpush1.bf16.msra.mxu0 0
        %6422 = vmatprep.subr.bf16.mxu0 0
        %6423 = vmatpush1.bf16.msra.mxu0 0
        %6424 = vmatprep.subr.bf16.mxu0 0
        %6425 = vmatpush1.bf16.msra.mxu0 0
        %6426 = vmatprep.subr.bf16.mxu0 0
        %6427 = vmatpush1.bf16.msra.mxu0 0
        %6428 = vmatprep.subr.bf16.mxu0 0
        %6429 = vmatpush1.bf16.msra.mxu0 0
        %6430 = vmatprep.subr.bf16.mxu0 0
        %6431 = vmatpush1.bf16.msra.mxu0 0
        %6432 = vmatprep.subr.bf16.mxu0 0
        %6433 = vmatpush1.bf16.msra.mxu0 0
        %6434 = vmatprep.subr.bf16.mxu0 0
        %6435 = vmatpush1.bf16.msra.mxu0 0
        %6436 = vmatprep.mubr.bf16.mxu0 0
        %6437 = vmatmul.mubr.bf16.gmra.mrb[0].mxu0 %v6354
        %v6438 = vpop.f32.mrb[0].mxu0
        %v6439 = vadd.f32 0.0, %v6438
        %v6440 = vpop.f32.mrb[0].mxu0
        %v6441 = vpop.f32.mrb[0].mxu0
        %v6442 = vadd.f32 0.0, %v6441
        %v6443 = vpop.f32.mrb[0].mxu0
        %6444 = vdwg.mxu0
        %v6445 = vadd.f32 %v6327, %v6439
        %v6446 = vadd.f32 %v6328, %v6442
        %s6447 = scalar_lea.vmem [#allocation2], 704
        %v6448 = vld [vmem:[%s6447] sm:$0xf]
        %v6449 = vld [vmem:[%s6447 + $0x4] sm:$0xf]
        %v6450 = vld [vmem:[%s6447 + $0x8] sm:$0xf]
        %v6451 = vld [vmem:[%s6447 + $0xc] sm:$0xf]
        %v6452 = vld [vmem:[%s6447 + $0x10] sm:$0xf]
        %v6453 = vld [vmem:[%s6447 + $0x14] sm:$0xf]
        %v6454 = vld [vmem:[%s6447 + $0x18] sm:$0xf]
        %v6455 = vld [vmem:[%s6447 + $0x1c] sm:$0xf]
        %v6456 = vld [vmem:[%s6447 + $0x20] sm:$0xf]
        %v6457 = vld [vmem:[%s6447 + $0x24] sm:$0xf]
        %v6458 = vld [vmem:[%s6447 + $0x28] sm:$0xf]
        %v6459 = vld [vmem:[%s6447 + $0x2c] sm:$0xf]
        %v6460 = vld [vmem:[%s6447 + $0x30] sm:$0xf]
        %v6461 = vld [vmem:[%s6447 + $0x34] sm:$0xf]
        %v6462 = vld [vmem:[%s6447 + $0x38] sm:$0xf]
        %v6463 = vld [vmem:[%s6447 + $0x3c] sm:$0xf]
        %v6464 = vrot.slane %v5770, 1
        %v6465 = vrot.slane %v5772, 2
        %v6466 = vor.u32 %v6464, %v6465
        %v6467 = vshrl.u32 %v5768, 16
        %v6469 = vrot.slane %v6467, 1
        %v6470 = vrot.slane %v5777, 2
        %v6471 = vor.u32 %v6469, %v6470
        %v6472 = vsel %vm6227, %v6466, %v6471
        %v6490 = vunpack.c.l.b16 %v6448
        %v6491 = vunpack.c.l.b16 %v6449
        %v6492 = vunpack.c.l.b16 %v6450
        %v6493 = vunpack.c.l.b16 %v6451
        %v6494 = vunpack.c.l.b16 %v6452
        %v6495 = vunpack.c.l.b16 %v6453
        %v6496 = vunpack.c.l.b16 %v6454
        %v6497 = vunpack.c.l.b16 %v6455
        %v6498 = vunpack.c.l.b16 %v6456
        %v6499 = vunpack.c.l.b16 %v6457
        %v6500 = vunpack.c.l.b16 %v6458
        %v6501 = vunpack.c.l.b16 %v6459
        %v6502 = vunpack.c.l.b16 %v6460
        %v6503 = vunpack.c.l.b16 %v6461
        %v6504 = vunpack.c.l.b16 %v6462
        %v6505 = vunpack.c.l.b16 %v6463
        %v6506 = vpack.c.b16 %v6491, %v6490
        %v6507 = vpack.c.b16 %v6493, %v6492
        %v6508 = vpack.c.b16 %v6495, %v6494
        %v6509 = vpack.c.b16 %v6497, %v6496
        %v6510 = vpack.c.b16 %v6499, %v6498
        %v6511 = vpack.c.b16 %v6501, %v6500
        %v6512 = vpack.c.b16 %v6503, %v6502
        %v6513 = vpack.c.b16 %v6505, %v6504
        %6522 = vmatprep.subr.bf16.mxu0 0
        %6523 = vmatpush1.bf16.msra.mxu0 %v6506
        %6524 = vmatprep.subr.bf16.mxu0 0
        %6525 = vmatpush1.bf16.msra.mxu0 %v6507
        %6526 = vmatprep.subr.bf16.mxu0 0
        %6527 = vmatpush1.bf16.msra.mxu0 %v6508
        %6528 = vmatprep.subr.bf16.mxu0 0
        %6529 = vmatpush1.bf16.msra.mxu0 %v6509
        %6530 = vmatprep.subr.bf16.mxu0 0
        %6531 = vmatpush1.bf16.msra.mxu0 %v6510
        %6532 = vmatprep.subr.bf16.mxu0 0
        %6533 = vmatpush1.bf16.msra.mxu0 %v6511
        %6534 = vmatprep.subr.bf16.mxu0 0
        %6535 = vmatpush1.bf16.msra.mxu0 %v6512
        %6536 = vmatprep.subr.bf16.mxu0 0
        %6537 = vmatpush1.bf16.msra.mxu0 %v6513
        %6538 = vmatprep.subr.bf16.mxu0 0
        %6539 = vmatpush1.bf16.msra.mxu0 0
        %6540 = vmatprep.subr.bf16.mxu0 0
        %6541 = vmatpush1.bf16.msra.mxu0 0
        %6542 = vmatprep.subr.bf16.mxu0 0
        %6543 = vmatpush1.bf16.msra.mxu0 0
        %6544 = vmatprep.subr.bf16.mxu0 0
        %6545 = vmatpush1.bf16.msra.mxu0 0
        %6546 = vmatprep.subr.bf16.mxu0 0
        %6547 = vmatpush1.bf16.msra.mxu0 0
        %6548 = vmatprep.subr.bf16.mxu0 0
        %6549 = vmatpush1.bf16.msra.mxu0 0
        %6550 = vmatprep.subr.bf16.mxu0 0
        %6551 = vmatpush1.bf16.msra.mxu0 0
        %6552 = vmatprep.subr.bf16.mxu0 0
        %6553 = vmatpush1.bf16.msra.mxu0 0
        %6554 = vmatprep.mubr.bf16.mxu0 0
        %6555 = vmatmul.mubr.bf16.gmra.mrb[0].mxu0 %v6472
        %v6556 = vpop.f32.mrb[0].mxu0
        %v6557 = vadd.f32 0.0, %v6556
        %v6558 = vpop.f32.mrb[0].mxu0
        %v6559 = vpop.f32.mrb[0].mxu0
        %v6560 = vadd.f32 0.0, %v6559
        %v6561 = vpop.f32.mrb[0].mxu0
        %6562 = vdwg.mxu0
        %v6563 = vadd.f32 %v6445, %v6557
        %v6564 = vadd.f32 %v6446, %v6560
        %s6565 = scalar_lea.vmem [#allocation2], 768
        %v6566 = vld [vmem:[%s6565] sm:$0xf]
        %v6567 = vld [vmem:[%s6565 + $0x4] sm:$0xf]
        %v6568 = vld [vmem:[%s6565 + $0x8] sm:$0xf]
        %v6569 = vld [vmem:[%s6565 + $0xc] sm:$0xf]
        %v6570 = vld [vmem:[%s6565 + $0x10] sm:$0xf]
        %v6571 = vld [vmem:[%s6565 + $0x14] sm:$0xf]
        %v6572 = vld [vmem:[%s6565 + $0x18] sm:$0xf]
        %v6573 = vld [vmem:[%s6565 + $0x1c] sm:$0xf]
        %v6574 = vld [vmem:[%s6565 + $0x20] sm:$0xf]
        %v6575 = vld [vmem:[%s6565 + $0x24] sm:$0xf]
        %v6576 = vld [vmem:[%s6565 + $0x28] sm:$0xf]
        %v6577 = vld [vmem:[%s6565 + $0x2c] sm:$0xf]
        %v6578 = vld [vmem:[%s6565 + $0x30] sm:$0xf]
        %v6579 = vld [vmem:[%s6565 + $0x34] sm:$0xf]
        %v6580 = vld [vmem:[%s6565 + $0x38] sm:$0xf]
        %v6581 = vld [vmem:[%s6565 + $0x3c] sm:$0xf]
        %vm6582 = vcmask 1045504
        %v6583 = vrot.slane %v5305, 2
        %v6584 = vrot.slane %v5523, 2
        %v6585 = vsel %vm6582, %v6583, %v6584
        %v6603 = vunpack.c.l.b16 %v6566
        %v6604 = vunpack.c.l.b16 %v6567
        %v6605 = vunpack.c.l.b16 %v6568
        %v6606 = vunpack.c.l.b16 %v6569
        %v6607 = vunpack.c.l.b16 %v6570
        %v6608 = vunpack.c.l.b16 %v6571
        %v6609 = vunpack.c.l.b16 %v6572
        %v6610 = vunpack.c.l.b16 %v6573
        %v6611 = vunpack.c.l.b16 %v6574
        %v6612 = vunpack.c.l.b16 %v6575
        %v6613 = vunpack.c.l.b16 %v6576
        %v6614 = vunpack.c.l.b16 %v6577
        %v6615 = vunpack.c.l.b16 %v6578
        %v6616 = vunpack.c.l.b16 %v6579
        %v6617 = vunpack.c.l.b16 %v6580
        %v6618 = vunpack.c.l.b16 %v6581
        %v6619 = vpack.c.b16 %v6604, %v6603
        %v6620 = vpack.c.b16 %v6606, %v6605
        %v6621 = vpack.c.b16 %v6608, %v6607
        %v6622 = vpack.c.b16 %v6610, %v6609
        %v6623 = vpack.c.b16 %v6612, %v6611
        %v6624 = vpack.c.b16 %v6614, %v6613
        %v6625 = vpack.c.b16 %v6616, %v6615
        %v6626 = vpack.c.b16 %v6618, %v6617
        %6635 = vmatprep.subr.bf16.mxu0 0
        %6636 = vmatpush1.bf16.msra.mxu0 %v6619
        %6637 = vmatprep.subr.bf16.mxu0 0
        %6638 = vmatpush1.bf16.msra.mxu0 %v6620
        %6639 = vmatprep.subr.bf16.mxu0 0
        %6640 = vmatpush1.bf16.msra.mxu0 %v6621
        %6641 = vmatprep.subr.bf16.mxu0 0
        %6642 = vmatpush1.bf16.msra.mxu0 %v6622
        %6643 = vmatprep.subr.bf16.mxu0 0
        %6644 = vmatpush1.bf16.msra.mxu0 %v6623
        %6645 = vmatprep.subr.bf16.mxu0 0
        %6646 = vmatpush1.bf16.msra.mxu0 %v6624
        %6647 = vmatprep.subr.bf16.mxu0 0
        %6648 = vmatpush1.bf16.msra.mxu0 %v6625
        %6649 = vmatprep.subr.bf16.mxu0 0
        %6650 = vmatpush1.bf16.msra.mxu0 %v6626
        %6651 = vmatprep.subr.bf16.mxu0 0
        %6652 = vmatpush1.bf16.msra.mxu0 0
        %6653 = vmatprep.subr.bf16.mxu0 0
        %6654 = vmatpush1.bf16.msra.mxu0 0
        %6655 = vmatprep.subr.bf16.mxu0 0
        %6656 = vmatpush1.bf16.msra.mxu0 0
        %6657 = vmatprep.subr.bf16.mxu0 0
        %6658 = vmatpush1.bf16.msra.mxu0 0
        %6659 = vmatprep.subr.bf16.mxu0 0
        %6660 = vmatpush1.bf16.msra.mxu0 0
        %6661 = vmatprep.subr.bf16.mxu0 0
        %6662 = vmatpush1.bf16.msra.mxu0 0
        %6663 = vmatprep.subr.bf16.mxu0 0
        %6664 = vmatpush1.bf16.msra.mxu0 0
        %6665 = vmatprep.subr.bf16.mxu0 0
        %6666 = vmatpush1.bf16.msra.mxu0 0
        %6667 = vmatprep.mubr.bf16.mxu0 0
        %6668 = vmatmul.mubr.bf16.gmra.mrb[0].mxu0 %v6585
        %v6669 = vpop.f32.mrb[0].mxu0
        %v6670 = vadd.f32 0.0, %v6669
        %v6671 = vpop.f32.mrb[0].mxu0
        %v6672 = vpop.f32.mrb[0].mxu0
        %v6673 = vadd.f32 0.0, %v6672
        %v6674 = vpop.f32.mrb[0].mxu0
        %6675 = vdwg.mxu0
        %v6676 = vadd.f32 %v6563, %v6670
        %v6677 = vadd.f32 %v6564, %v6673
        %v6678 = vld [vmem:[%s4] sm:$0x1]
        %v6680 = vlaneseq
        %v6681 = vshrl.u32 %v6680, 7
        %v6682 = vsub.s32 0, %v6681
        %v6683 = vrot.slane %v6678, %v6682
        %v6685 = vadd.f32 %v6676, %v6683
        %v6686 = vadd.f32 %v6677, %v6683
        %v6687 = vxor.u32 %v6685, 2147483648
        %v6688 = vxor.u32 %v6686, 2147483648
        %v6689 = vmul.f32 %v6687, 1.442695
        %v6690 = vpow.pop %v6689
        %v6691 = vmul.f32 %v6688, 1.442695
        %v6692 = vpow.pop %v6691
        %v6693 = vadd.f32 %v6690, 1.0
        %v6694 = vadd.f32 %v6692, 1.0
        %v6695 = vrcp.pop %v6693
        %v6696 = vmul.f32 1.0, %v6695
        %v6697 = vrcp.pop %v6694
        %v6698 = vmul.f32 1.0, %v6697
        %v6699 = vmul.f32 %v6685, %v6696
        %v6700 = vmul.f32 %v6686, %v6698
        %6701 = vst [vmem:[%s232] sm:$0xff] %v6699
        %6702 = vst [vmem:[%s232 + $0x8] sm:$0xff] %v6700
        %s6703 = sand.u32 %s138, 1
        %s6704 = scalar_lea.sflag [#allocation4], %s6703
        %s6705 = sand.u32 %s138, 1
        %s6706 = smul.addr %s6705, 16
        %s6707 = scalar_lea.vmem [#allocation5], %s6706
        // Predicated region
        $region45: #{tpu_custom_call.1} parent=39 // pred_check
          %p6708 = pneg %p148
        $region46: #{tpu_custom_call.1} parent=39 // pred_check_branch
          %6710 = sbr.rel (%p6708) target = $region48
        $region47: #{tpu_custom_call.1} parent=39 // pred_region
          %s6711 = smul.u32 2, %s20
          %s6713 = ssub.s32 256, 256
          %6714 = vsyncadd %s6704, %s6713
          %s6715 = smul.addr %s6711, 128
          %s6716 = scalar_lea.hbm %s5, %s6715
          %s6717 = sshll.u32 %s6707, 4
          %s6718 = int_to_ptr.vmem [resolvable:$true] %s6717
          %6723 = dma.vmem_to_hbm [thread:$0]  %s6718, 256, %s6716, %s6704, 128, 128, 8
        $region48: #{tpu_custom_call.1} parent=39 // pred_fallthru
          _
      $region40: #{tpu_custom_call.1} parent=5 // pred_fallthru
        _
      %p6724 = scmp.le.s32.totalorder 2, %s15
      // Predicated region
      $region49: #{tpu_custom_call.1} parent=5 // pred_check
        %p6725 = pneg %p6724
      $region50: #{tpu_custom_call.1} parent=5 // pred_check_branch
        %6727 = sbr.rel (%p6725) target = $region52
      $region51: #{tpu_custom_call.1} parent=5 // pred_region
        %s6728 = ssub.s32 %s15, 2
        // Predicated region
        $region53: #{tpu_custom_call.1} parent=51 // pred_check
          %p6729 = pneg %p154
        $region54: #{tpu_custom_call.1} parent=51 // pred_check_branch
          %6731 = sbr.rel (%p6729) target = $region56
        $region55: #{tpu_custom_call.1} parent=51 // pred_region
          %s6732 = sand.u32 %s139, 1
          %s6733 = scalar_lea.sflag [#allocation4], %s6732
          %s6734 = sand.u32 %s139, 1
          %s6735 = smul.addr %s6734, 16
          %s6736 = scalar_lea.vmem [#allocation5], %s6735
          %6737 = dma.done %s6733, 256
        $region56: #{tpu_custom_call.1} parent=51 // pred_fallthru
          _
      $region52: #{tpu_custom_call.1} parent=5 // pred_fallthru
        _
    $region6: #{tpu_custom_call.1} parent=1 // loop_footer
      %s19 = sadd.s32 1, %s15
    $region7: #{tpu_custom_call.1} parent=1 // loop_footer_branch
      %14 = sbr.rel target = $region3
    $region8: #{tpu_custom_call.1} parent=1 // loop_exit
      _
    %6738 = vsyncpa [#allocation3], 1
    %s6739 = scalar_lea.sflag [#allocation3], 1
    %6740 = vsyncpa %s6739, 1
    %6741 = vsyncpa [#allocation4], 1
    %s6742 = scalar_lea.sflag [#allocation4], 1
    %6743 = vsyncpa %s6742, 1

</llo_original>
